<compile_context>
chip_gen: v7x
topology: tpu7x:2x2x1
jax: 0.10.0
libtpu: 0.0.40
codegen_flags: <defaults>
</compile_context>

<pallas_src>
import math

import jax
import jax.numpy as jnp
from jax.experimental import pallas as pl
from jax.experimental.pallas import tpu as pltpu


def _round_up(x, m):
    return ((x + m - 1) // m) * m


def _spline_head_kernel(x_ref, xemb_ref,
                        wqkv_ref, wo_ref, w1_ref, wres_ref, wf_ref, btab_ref,
                        out_ref):
    f32 = jnp.float32

    L, emb, bb = xemb_ref.shape
    emb3 = wqkv_ref.shape[0]            # 3 * emb
    layer = wres_ref.shape[1]
    n_out = out_ref.shape[1]

    # ---- packed bias columns (all slices sublane-aligned) ----
    btab = btab_ref[...]                 # (rtot, 1)
    o = 0
    b_qkv = btab[o:o + emb3]; o += emb3  # (3emb, 1)  (bq already scaled by 1/sqrt(emb))
    b_o = btab[o:o + emb]; o += emb
    b_1 = btab[o:o + layer]; o += layer
    b_res = []
    for _ in range(4):
        b_res.append(btab[o:o + layer]); o += layer
    b_f = btab[o:o + n_out]              # (n, 1)

    e3 = xemb_ref[...]                   # (L, emb, bb)   batch lane-dense
    wqkv_t = wqkv_ref[...]               # (3emb, emb)    1/sqrt(emb) folded into Wq rows
    wo_t = wo_ref[...]                   # (emb, emb)

    # ---- fused ReLU + QKV projection per position (MXU), lane-dense outputs ----
    q_l, k_l, v_l = [], [], []
    for l in range(L):
        el = jnp.maximum(e3[l], 0.0)                                    # (emb, bb)
        qkv = jnp.dot(wqkv_t, el, preferred_element_type=f32) + b_qkv   # (3emb, bb)
        q_l.append(qkv[0:emb])           # sublane-aligned row slices
        k_l.append(qkv[emb:2 * emb])
        v_l.append(qkv[2 * emb:3 * emb])
    q3 = jnp.stack(q_l, axis=0)          # (L, emb, bb)

    # ---- scores + softmax, batch in lanes ----
    def _sum_emb(x):
        # reduce (L, c, bb) over axis 1: aligned halving (VPU adds) down to one
        # sublane tile, then a single small sublane reduce.
        c = x.shape[1]
        while c > 8 and c % 16 == 0:
            h = c // 2
            x = x[:, :h, :] + x[:, h:, :]
            c = h
        return jnp.sum(x, axis=1)        # (L, bb)

    s_rows = []                          # s_rows[m][l, b] = q_l . k_m  (scale pre-folded)
    for m in range(L):
        s_rows.append(_sum_emb(q3 * k_l[m][None, :, :]))

    s_max = s_rows[0]
    for m in range(1, L):
        s_max = jnp.maximum(s_max, s_rows[m])
    p_rows = [jnp.exp(sm - s_max) for sm in s_rows]
    denom = p_rows[0]
    for m in range(1, L):
        denom = denom + p_rows[m]
    inv = pl.reciprocal(denom, approx=True)              # (L, bb)

    # ---- context, output projection, residual, mean pool (per position) ----
    pool = jnp.zeros((emb, bb), f32)
    for l in range(L):
        acc = p_rows[0][l:l + 1, :] * v_l[0]             # (emb, bb)
        for m in range(1, L):
            acc = acc + p_rows[m][l:l + 1, :] * v_l[m]
        r_l = acc * inv[l:l + 1, :]                      # softmax-normalized context
        ro = jnp.dot(wo_t, jnp.maximum(r_l, 0.0),
                     preferred_element_type=f32) + b_o   # (emb, bb)
        pool = pool + e3[l] + ro
    h = pool * (1.0 / L)                                 # (emb, bb)

    # ---- fc head (transposed): fused first layer, 2 ResBlocks, final linear ----
    xh = jnp.concatenate([x_ref[...], h], axis=0)        # (a8 + emb, bb)
    y = jnp.dot(w1_ref[...], xh, preferred_element_type=f32) + b_1   # (layer, bb)

    def resblock(y, wa, ba, wb, bbias):
        t = jnp.dot(wa, jnp.maximum(y, 0.0), preferred_element_type=f32) + ba
        t = jnp.dot(wb, jnp.maximum(t, 0.0), preferred_element_type=f32) + bbias
        return y + t

    y = resblock(y, wres_ref[0], b_res[0], wres_ref[1], b_res[1])
    y = resblock(y, wres_ref[2], b_res[2], wres_ref[3], b_res[3])

    out_t = jnp.dot(wf_ref[...], jnp.maximum(y, 0.0),
                    preferred_element_type=f32) + b_f    # (n, bb)  lane-dense
    out_ref[...] = out_t[None].astype(out_ref.dtype)     # (1, n, bb)


def spline_head_forward(x, x_emb, params, *, block_b=512):
    """x: (B, actions) f32; x_emb: (B, L, emb) f32 -> (B,) if n == 1 else (B, n)."""
    B, actions = x.shape
    _, L, emb = x_emb.shape
    layer = params["W1h"].shape[1]
    n = params["Wf"].shape[1]
    assert emb % 8 == 0 and layer % 8 == 0, "emb/layer must be sublane aligned"

    a8 = _round_up(actions, 8)

    # batch block becomes the lane dimension inside the kernel -> multiple of 128
    bb = max(128, min(_round_up(block_b, 128), _round_up(B, 128)))
    nblk = pl.cdiv(B, bb)
    Bp = nblk * bb

    # ---- lane-dense (feature, batch) inputs (layout plumbing in the wrapper) ----
    x_t = jnp.pad(x.astype(jnp.float32), ((0, Bp - B), (0, a8 - actions))).T       # (a8, Bp)
    xe = jnp.pad(x_emb.astype(jnp.float32), ((0, Bp - B), (0, 0), (0, 0)))
    xe_t = jnp.transpose(xe, (1, 2, 0))                                            # (L, emb, Bp)

    scale = 1.0 / math.sqrt(emb)

    # ---- transposed / packed weights (1/sqrt(emb) folded into Wq and bq) ----
    w_qkv_t = jnp.concatenate([params["Wq"] * scale, params["Wk"], params["Wv"]],
                              axis=1).T.astype(jnp.float32)            # (3emb, emb)
    w_o_t = params["Wo"].T.astype(jnp.float32)                         # (emb, emb)
    w1x_t = jnp.pad(params["W1x"].T, ((0, 0), (0, a8 - actions)))      # (layer, a8)
    w1_t = jnp.concatenate([w1x_t, params["W1h"].T], axis=1).astype(jnp.float32)   # (layer, a8+emb)
    w_res_t = jnp.stack([params["Wr1a"].T, params["Wr1b"].T,
                         params["Wr2a"].T, params["Wr2b"].T], axis=0).astype(jnp.float32)
    w_f_t = params["Wf"].T.astype(jnp.float32)                         # (n, layer)

    # packed bias columns; order must match the kernel's unpack offsets
    bias_vec = jnp.concatenate([
        (params["bq"] * scale).reshape(-1), params["bk"].reshape(-1),
        params["bv"].reshape(-1), params["bo"].reshape(-1),
        params["b1"].reshape(-1),
        params["br1a"].reshape(-1), params["br1b"].reshape(-1),
        params["br2a"].reshape(-1), params["br2b"].reshape(-1),
        params["bf"].reshape(-1)]).astype(jnp.float32)
    rtot = _round_up(int(bias_vec.shape[0]), 8)
    btab = jnp.pad(bias_vec, (0, rtot - bias_vec.shape[0])).reshape(rtot, 1)

    weights = [w_qkv_t, w_o_t, w1_t, w_res_t, w_f_t, btab]

    def full_spec(w):
        nd = w.ndim
        return pl.BlockSpec(w.shape, lambda b, _nd=nd: (0,) * _nd)

    in_specs = ([pl.BlockSpec((a8, bb), lambda b: (0, b)),
                 pl.BlockSpec((L, emb, bb), lambda b: (0, 0, b))]
                + [full_spec(w) for w in weights])

    flops_per_elem = (2 * L * emb * (3 * emb) + 2 * L * emb * emb     # 1x1-conv projections
                      + 4 * L * L * emb                               # attention core (VPU)
                      + 2 * ((a8 + emb) * layer + 4 * layer * layer + layer * n))
    weight_bytes = sum(int(w.size) * 4 for w in weights)
    cost = pl.CostEstimate(
        flops=int(flops_per_elem) * int(Bp),
        transcendentals=int(L * L) * int(Bp),
        bytes_accessed=4 * int(Bp) * (L * emb + a8 + n) + weight_bytes)

    out = pl.pallas_call(
        _spline_head_kernel,
        out_shape=jax.ShapeDtypeStruct((nblk, n, bb), jnp.float32),
        grid=(nblk,),
        in_specs=in_specs,
        out_specs=pl.BlockSpec((1, n, bb), lambda b: (b, 0, 0)),
        compiler_params=pltpu.CompilerParams(
            dimension_semantics=("parallel",),
            vmem_limit_bytes=48 * 1024 * 1024),
        cost_estimate=cost,
    )(x_t, xe_t, *weights)

    out = jnp.transpose(out, (0, 2, 1)).reshape(Bp, n)[:B]
    if n == 1:
        out = out[:, 0]                   # matches torch .squeeze(1)
    return out


def init_params(key, actions, layer, n, emb):
    """Deterministic synthetic init (N(0, 0.1)); weights pre-transposed to (in, out)."""
    keys = iter(jax.random.split(key, 64))

    def w(shape):
        return (0.1 * jax.random.normal(next(keys), shape)).astype(jnp.float32)

    p = {}
    for name in ["Wq", "Wk", "Wv", "Wo"]:
        p[name] = w((emb, emb))
    for name in ["bq", "bk", "bv", "bo"]:
        p[name] = w((1, emb))
    p["W1x"] = w((actions, layer))
    p["W1h"] = w((emb, layer))
    p["b1"] = w((1, layer))
    for name in ["Wr1a", "Wr1b", "Wr2a", "Wr2b"]:
        p[name] = w((layer, layer))
    for name in ["br1a", "br1b", "br2a", "br2b"]:
        p[name] = w((1, layer))
    p["Wf"] = w((layer, n))
    p["bf"] = w((1, n))
    return p


def reference_forward(x, x_emb, p):
    """Pure-JAX reference mirroring the PyTorch module semantics."""
    relu = lambda t: jnp.maximum(t, 0.0)
    e = x_emb                                           # (B, L, emb)
    emb = e.shape[-1]
    q = relu(e) @ p["Wq"] + p["bq"]
    k = relu(e) @ p["Wk"] + p["bk"]
    v = relu(e) @ p["Wv"] + p["bv"]
    s = jnp.einsum("blc,bmc->blm", q, k) / math.sqrt(emb)
    a = jax.nn.softmax(s, axis=-1)
    r = jnp.einsum("blm,bmc->blc", a, v)
    r = relu(r) @ p["Wo"] + p["bo"]
    blk = e + r
    h = jnp.mean(blk, axis=1)                           # (B, emb)
    y = x @ p["W1x"] + h @ p["W1h"] + p["b1"]
    for a_, ba, b_, bb in [("Wr1a", "br1a", "Wr1b", "br1b"),
                           ("Wr2a", "br2a", "Wr2b", "br2b")]:
        t = relu(y) @ p[a_] + p[ba]
        t = relu(t) @ p[b_] + p[bb]
        y = y + t
    out = relu(y) @ p["Wf"] + p["bf"]                   # (B, n)
    if out.shape[1] == 1:
        out = out[:, 0]
    return out


if __name__ == "__main__":
    B, L = 2, 8
    actions, layer, n, emb = 4, 32, 1, 32

    key = jax.random.PRNGKey(0)
    kx, ke, kp = jax.random.split(key, 3)
    x = jax.random.normal(kx, (B, actions), dtype=jnp.float32)
    x_emb = jax.random.normal(ke, (B, L, emb), dtype=jnp.float32)
    params = init_params(kp, actions, layer, n, emb)

    out = jax.block_until_ready(spline_head_forward(x, x_emb, params))
    ref = jax.block_until_ready(reference_forward(x, x_emb, params))

    assert out.shape == ref.shape == (B,), (out.shape, ref.shape)
    assert bool(jnp.allclose(out, ref, rtol=2e-2, atol=2e-3)), (out, ref)

    print("KERNEL_OK")
</pallas_src>

<mosaic_0001>
module attributes {stable_mosaic.version = 11 : i64} {
  func.func @_spline_head_kernel(%arg0: i32, %arg1: memref<8x128xf32, #tpu.memory_space<vmem>>, %arg2: memref<8x32x128xf32, #tpu.memory_space<vmem>>, %arg3: memref<96x32xf32, #tpu.memory_space<vmem>>, %arg4: memref<32x32xf32, #tpu.memory_space<vmem>>, %arg5: memref<32x40xf32, #tpu.memory_space<vmem>>, %arg6: memref<4x32x32xf32, #tpu.memory_space<vmem>>, %arg7: memref<1x32xf32, #tpu.memory_space<vmem>>, %arg8: memref<296x1xf32, #tpu.memory_space<vmem>>, %arg9: memref<1x1x128xf32, #tpu.memory_space<vmem>>) attributes {dimension_semantics = [#tpu.dimension_semantics<parallel>], iteration_bounds = array<i64: 1>, scalar_prefetch = 0 : i64, scratch_operands = 0 : i64, tpu.core_type = #tpu.core_type<tc>, window_params = [{transform_indices = @transform_0, window_bounds = array<i64: 8, 128>}, {transform_indices = @transform_1, window_bounds = array<i64: 8, 32, 128>}, {pipeline_mode = #tpu.pipeline_mode<synchronous>, transform_indices = @transform_2, window_bounds = array<i64: 96, 32>}, {pipeline_mode = #tpu.pipeline_mode<synchronous>, transform_indices = @transform_3, window_bounds = array<i64: 32, 32>}, {pipeline_mode = #tpu.pipeline_mode<synchronous>, transform_indices = @transform_4, window_bounds = array<i64: 32, 40>}, {pipeline_mode = #tpu.pipeline_mode<synchronous>, transform_indices = @transform_5, window_bounds = array<i64: 4, 32, 32>}, {pipeline_mode = #tpu.pipeline_mode<synchronous>, transform_indices = @transform_6, window_bounds = array<i64: 1, 32>}, {pipeline_mode = #tpu.pipeline_mode<synchronous>, transform_indices = @transform_7, window_bounds = array<i64: 296, 1>}, {transform_indices = @transform_8, window_bounds = array<i64: 1, 1, 128>}]} {
    %c0 = arith.constant 0 : index
    %c0_0 = arith.constant 0 : index
    %0 = vector.load %arg8[%c0, %c0_0] : memref<296x1xf32, #tpu.memory_space<vmem>>, vector<296x1xf32>
    %1 = vector.extract_strided_slice %0 {offsets = [0, 0], sizes = [96, 1], strides = [1, 1]} : vector<296x1xf32> to vector<96x1xf32>
    %2 = vector.extract_strided_slice %0 {offsets = [96, 0], sizes = [32, 1], strides = [1, 1]} : vector<296x1xf32> to vector<32x1xf32>
    %3 = vector.extract_strided_slice %0 {offsets = [128, 0], sizes = [32, 1], strides = [1, 1]} : vector<296x1xf32> to vector<32x1xf32>
    %4 = vector.extract_strided_slice %0 {offsets = [160, 0], sizes = [32, 1], strides = [1, 1]} : vector<296x1xf32> to vector<32x1xf32>
    %5 = vector.extract_strided_slice %0 {offsets = [192, 0], sizes = [32, 1], strides = [1, 1]} : vector<296x1xf32> to vector<32x1xf32>
    %6 = vector.extract_strided_slice %0 {offsets = [224, 0], sizes = [32, 1], strides = [1, 1]} : vector<296x1xf32> to vector<32x1xf32>
    %7 = vector.extract_strided_slice %0 {offsets = [256, 0], sizes = [32, 1], strides = [1, 1]} : vector<296x1xf32> to vector<32x1xf32>
    %8 = vector.extract_strided_slice %0 {offsets = [288, 0], sizes = [1, 1], strides = [1, 1]} : vector<296x1xf32> to vector<1x1xf32>
    %c0_1 = arith.constant 0 : index
    %c0_2 = arith.constant 0 : index
    %c0_3 = arith.constant 0 : index
    %9 = vector.load %arg2[%c0_1, %c0_2, %c0_3] : memref<8x32x128xf32, #tpu.memory_space<vmem>>, vector<8x32x128xf32>
    %c0_4 = arith.constant 0 : index
    %c0_5 = arith.constant 0 : index
    %10 = vector.load %arg3[%c0_4, %c0_5] : memref<96x32xf32, #tpu.memory_space<vmem>>, vector<96x32xf32>
    %c0_6 = arith.constant 0 : index
    %c0_7 = arith.constant 0 : index
    %11 = vector.load %arg4[%c0_6, %c0_7] : memref<32x32xf32, #tpu.memory_space<vmem>>, vector<32x32xf32>
    %12 = vector.extract_strided_slice %9 {offsets = [0, 0, 0], sizes = [1, 32, 128], strides = [1, 1, 1]} : vector<8x32x128xf32> to vector<1x32x128xf32>
    %13 = vector.shape_cast %12 : vector<1x32x128xf32> to vector<32x128xf32>
    %cst = arith.constant 0.000000e+00 : f32
    %14 = vector.broadcast %cst : f32 to vector<32x128xf32>
    %15 = arith.maximumf %13, %14 : vector<32x128xf32>
    %cst_8 = arith.constant dense<0.000000e+00> : vector<96x128xf32>
    %16 = tpu.matmul %10, %15, %cst_8 {dimension_numbers = #tpu.dot_dimension_numbers<[1], [0], [0], [1], [0, 0, 1, 1], [], []>} : vector<96x32xf32>, vector<32x128xf32>, vector<96x128xf32> -> vector<96x128xf32>
    %17 = vector.broadcast %1 : vector<96x1xf32> to vector<96x128xf32>
    %18 = arith.addf %16, %17 : vector<96x128xf32>
    %19 = vector.extract_strided_slice %18 {offsets = [0, 0], sizes = [32, 128], strides = [1, 1]} : vector<96x128xf32> to vector<32x128xf32>
    %20 = vector.extract_strided_slice %18 {offsets = [32, 0], sizes = [32, 128], strides = [1, 1]} : vector<96x128xf32> to vector<32x128xf32>
    %21 = vector.extract_strided_slice %18 {offsets = [64, 0], sizes = [32, 128], strides = [1, 1]} : vector<96x128xf32> to vector<32x128xf32>
    %22 = vector.extract_strided_slice %9 {offsets = [1, 0, 0], sizes = [1, 32, 128], strides = [1, 1, 1]} : vector<8x32x128xf32> to vector<1x32x128xf32>
    %23 = vector.shape_cast %22 : vector<1x32x128xf32> to vector<32x128xf32>
    %cst_9 = arith.constant 0.000000e+00 : f32
    %24 = vector.broadcast %cst_9 : f32 to vector<32x128xf32>
    %25 = arith.maximumf %23, %24 : vector<32x128xf32>
    %cst_10 = arith.constant dense<0.000000e+00> : vector<96x128xf32>
    %26 = tpu.matmul %10, %25, %cst_10 {dimension_numbers = #tpu.dot_dimension_numbers<[1], [0], [0], [1], [0, 0, 1, 1], [], []>} : vector<96x32xf32>, vector<32x128xf32>, vector<96x128xf32> -> vector<96x128xf32>
    %27 = vector.broadcast %1 : vector<96x1xf32> to vector<96x128xf32>
    %28 = arith.addf %26, %27 : vector<96x128xf32>
    %29 = vector.extract_strided_slice %28 {offsets = [0, 0], sizes = [32, 128], strides = [1, 1]} : vector<96x128xf32> to vector<32x128xf32>
    %30 = vector.extract_strided_slice %28 {offsets = [32, 0], sizes = [32, 128], strides = [1, 1]} : vector<96x128xf32> to vector<32x128xf32>
    %31 = vector.extract_strided_slice %28 {offsets = [64, 0], sizes = [32, 128], strides = [1, 1]} : vector<96x128xf32> to vector<32x128xf32>
    %32 = vector.extract_strided_slice %9 {offsets = [2, 0, 0], sizes = [1, 32, 128], strides = [1, 1, 1]} : vector<8x32x128xf32> to vector<1x32x128xf32>
    %33 = vector.shape_cast %32 : vector<1x32x128xf32> to vector<32x128xf32>
    %cst_11 = arith.constant 0.000000e+00 : f32
    %34 = vector.broadcast %cst_11 : f32 to vector<32x128xf32>
    %35 = arith.maximumf %33, %34 : vector<32x128xf32>
    %cst_12 = arith.constant dense<0.000000e+00> : vector<96x128xf32>
    %36 = tpu.matmul %10, %35, %cst_12 {dimension_numbers = #tpu.dot_dimension_numbers<[1], [0], [0], [1], [0, 0, 1, 1], [], []>} : vector<96x32xf32>, vector<32x128xf32>, vector<96x128xf32> -> vector<96x128xf32>
    %37 = vector.broadcast %1 : vector<96x1xf32> to vector<96x128xf32>
    %38 = arith.addf %36, %37 : vector<96x128xf32>
    %39 = vector.extract_strided_slice %38 {offsets = [0, 0], sizes = [32, 128], strides = [1, 1]} : vector<96x128xf32> to vector<32x128xf32>
    %40 = vector.extract_strided_slice %38 {offsets = [32, 0], sizes = [32, 128], strides = [1, 1]} : vector<96x128xf32> to vector<32x128xf32>
    %41 = vector.extract_strided_slice %38 {offsets = [64, 0], sizes = [32, 128], strides = [1, 1]} : vector<96x128xf32> to vector<32x128xf32>
    %42 = vector.extract_strided_slice %9 {offsets = [3, 0, 0], sizes = [1, 32, 128], strides = [1, 1, 1]} : vector<8x32x128xf32> to vector<1x32x128xf32>
    %43 = vector.shape_cast %42 : vector<1x32x128xf32> to vector<32x128xf32>
    %cst_13 = arith.constant 0.000000e+00 : f32
    %44 = vector.broadcast %cst_13 : f32 to vector<32x128xf32>
    %45 = arith.maximumf %43, %44 : vector<32x128xf32>
    %cst_14 = arith.constant dense<0.000000e+00> : vector<96x128xf32>
    %46 = tpu.matmul %10, %45, %cst_14 {dimension_numbers = #tpu.dot_dimension_numbers<[1], [0], [0], [1], [0, 0, 1, 1], [], []>} : vector<96x32xf32>, vector<32x128xf32>, vector<96x128xf32> -> vector<96x128xf32>
    %47 = vector.broadcast %1 : vector<96x1xf32> to vector<96x128xf32>
    %48 = arith.addf %46, %47 : vector<96x128xf32>
    %49 = vector.extract_strided_slice %48 {offsets = [0, 0], sizes = [32, 128], strides = [1, 1]} : vector<96x128xf32> to vector<32x128xf32>
    %50 = vector.extract_strided_slice %48 {offsets = [32, 0], sizes = [32, 128], strides = [1, 1]} : vector<96x128xf32> to vector<32x128xf32>
    %51 = vector.extract_strided_slice %48 {offsets = [64, 0], sizes = [32, 128], strides = [1, 1]} : vector<96x128xf32> to vector<32x128xf32>
    %52 = vector.extract_strided_slice %9 {offsets = [4, 0, 0], sizes = [1, 32, 128], strides = [1, 1, 1]} : vector<8x32x128xf32> to vector<1x32x128xf32>
    %53 = vector.shape_cast %52 : vector<1x32x128xf32> to vector<32x128xf32>
    %cst_15 = arith.constant 0.000000e+00 : f32
    %54 = vector.broadcast %cst_15 : f32 to vector<32x128xf32>
    %55 = arith.maximumf %53, %54 : vector<32x128xf32>
    %cst_16 = arith.constant dense<0.000000e+00> : vector<96x128xf32>
    %56 = tpu.matmul %10, %55, %cst_16 {dimension_numbers = #tpu.dot_dimension_numbers<[1], [0], [0], [1], [0, 0, 1, 1], [], []>} : vector<96x32xf32>, vector<32x128xf32>, vector<96x128xf32> -> vector<96x128xf32>
    %57 = vector.broadcast %1 : vector<96x1xf32> to vector<96x128xf32>
    %58 = arith.addf %56, %57 : vector<96x128xf32>
    %59 = vector.extract_strided_slice %58 {offsets = [0, 0], sizes = [32, 128], strides = [1, 1]} : vector<96x128xf32> to vector<32x128xf32>
    %60 = vector.extract_strided_slice %58 {offsets = [32, 0], sizes = [32, 128], strides = [1, 1]} : vector<96x128xf32> to vector<32x128xf32>
    %61 = vector.extract_strided_slice %58 {offsets = [64, 0], sizes = [32, 128], strides = [1, 1]} : vector<96x128xf32> to vector<32x128xf32>
    %62 = vector.extract_strided_slice %9 {offsets = [5, 0, 0], sizes = [1, 32, 128], strides = [1, 1, 1]} : vector<8x32x128xf32> to vector<1x32x128xf32>
    %63 = vector.shape_cast %62 : vector<1x32x128xf32> to vector<32x128xf32>
    %cst_17 = arith.constant 0.000000e+00 : f32
    %64 = vector.broadcast %cst_17 : f32 to vector<32x128xf32>
    %65 = arith.maximumf %63, %64 : vector<32x128xf32>
    %cst_18 = arith.constant dense<0.000000e+00> : vector<96x128xf32>
    %66 = tpu.matmul %10, %65, %cst_18 {dimension_numbers = #tpu.dot_dimension_numbers<[1], [0], [0], [1], [0, 0, 1, 1], [], []>} : vector<96x32xf32>, vector<32x128xf32>, vector<96x128xf32> -> vector<96x128xf32>
    %67 = vector.broadcast %1 : vector<96x1xf32> to vector<96x128xf32>
    %68 = arith.addf %66, %67 : vector<96x128xf32>
    %69 = vector.extract_strided_slice %68 {offsets = [0, 0], sizes = [32, 128], strides = [1, 1]} : vector<96x128xf32> to vector<32x128xf32>
    %70 = vector.extract_strided_slice %68 {offsets = [32, 0], sizes = [32, 128], strides = [1, 1]} : vector<96x128xf32> to vector<32x128xf32>
    %71 = vector.extract_strided_slice %68 {offsets = [64, 0], sizes = [32, 128], strides = [1, 1]} : vector<96x128xf32> to vector<32x128xf32>
    %72 = vector.extract_strided_slice %9 {offsets = [6, 0, 0], sizes = [1, 32, 128], strides = [1, 1, 1]} : vector<8x32x128xf32> to vector<1x32x128xf32>
    %73 = vector.shape_cast %72 : vector<1x32x128xf32> to vector<32x128xf32>
    %cst_19 = arith.constant 0.000000e+00 : f32
    %74 = vector.broadcast %cst_19 : f32 to vector<32x128xf32>
    %75 = arith.maximumf %73, %74 : vector<32x128xf32>
    %cst_20 = arith.constant dense<0.000000e+00> : vector<96x128xf32>
    %76 = tpu.matmul %10, %75, %cst_20 {dimension_numbers = #tpu.dot_dimension_numbers<[1], [0], [0], [1], [0, 0, 1, 1], [], []>} : vector<96x32xf32>, vector<32x128xf32>, vector<96x128xf32> -> vector<96x128xf32>
    %77 = vector.broadcast %1 : vector<96x1xf32> to vector<96x128xf32>
    %78 = arith.addf %76, %77 : vector<96x128xf32>
    %79 = vector.extract_strided_slice %78 {offsets = [0, 0], sizes = [32, 128], strides = [1, 1]} : vector<96x128xf32> to vector<32x128xf32>
    %80 = vector.extract_strided_slice %78 {offsets = [32, 0], sizes = [32, 128], strides = [1, 1]} : vector<96x128xf32> to vector<32x128xf32>
    %81 = vector.extract_strided_slice %78 {offsets = [64, 0], sizes = [32, 128], strides = [1, 1]} : vector<96x128xf32> to vector<32x128xf32>
    %82 = vector.extract_strided_slice %9 {offsets = [7, 0, 0], sizes = [1, 32, 128], strides = [1, 1, 1]} : vector<8x32x128xf32> to vector<1x32x128xf32>
    %83 = vector.shape_cast %82 : vector<1x32x128xf32> to vector<32x128xf32>
    %cst_21 = arith.constant 0.000000e+00 : f32
    %84 = vector.broadcast %cst_21 : f32 to vector<32x128xf32>
    %85 = arith.maximumf %83, %84 : vector<32x128xf32>
    %cst_22 = arith.constant dense<0.000000e+00> : vector<96x128xf32>
    %86 = tpu.matmul %10, %85, %cst_22 {dimension_numbers = #tpu.dot_dimension_numbers<[1], [0], [0], [1], [0, 0, 1, 1], [], []>} : vector<96x32xf32>, vector<32x128xf32>, vector<96x128xf32> -> vector<96x128xf32>
    %87 = vector.broadcast %1 : vector<96x1xf32> to vector<96x128xf32>
    %88 = arith.addf %86, %87 : vector<96x128xf32>
    %89 = vector.extract_strided_slice %88 {offsets = [0, 0], sizes = [32, 128], strides = [1, 1]} : vector<96x128xf32> to vector<32x128xf32>
    %90 = vector.extract_strided_slice %88 {offsets = [32, 0], sizes = [32, 128], strides = [1, 1]} : vector<96x128xf32> to vector<32x128xf32>
    %91 = vector.extract_strided_slice %88 {offsets = [64, 0], sizes = [32, 128], strides = [1, 1]} : vector<96x128xf32> to vector<32x128xf32>
    %92 = vector.shape_cast %19 : vector<32x128xf32> to vector<1x32x128xf32>
    %93 = vector.shape_cast %29 : vector<32x128xf32> to vector<1x32x128xf32>
    %94 = vector.shape_cast %39 : vector<32x128xf32> to vector<1x32x128xf32>
    %95 = vector.shape_cast %49 : vector<32x128xf32> to vector<1x32x128xf32>
    %96 = vector.shape_cast %59 : vector<32x128xf32> to vector<1x32x128xf32>
    %97 = vector.shape_cast %69 : vector<32x128xf32> to vector<1x32x128xf32>
    %98 = vector.shape_cast %79 : vector<32x128xf32> to vector<1x32x128xf32>
    %99 = vector.shape_cast %89 : vector<32x128xf32> to vector<1x32x128xf32>
    %100 = tpu.concatenate %92, %93, %94, %95, %96, %97, %98, %99 in 0 : vector<1x32x128xf32>, vector<1x32x128xf32>, vector<1x32x128xf32>, vector<1x32x128xf32>, vector<1x32x128xf32>, vector<1x32x128xf32>, vector<1x32x128xf32>, vector<1x32x128xf32> -> vector<8x32x128xf32>
    %101 = vector.shape_cast %20 : vector<32x128xf32> to vector<1x32x128xf32>
    %102 = vector.broadcast %101 : vector<1x32x128xf32> to vector<8x32x128xf32>
    %103 = arith.mulf %100, %102 : vector<8x32x128xf32>
    %104 = vector.extract_strided_slice %103 {offsets = [0, 0, 0], sizes = [8, 16, 128], strides = [1, 1, 1]} : vector<8x32x128xf32> to vector<8x16x128xf32>
    %105 = vector.extract_strided_slice %103 {offsets = [0, 16, 0], sizes = [8, 16, 128], strides = [1, 1, 1]} : vector<8x32x128xf32> to vector<8x16x128xf32>
    %106 = arith.addf %104, %105 : vector<8x16x128xf32>
    %107 = vector.extract_strided_slice %106 {offsets = [0, 0, 0], sizes = [8, 8, 128], strides = [1, 1, 1]} : vector<8x16x128xf32> to vector<8x8x128xf32>
    %108 = vector.extract_strided_slice %106 {offsets = [0, 8, 0], sizes = [8, 8, 128], strides = [1, 1, 1]} : vector<8x16x128xf32> to vector<8x8x128xf32>
    %109 = arith.addf %107, %108 : vector<8x8x128xf32>
    %cst_23 = arith.constant dense<0.000000e+00> : vector<8x128xf32>
    %110 = vector.multi_reduction <add>, %109, %cst_23 [1] : vector<8x8x128xf32> to vector<8x128xf32>
    %111 = vector.shape_cast %30 : vector<32x128xf32> to vector<1x32x128xf32>
    %112 = vector.broadcast %111 : vector<1x32x128xf32> to vector<8x32x128xf32>
    %113 = arith.mulf %100, %112 : vector<8x32x128xf32>
    %114 = vector.extract_strided_slice %113 {offsets = [0, 0, 0], sizes = [8, 16, 128], strides = [1, 1, 1]} : vector<8x32x128xf32> to vector<8x16x128xf32>
    %115 = vector.extract_strided_slice %113 {offsets = [0, 16, 0], sizes = [8, 16, 128], strides = [1, 1, 1]} : vector<8x32x128xf32> to vector<8x16x128xf32>
    %116 = arith.addf %114, %115 : vector<8x16x128xf32>
    %117 = vector.extract_strided_slice %116 {offsets = [0, 0, 0], sizes = [8, 8, 128], strides = [1, 1, 1]} : vector<8x16x128xf32> to vector<8x8x128xf32>
    %118 = vector.extract_strided_slice %116 {offsets = [0, 8, 0], sizes = [8, 8, 128], strides = [1, 1, 1]} : vector<8x16x128xf32> to vector<8x8x128xf32>
    %119 = arith.addf %117, %118 : vector<8x8x128xf32>
    %cst_24 = arith.constant dense<0.000000e+00> : vector<8x128xf32>
    %120 = vector.multi_reduction <add>, %119, %cst_24 [1] : vector<8x8x128xf32> to vector<8x128xf32>
    %121 = vector.shape_cast %40 : vector<32x128xf32> to vector<1x32x128xf32>
    %122 = vector.broadcast %121 : vector<1x32x128xf32> to vector<8x32x128xf32>
    %123 = arith.mulf %100, %122 : vector<8x32x128xf32>
    %124 = vector.extract_strided_slice %123 {offsets = [0, 0, 0], sizes = [8, 16, 128], strides = [1, 1, 1]} : vector<8x32x128xf32> to vector<8x16x128xf32>
    %125 = vector.extract_strided_slice %123 {offsets = [0, 16, 0], sizes = [8, 16, 128], strides = [1, 1, 1]} : vector<8x32x128xf32> to vector<8x16x128xf32>
    %126 = arith.addf %124, %125 : vector<8x16x128xf32>
    %127 = vector.extract_strided_slice %126 {offsets = [0, 0, 0], sizes = [8, 8, 128], strides = [1, 1, 1]} : vector<8x16x128xf32> to vector<8x8x128xf32>
    %128 = vector.extract_strided_slice %126 {offsets = [0, 8, 0], sizes = [8, 8, 128], strides = [1, 1, 1]} : vector<8x16x128xf32> to vector<8x8x128xf32>
    %129 = arith.addf %127, %128 : vector<8x8x128xf32>
    %cst_25 = arith.constant dense<0.000000e+00> : vector<8x128xf32>
    %130 = vector.multi_reduction <add>, %129, %cst_25 [1] : vector<8x8x128xf32> to vector<8x128xf32>
    %131 = vector.shape_cast %50 : vector<32x128xf32> to vector<1x32x128xf32>
    %132 = vector.broadcast %131 : vector<1x32x128xf32> to vector<8x32x128xf32>
    %133 = arith.mulf %100, %132 : vector<8x32x128xf32>
    %134 = vector.extract_strided_slice %133 {offsets = [0, 0, 0], sizes = [8, 16, 128], strides = [1, 1, 1]} : vector<8x32x128xf32> to vector<8x16x128xf32>
    %135 = vector.extract_strided_slice %133 {offsets = [0, 16, 0], sizes = [8, 16, 128], strides = [1, 1, 1]} : vector<8x32x128xf32> to vector<8x16x128xf32>
    %136 = arith.addf %134, %135 : vector<8x16x128xf32>
    %137 = vector.extract_strided_slice %136 {offsets = [0, 0, 0], sizes = [8, 8, 128], strides = [1, 1, 1]} : vector<8x16x128xf32> to vector<8x8x128xf32>
    %138 = vector.extract_strided_slice %136 {offsets = [0, 8, 0], sizes = [8, 8, 128], strides = [1, 1, 1]} : vector<8x16x128xf32> to vector<8x8x128xf32>
    %139 = arith.addf %137, %138 : vector<8x8x128xf32>
    %cst_26 = arith.constant dense<0.000000e+00> : vector<8x128xf32>
    %140 = vector.multi_reduction <add>, %139, %cst_26 [1] : vector<8x8x128xf32> to vector<8x128xf32>
    %141 = vector.shape_cast %60 : vector<32x128xf32> to vector<1x32x128xf32>
    %142 = vector.broadcast %141 : vector<1x32x128xf32> to vector<8x32x128xf32>
    %143 = arith.mulf %100, %142 : vector<8x32x128xf32>
    %144 = vector.extract_strided_slice %143 {offsets = [0, 0, 0], sizes = [8, 16, 128], strides = [1, 1, 1]} : vector<8x32x128xf32> to vector<8x16x128xf32>
    %145 = vector.extract_strided_slice %143 {offsets = [0, 16, 0], sizes = [8, 16, 128], strides = [1, 1, 1]} : vector<8x32x128xf32> to vector<8x16x128xf32>
    %146 = arith.addf %144, %145 : vector<8x16x128xf32>
    %147 = vector.extract_strided_slice %146 {offsets = [0, 0, 0], sizes = [8, 8, 128], strides = [1, 1, 1]} : vector<8x16x128xf32> to vector<8x8x128xf32>
    %148 = vector.extract_strided_slice %146 {offsets = [0, 8, 0], sizes = [8, 8, 128], strides = [1, 1, 1]} : vector<8x16x128xf32> to vector<8x8x128xf32>
    %149 = arith.addf %147, %148 : vector<8x8x128xf32>
    %cst_27 = arith.constant dense<0.000000e+00> : vector<8x128xf32>
    %150 = vector.multi_reduction <add>, %149, %cst_27 [1] : vector<8x8x128xf32> to vector<8x128xf32>
    %151 = vector.shape_cast %70 : vector<32x128xf32> to vector<1x32x128xf32>
    %152 = vector.broadcast %151 : vector<1x32x128xf32> to vector<8x32x128xf32>
    %153 = arith.mulf %100, %152 : vector<8x32x128xf32>
    %154 = vector.extract_strided_slice %153 {offsets = [0, 0, 0], sizes = [8, 16, 128], strides = [1, 1, 1]} : vector<8x32x128xf32> to vector<8x16x128xf32>
    %155 = vector.extract_strided_slice %153 {offsets = [0, 16, 0], sizes = [8, 16, 128], strides = [1, 1, 1]} : vector<8x32x128xf32> to vector<8x16x128xf32>
    %156 = arith.addf %154, %155 : vector<8x16x128xf32>
    %157 = vector.extract_strided_slice %156 {offsets = [0, 0, 0], sizes = [8, 8, 128], strides = [1, 1, 1]} : vector<8x16x128xf32> to vector<8x8x128xf32>
    %158 = vector.extract_strided_slice %156 {offsets = [0, 8, 0], sizes = [8, 8, 128], strides = [1, 1, 1]} : vector<8x16x128xf32> to vector<8x8x128xf32>
    %159 = arith.addf %157, %158 : vector<8x8x128xf32>
    %cst_28 = arith.constant dense<0.000000e+00> : vector<8x128xf32>
    %160 = vector.multi_reduction <add>, %159, %cst_28 [1] : vector<8x8x128xf32> to vector<8x128xf32>
    %161 = vector.shape_cast %80 : vector<32x128xf32> to vector<1x32x128xf32>
    %162 = vector.broadcast %161 : vector<1x32x128xf32> to vector<8x32x128xf32>
    %163 = arith.mulf %100, %162 : vector<8x32x128xf32>
    %164 = vector.extract_strided_slice %163 {offsets = [0, 0, 0], sizes = [8, 16, 128], strides = [1, 1, 1]} : vector<8x32x128xf32> to vector<8x16x128xf32>
    %165 = vector.extract_strided_slice %163 {offsets = [0, 16, 0], sizes = [8, 16, 128], strides = [1, 1, 1]} : vector<8x32x128xf32> to vector<8x16x128xf32>
    %166 = arith.addf %164, %165 : vector<8x16x128xf32>
    %167 = vector.extract_strided_slice %166 {offsets = [0, 0, 0], sizes = [8, 8, 128], strides = [1, 1, 1]} : vector<8x16x128xf32> to vector<8x8x128xf32>
    %168 = vector.extract_strided_slice %166 {offsets = [0, 8, 0], sizes = [8, 8, 128], strides = [1, 1, 1]} : vector<8x16x128xf32> to vector<8x8x128xf32>
    %169 = arith.addf %167, %168 : vector<8x8x128xf32>
    %cst_29 = arith.constant dense<0.000000e+00> : vector<8x128xf32>
    %170 = vector.multi_reduction <add>, %169, %cst_29 [1] : vector<8x8x128xf32> to vector<8x128xf32>
    %171 = vector.shape_cast %90 : vector<32x128xf32> to vector<1x32x128xf32>
    %172 = vector.broadcast %171 : vector<1x32x128xf32> to vector<8x32x128xf32>
    %173 = arith.mulf %100, %172 : vector<8x32x128xf32>
    %174 = vector.extract_strided_slice %173 {offsets = [0, 0, 0], sizes = [8, 16, 128], strides = [1, 1, 1]} : vector<8x32x128xf32> to vector<8x16x128xf32>
    %175 = vector.extract_strided_slice %173 {offsets = [0, 16, 0], sizes = [8, 16, 128], strides = [1, 1, 1]} : vector<8x32x128xf32> to vector<8x16x128xf32>
    %176 = arith.addf %174, %175 : vector<8x16x128xf32>
    %177 = vector.extract_strided_slice %176 {offsets = [0, 0, 0], sizes = [8, 8, 128], strides = [1, 1, 1]} : vector<8x16x128xf32> to vector<8x8x128xf32>
    %178 = vector.extract_strided_slice %176 {offsets = [0, 8, 0], sizes = [8, 8, 128], strides = [1, 1, 1]} : vector<8x16x128xf32> to vector<8x8x128xf32>
    %179 = arith.addf %177, %178 : vector<8x8x128xf32>
    %cst_30 = arith.constant dense<0.000000e+00> : vector<8x128xf32>
    %180 = vector.multi_reduction <add>, %179, %cst_30 [1] : vector<8x8x128xf32> to vector<8x128xf32>
    %181 = arith.maximumf %110, %120 : vector<8x128xf32>
    %182 = arith.maximumf %181, %130 : vector<8x128xf32>
    %183 = arith.maximumf %182, %140 : vector<8x128xf32>
    %184 = arith.maximumf %183, %150 : vector<8x128xf32>
    %185 = arith.maximumf %184, %160 : vector<8x128xf32>
    %186 = arith.maximumf %185, %170 : vector<8x128xf32>
    %187 = arith.maximumf %186, %180 : vector<8x128xf32>
    %188 = arith.subf %110, %187 : vector<8x128xf32>
    %189 = math.exp %188 : vector<8x128xf32>
    %190 = arith.subf %120, %187 : vector<8x128xf32>
    %191 = math.exp %190 : vector<8x128xf32>
    %192 = arith.subf %130, %187 : vector<8x128xf32>
    %193 = math.exp %192 : vector<8x128xf32>
    %194 = arith.subf %140, %187 : vector<8x128xf32>
    %195 = math.exp %194 : vector<8x128xf32>
    %196 = arith.subf %150, %187 : vector<8x128xf32>
    %197 = math.exp %196 : vector<8x128xf32>
    %198 = arith.subf %160, %187 : vector<8x128xf32>
    %199 = math.exp %198 : vector<8x128xf32>
    %200 = arith.subf %170, %187 : vector<8x128xf32>
    %201 = math.exp %200 : vector<8x128xf32>
    %202 = arith.subf %180, %187 : vector<8x128xf32>
    %203 = math.exp %202 : vector<8x128xf32>
    %204 = arith.addf %189, %191 : vector<8x128xf32>
    %205 = arith.addf %204, %193 : vector<8x128xf32>
    %206 = arith.addf %205, %195 : vector<8x128xf32>
    %207 = arith.addf %206, %197 : vector<8x128xf32>
    %208 = arith.addf %207, %199 : vector<8x128xf32>
    %209 = arith.addf %208, %201 : vector<8x128xf32>
    %210 = arith.addf %209, %203 : vector<8x128xf32>
    %211 = tpu.reciprocal %210 {approx = true} : vector<8x128xf32> -> vector<8x128xf32>
    %cst_31 = arith.constant 0.000000e+00 : f32
    %212 = vector.broadcast %cst_31 : f32 to vector<32x128xf32>
    %213 = vector.extract_strided_slice %189 {offsets = [0, 0], sizes = [1, 128], strides = [1, 1]} : vector<8x128xf32> to vector<1x128xf32>
    %214 = vector.broadcast %213 : vector<1x128xf32> to vector<32x128xf32>
    %215 = arith.mulf %214, %21 : vector<32x128xf32>
    %216 = vector.extract_strided_slice %191 {offsets = [0, 0], sizes = [1, 128], strides = [1, 1]} : vector<8x128xf32> to vector<1x128xf32>
    %217 = vector.broadcast %216 : vector<1x128xf32> to vector<32x128xf32>
    %218 = arith.mulf %217, %31 : vector<32x128xf32>
    %219 = arith.addf %215, %218 : vector<32x128xf32>
    %220 = vector.extract_strided_slice %193 {offsets = [0, 0], sizes = [1, 128], strides = [1, 1]} : vector<8x128xf32> to vector<1x128xf32>
    %221 = vector.broadcast %220 : vector<1x128xf32> to vector<32x128xf32>
    %222 = arith.mulf %221, %41 : vector<32x128xf32>
    %223 = arith.addf %219, %222 : vector<32x128xf32>
    %224 = vector.extract_strided_slice %195 {offsets = [0, 0], sizes = [1, 128], strides = [1, 1]} : vector<8x128xf32> to vector<1x128xf32>
    %225 = vector.broadcast %224 : vector<1x128xf32> to vector<32x128xf32>
    %226 = arith.mulf %225, %51 : vector<32x128xf32>
    %227 = arith.addf %223, %226 : vector<32x128xf32>
    %228 = vector.extract_strided_slice %197 {offsets = [0, 0], sizes = [1, 128], strides = [1, 1]} : vector<8x128xf32> to vector<1x128xf32>
    %229 = vector.broadcast %228 : vector<1x128xf32> to vector<32x128xf32>
    %230 = arith.mulf %229, %61 : vector<32x128xf32>
    %231 = arith.addf %227, %230 : vector<32x128xf32>
    %232 = vector.extract_strided_slice %199 {offsets = [0, 0], sizes = [1, 128], strides = [1, 1]} : vector<8x128xf32> to vector<1x128xf32>
    %233 = vector.broadcast %232 : vector<1x128xf32> to vector<32x128xf32>
    %234 = arith.mulf %233, %71 : vector<32x128xf32>
    %235 = arith.addf %231, %234 : vector<32x128xf32>
    %236 = vector.extract_strided_slice %201 {offsets = [0, 0], sizes = [1, 128], strides = [1, 1]} : vector<8x128xf32> to vector<1x128xf32>
    %237 = vector.broadcast %236 : vector<1x128xf32> to vector<32x128xf32>
    %238 = arith.mulf %237, %81 : vector<32x128xf32>
    %239 = arith.addf %235, %238 : vector<32x128xf32>
    %240 = vector.extract_strided_slice %203 {offsets = [0, 0], sizes = [1, 128], strides = [1, 1]} : vector<8x128xf32> to vector<1x128xf32>
    %241 = vector.broadcast %240 : vector<1x128xf32> to vector<32x128xf32>
    %242 = arith.mulf %241, %91 : vector<32x128xf32>
    %243 = arith.addf %239, %242 : vector<32x128xf32>
    %244 = vector.extract_strided_slice %211 {offsets = [0, 0], sizes = [1, 128], strides = [1, 1]} : vector<8x128xf32> to vector<1x128xf32>
    %245 = vector.broadcast %244 : vector<1x128xf32> to vector<32x128xf32>
    %246 = arith.mulf %243, %245 : vector<32x128xf32>
    %cst_32 = arith.constant 0.000000e+00 : f32
    %247 = vector.broadcast %cst_32 : f32 to vector<32x128xf32>
    %248 = arith.maximumf %246, %247 : vector<32x128xf32>
    %cst_33 = arith.constant dense<0.000000e+00> : vector<32x128xf32>
    %249 = tpu.matmul %11, %248, %cst_33 {dimension_numbers = #tpu.dot_dimension_numbers<[1], [0], [0], [1], [0, 0, 1, 1], [], []>} : vector<32x32xf32>, vector<32x128xf32>, vector<32x128xf32> -> vector<32x128xf32>
    %250 = vector.broadcast %2 : vector<32x1xf32> to vector<32x128xf32>
    %251 = arith.addf %249, %250 : vector<32x128xf32>
    %252 = vector.extract_strided_slice %9 {offsets = [0, 0, 0], sizes = [1, 32, 128], strides = [1, 1, 1]} : vector<8x32x128xf32> to vector<1x32x128xf32>
    %253 = vector.shape_cast %252 : vector<1x32x128xf32> to vector<32x128xf32>
    %254 = arith.addf %212, %253 : vector<32x128xf32>
    %255 = arith.addf %254, %251 : vector<32x128xf32>
    %256 = vector.extract_strided_slice %189 {offsets = [1, 0], sizes = [1, 128], strides = [1, 1]} : vector<8x128xf32> to vector<1x128xf32>
    %257 = vector.broadcast %256 : vector<1x128xf32> to vector<32x128xf32>
    %258 = arith.mulf %257, %21 : vector<32x128xf32>
    %259 = vector.extract_strided_slice %191 {offsets = [1, 0], sizes = [1, 128], strides = [1, 1]} : vector<8x128xf32> to vector<1x128xf32>
    %260 = vector.broadcast %259 : vector<1x128xf32> to vector<32x128xf32>
    %261 = arith.mulf %260, %31 : vector<32x128xf32>
    %262 = arith.addf %258, %261 : vector<32x128xf32>
    %263 = vector.extract_strided_slice %193 {offsets = [1, 0], sizes = [1, 128], strides = [1, 1]} : vector<8x128xf32> to vector<1x128xf32>
    %264 = vector.broadcast %263 : vector<1x128xf32> to vector<32x128xf32>
    %265 = arith.mulf %264, %41 : vector<32x128xf32>
    %266 = arith.addf %262, %265 : vector<32x128xf32>
    %267 = vector.extract_strided_slice %195 {offsets = [1, 0], sizes = [1, 128], strides = [1, 1]} : vector<8x128xf32> to vector<1x128xf32>
    %268 = vector.broadcast %267 : vector<1x128xf32> to vector<32x128xf32>
    %269 = arith.mulf %268, %51 : vector<32x128xf32>
    %270 = arith.addf %266, %269 : vector<32x128xf32>
    %271 = vector.extract_strided_slice %197 {offsets = [1, 0], sizes = [1, 128], strides = [1, 1]} : vector<8x128xf32> to vector<1x128xf32>
    %272 = vector.broadcast %271 : vector<1x128xf32> to vector<32x128xf32>
    %273 = arith.mulf %272, %61 : vector<32x128xf32>
    %274 = arith.addf %270, %273 : vector<32x128xf32>
    %275 = vector.extract_strided_slice %199 {offsets = [1, 0], sizes = [1, 128], strides = [1, 1]} : vector<8x128xf32> to vector<1x128xf32>
    %276 = vector.broadcast %275 : vector<1x128xf32> to vector<32x128xf32>
    %277 = arith.mulf %276, %71 : vector<32x128xf32>
    %278 = arith.addf %274, %277 : vector<32x128xf32>
    %279 = vector.extract_strided_slice %201 {offsets = [1, 0], sizes = [1, 128], strides = [1, 1]} : vector<8x128xf32> to vector<1x128xf32>
    %280 = vector.broadcast %279 : vector<1x128xf32> to vector<32x128xf32>
    %281 = arith.mulf %280, %81 : vector<32x128xf32>
    %282 = arith.addf %278, %281 : vector<32x128xf32>
    %283 = vector.extract_strided_slice %203 {offsets = [1, 0], sizes = [1, 128], strides = [1, 1]} : vector<8x128xf32> to vector<1x128xf32>
    %284 = vector.broadcast %283 : vector<1x128xf32> to vector<32x128xf32>
    %285 = arith.mulf %284, %91 : vector<32x128xf32>
    %286 = arith.addf %282, %285 : vector<32x128xf32>
    %287 = vector.extract_strided_slice %211 {offsets = [1, 0], sizes = [1, 128], strides = [1, 1]} : vector<8x128xf32> to vector<1x128xf32>
    %288 = vector.broadcast %287 : vector<1x128xf32> to vector<32x128xf32>
    %289 = arith.mulf %286, %288 : vector<32x128xf32>
    %cst_34 = arith.constant 0.000000e+00 : f32
    %290 = vector.broadcast %cst_34 : f32 to vector<32x128xf32>
    %291 = arith.maximumf %289, %290 : vector<32x128xf32>
    %cst_35 = arith.constant dense<0.000000e+00> : vector<32x128xf32>
    %292 = tpu.matmul %11, %291, %cst_35 {dimension_numbers = #tpu.dot_dimension_numbers<[1], [0], [0], [1], [0, 0, 1, 1], [], []>} : vector<32x32xf32>, vector<32x128xf32>, vector<32x128xf32> -> vector<32x128xf32>
    %293 = vector.broadcast %2 : vector<32x1xf32> to vector<32x128xf32>
    %294 = arith.addf %292, %293 : vector<32x128xf32>
    %295 = vector.extract_strided_slice %9 {offsets = [1, 0, 0], sizes = [1, 32, 128], strides = [1, 1, 1]} : vector<8x32x128xf32> to vector<1x32x128xf32>
    %296 = vector.shape_cast %295 : vector<1x32x128xf32> to vector<32x128xf32>
    %297 = arith.addf %255, %296 : vector<32x128xf32>
    %298 = arith.addf %297, %294 : vector<32x128xf32>
    %299 = vector.extract_strided_slice %189 {offsets = [2, 0], sizes = [1, 128], strides = [1, 1]} : vector<8x128xf32> to vector<1x128xf32>
    %300 = vector.broadcast %299 : vector<1x128xf32> to vector<32x128xf32>
    %301 = arith.mulf %300, %21 : vector<32x128xf32>
    %302 = vector.extract_strided_slice %191 {offsets = [2, 0], sizes = [1, 128], strides = [1, 1]} : vector<8x128xf32> to vector<1x128xf32>
    %303 = vector.broadcast %302 : vector<1x128xf32> to vector<32x128xf32>
    %304 = arith.mulf %303, %31 : vector<32x128xf32>
    %305 = arith.addf %301, %304 : vector<32x128xf32>
    %306 = vector.extract_strided_slice %193 {offsets = [2, 0], sizes = [1, 128], strides = [1, 1]} : vector<8x128xf32> to vector<1x128xf32>
    %307 = vector.broadcast %306 : vector<1x128xf32> to vector<32x128xf32>
    %308 = arith.mulf %307, %41 : vector<32x128xf32>
    %309 = arith.addf %305, %308 : vector<32x128xf32>
    %310 = vector.extract_strided_slice %195 {offsets = [2, 0], sizes = [1, 128], strides = [1, 1]} : vector<8x128xf32> to vector<1x128xf32>
    %311 = vector.broadcast %310 : vector<1x128xf32> to vector<32x128xf32>
    %312 = arith.mulf %311, %51 : vector<32x128xf32>
    %313 = arith.addf %309, %312 : vector<32x128xf32>
    %314 = vector.extract_strided_slice %197 {offsets = [2, 0], sizes = [1, 128], strides = [1, 1]} : vector<8x128xf32> to vector<1x128xf32>
    %315 = vector.broadcast %314 : vector<1x128xf32> to vector<32x128xf32>
    %316 = arith.mulf %315, %61 : vector<32x128xf32>
    %317 = arith.addf %313, %316 : vector<32x128xf32>
    %318 = vector.extract_strided_slice %199 {offsets = [2, 0], sizes = [1, 128], strides = [1, 1]} : vector<8x128xf32> to vector<1x128xf32>
    %319 = vector.broadcast %318 : vector<1x128xf32> to vector<32x128xf32>
    %320 = arith.mulf %319, %71 : vector<32x128xf32>
    %321 = arith.addf %317, %320 : vector<32x128xf32>
    %322 = vector.extract_strided_slice %201 {offsets = [2, 0], sizes = [1, 128], strides = [1, 1]} : vector<8x128xf32> to vector<1x128xf32>
    %323 = vector.broadcast %322 : vector<1x128xf32> to vector<32x128xf32>
    %324 = arith.mulf %323, %81 : vector<32x128xf32>
    %325 = arith.addf %321, %324 : vector<32x128xf32>
    %326 = vector.extract_strided_slice %203 {offsets = [2, 0], sizes = [1, 128], strides = [1, 1]} : vector<8x128xf32> to vector<1x128xf32>
    %327 = vector.broadcast %326 : vector<1x128xf32> to vector<32x128xf32>
    %328 = arith.mulf %327, %91 : vector<32x128xf32>
    %329 = arith.addf %325, %328 : vector<32x128xf32>
    %330 = vector.extract_strided_slice %211 {offsets = [2, 0], sizes = [1, 128], strides = [1, 1]} : vector<8x128xf32> to vector<1x128xf32>
    %331 = vector.broadcast %330 : vector<1x128xf32> to vector<32x128xf32>
    %332 = arith.mulf %329, %331 : vector<32x128xf32>
    %cst_36 = arith.constant 0.000000e+00 : f32
    %333 = vector.broadcast %cst_36 : f32 to vector<32x128xf32>
    %334 = arith.maximumf %332, %333 : vector<32x128xf32>
    %cst_37 = arith.constant dense<0.000000e+00> : vector<32x128xf32>
    %335 = tpu.matmul %11, %334, %cst_37 {dimension_numbers = #tpu.dot_dimension_numbers<[1], [0], [0], [1], [0, 0, 1, 1], [], []>} : vector<32x32xf32>, vector<32x128xf32>, vector<32x128xf32> -> vector<32x128xf32>
    %336 = vector.broadcast %2 : vector<32x1xf32> to vector<32x128xf32>
    %337 = arith.addf %335, %336 : vector<32x128xf32>
    %338 = vector.extract_strided_slice %9 {offsets = [2, 0, 0], sizes = [1, 32, 128], strides = [1, 1, 1]} : vector<8x32x128xf32> to vector<1x32x128xf32>
    %339 = vector.shape_cast %338 : vector<1x32x128xf32> to vector<32x128xf32>
    %340 = arith.addf %298, %339 : vector<32x128xf32>
    %341 = arith.addf %340, %337 : vector<32x128xf32>
    %342 = vector.extract_strided_slice %189 {offsets = [3, 0], sizes = [1, 128], strides = [1, 1]} : vector<8x128xf32> to vector<1x128xf32>
    %343 = vector.broadcast %342 : vector<1x128xf32> to vector<32x128xf32>
    %344 = arith.mulf %343, %21 : vector<32x128xf32>
    %345 = vector.extract_strided_slice %191 {offsets = [3, 0], sizes = [1, 128], strides = [1, 1]} : vector<8x128xf32> to vector<1x128xf32>
    %346 = vector.broadcast %345 : vector<1x128xf32> to vector<32x128xf32>
    %347 = arith.mulf %346, %31 : vector<32x128xf32>
    %348 = arith.addf %344, %347 : vector<32x128xf32>
    %349 = vector.extract_strided_slice %193 {offsets = [3, 0], sizes = [1, 128], strides = [1, 1]} : vector<8x128xf32> to vector<1x128xf32>
    %350 = vector.broadcast %349 : vector<1x128xf32> to vector<32x128xf32>
    %351 = arith.mulf %350, %41 : vector<32x128xf32>
    %352 = arith.addf %348, %351 : vector<32x128xf32>
    %353 = vector.extract_strided_slice %195 {offsets = [3, 0], sizes = [1, 128], strides = [1, 1]} : vector<8x128xf32> to vector<1x128xf32>
    %354 = vector.broadcast %353 : vector<1x128xf32> to vector<32x128xf32>
    %355 = arith.mulf %354, %51 : vector<32x128xf32>
    %356 = arith.addf %352, %355 : vector<32x128xf32>
    %357 = vector.extract_strided_slice %197 {offsets = [3, 0], sizes = [1, 128], strides = [1, 1]} : vector<8x128xf32> to vector<1x128xf32>
    %358 = vector.broadcast %357 : vector<1x128xf32> to vector<32x128xf32>
    %359 = arith.mulf %358, %61 : vector<32x128xf32>
    %360 = arith.addf %356, %359 : vector<32x128xf32>
    %361 = vector.extract_strided_slice %199 {offsets = [3, 0], sizes = [1, 128], strides = [1, 1]} : vector<8x128xf32> to vector<1x128xf32>
    %362 = vector.broadcast %361 : vector<1x128xf32> to vector<32x128xf32>
    %363 = arith.mulf %362, %71 : vector<32x128xf32>
    %364 = arith.addf %360, %363 : vector<32x128xf32>
    %365 = vector.extract_strided_slice %201 {offsets = [3, 0], sizes = [1, 128], strides = [1, 1]} : vector<8x128xf32> to vector<1x128xf32>
    %366 = vector.broadcast %365 : vector<1x128xf32> to vector<32x128xf32>
    %367 = arith.mulf %366, %81 : vector<32x128xf32>
    %368 = arith.addf %364, %367 : vector<32x128xf32>
    %369 = vector.extract_strided_slice %203 {offsets = [3, 0], sizes = [1, 128], strides = [1, 1]} : vector<8x128xf32> to vector<1x128xf32>
    %370 = vector.broadcast %369 : vector<1x128xf32> to vector<32x128xf32>
    %371 = arith.mulf %370, %91 : vector<32x128xf32>
    %372 = arith.addf %368, %371 : vector<32x128xf32>
    %373 = vector.extract_strided_slice %211 {offsets = [3, 0], sizes = [1, 128], strides = [1, 1]} : vector<8x128xf32> to vector<1x128xf32>
    %374 = vector.broadcast %373 : vector<1x128xf32> to vector<32x128xf32>
    %375 = arith.mulf %372, %374 : vector<32x128xf32>
    %cst_38 = arith.constant 0.000000e+00 : f32
    %376 = vector.broadcast %cst_38 : f32 to vector<32x128xf32>
    %377 = arith.maximumf %375, %376 : vector<32x128xf32>
    %cst_39 = arith.constant dense<0.000000e+00> : vector<32x128xf32>
    %378 = tpu.matmul %11, %377, %cst_39 {dimension_numbers = #tpu.dot_dimension_numbers<[1], [0], [0], [1], [0, 0, 1, 1], [], []>} : vector<32x32xf32>, vector<32x128xf32>, vector<32x128xf32> -> vector<32x128xf32>
    %379 = vector.broadcast %2 : vector<32x1xf32> to vector<32x128xf32>
    %380 = arith.addf %378, %379 : vector<32x128xf32>
    %381 = vector.extract_strided_slice %9 {offsets = [3, 0, 0], sizes = [1, 32, 128], strides = [1, 1, 1]} : vector<8x32x128xf32> to vector<1x32x128xf32>
    %382 = vector.shape_cast %381 : vector<1x32x128xf32> to vector<32x128xf32>
    %383 = arith.addf %341, %382 : vector<32x128xf32>
    %384 = arith.addf %383, %380 : vector<32x128xf32>
    %385 = vector.extract_strided_slice %189 {offsets = [4, 0], sizes = [1, 128], strides = [1, 1]} : vector<8x128xf32> to vector<1x128xf32>
    %386 = vector.broadcast %385 : vector<1x128xf32> to vector<32x128xf32>
    %387 = arith.mulf %386, %21 : vector<32x128xf32>
    %388 = vector.extract_strided_slice %191 {offsets = [4, 0], sizes = [1, 128], strides = [1, 1]} : vector<8x128xf32> to vector<1x128xf32>
    %389 = vector.broadcast %388 : vector<1x128xf32> to vector<32x128xf32>
    %390 = arith.mulf %389, %31 : vector<32x128xf32>
    %391 = arith.addf %387, %390 : vector<32x128xf32>
    %392 = vector.extract_strided_slice %193 {offsets = [4, 0], sizes = [1, 128], strides = [1, 1]} : vector<8x128xf32> to vector<1x128xf32>
    %393 = vector.broadcast %392 : vector<1x128xf32> to vector<32x128xf32>
    %394 = arith.mulf %393, %41 : vector<32x128xf32>
    %395 = arith.addf %391, %394 : vector<32x128xf32>
    %396 = vector.extract_strided_slice %195 {offsets = [4, 0], sizes = [1, 128], strides = [1, 1]} : vector<8x128xf32> to vector<1x128xf32>
    %397 = vector.broadcast %396 : vector<1x128xf32> to vector<32x128xf32>
    %398 = arith.mulf %397, %51 : vector<32x128xf32>
    %399 = arith.addf %395, %398 : vector<32x128xf32>
    %400 = vector.extract_strided_slice %197 {offsets = [4, 0], sizes = [1, 128], strides = [1, 1]} : vector<8x128xf32> to vector<1x128xf32>
    %401 = vector.broadcast %400 : vector<1x128xf32> to vector<32x128xf32>
    %402 = arith.mulf %401, %61 : vector<32x128xf32>
    %403 = arith.addf %399, %402 : vector<32x128xf32>
    %404 = vector.extract_strided_slice %199 {offsets = [4, 0], sizes = [1, 128], strides = [1, 1]} : vector<8x128xf32> to vector<1x128xf32>
    %405 = vector.broadcast %404 : vector<1x128xf32> to vector<32x128xf32>
    %406 = arith.mulf %405, %71 : vector<32x128xf32>
    %407 = arith.addf %403, %406 : vector<32x128xf32>
    %408 = vector.extract_strided_slice %201 {offsets = [4, 0], sizes = [1, 128], strides = [1, 1]} : vector<8x128xf32> to vector<1x128xf32>
    %409 = vector.broadcast %408 : vector<1x128xf32> to vector<32x128xf32>
    %410 = arith.mulf %409, %81 : vector<32x128xf32>
    %411 = arith.addf %407, %410 : vector<32x128xf32>
    %412 = vector.extract_strided_slice %203 {offsets = [4, 0], sizes = [1, 128], strides = [1, 1]} : vector<8x128xf32> to vector<1x128xf32>
    %413 = vector.broadcast %412 : vector<1x128xf32> to vector<32x128xf32>
    %414 = arith.mulf %413, %91 : vector<32x128xf32>
    %415 = arith.addf %411, %414 : vector<32x128xf32>
    %416 = vector.extract_strided_slice %211 {offsets = [4, 0], sizes = [1, 128], strides = [1, 1]} : vector<8x128xf32> to vector<1x128xf32>
    %417 = vector.broadcast %416 : vector<1x128xf32> to vector<32x128xf32>
    %418 = arith.mulf %415, %417 : vector<32x128xf32>
    %cst_40 = arith.constant 0.000000e+00 : f32
    %419 = vector.broadcast %cst_40 : f32 to vector<32x128xf32>
    %420 = arith.maximumf %418, %419 : vector<32x128xf32>
    %cst_41 = arith.constant dense<0.000000e+00> : vector<32x128xf32>
    %421 = tpu.matmul %11, %420, %cst_41 {dimension_numbers = #tpu.dot_dimension_numbers<[1], [0], [0], [1], [0, 0, 1, 1], [], []>} : vector<32x32xf32>, vector<32x128xf32>, vector<32x128xf32> -> vector<32x128xf32>
    %422 = vector.broadcast %2 : vector<32x1xf32> to vector<32x128xf32>
    %423 = arith.addf %421, %422 : vector<32x128xf32>
    %424 = vector.extract_strided_slice %9 {offsets = [4, 0, 0], sizes = [1, 32, 128], strides = [1, 1, 1]} : vector<8x32x128xf32> to vector<1x32x128xf32>
    %425 = vector.shape_cast %424 : vector<1x32x128xf32> to vector<32x128xf32>
    %426 = arith.addf %384, %425 : vector<32x128xf32>
    %427 = arith.addf %426, %423 : vector<32x128xf32>
    %428 = vector.extract_strided_slice %189 {offsets = [5, 0], sizes = [1, 128], strides = [1, 1]} : vector<8x128xf32> to vector<1x128xf32>
    %429 = vector.broadcast %428 : vector<1x128xf32> to vector<32x128xf32>
    %430 = arith.mulf %429, %21 : vector<32x128xf32>
    %431 = vector.extract_strided_slice %191 {offsets = [5, 0], sizes = [1, 128], strides = [1, 1]} : vector<8x128xf32> to vector<1x128xf32>
    %432 = vector.broadcast %431 : vector<1x128xf32> to vector<32x128xf32>
    %433 = arith.mulf %432, %31 : vector<32x128xf32>
    %434 = arith.addf %430, %433 : vector<32x128xf32>
    %435 = vector.extract_strided_slice %193 {offsets = [5, 0], sizes = [1, 128], strides = [1, 1]} : vector<8x128xf32> to vector<1x128xf32>
    %436 = vector.broadcast %435 : vector<1x128xf32> to vector<32x128xf32>
    %437 = arith.mulf %436, %41 : vector<32x128xf32>
    %438 = arith.addf %434, %437 : vector<32x128xf32>
    %439 = vector.extract_strided_slice %195 {offsets = [5, 0], sizes = [1, 128], strides = [1, 1]} : vector<8x128xf32> to vector<1x128xf32>
    %440 = vector.broadcast %439 : vector<1x128xf32> to vector<32x128xf32>
    %441 = arith.mulf %440, %51 : vector<32x128xf32>
    %442 = arith.addf %438, %441 : vector<32x128xf32>
    %443 = vector.extract_strided_slice %197 {offsets = [5, 0], sizes = [1, 128], strides = [1, 1]} : vector<8x128xf32> to vector<1x128xf32>
    %444 = vector.broadcast %443 : vector<1x128xf32> to vector<32x128xf32>
    %445 = arith.mulf %444, %61 : vector<32x128xf32>
    %446 = arith.addf %442, %445 : vector<32x128xf32>
    %447 = vector.extract_strided_slice %199 {offsets = [5, 0], sizes = [1, 128], strides = [1, 1]} : vector<8x128xf32> to vector<1x128xf32>
    %448 = vector.broadcast %447 : vector<1x128xf32> to vector<32x128xf32>
    %449 = arith.mulf %448, %71 : vector<32x128xf32>
    %450 = arith.addf %446, %449 : vector<32x128xf32>
    %451 = vector.extract_strided_slice %201 {offsets = [5, 0], sizes = [1, 128], strides = [1, 1]} : vector<8x128xf32> to vector<1x128xf32>
    %452 = vector.broadcast %451 : vector<1x128xf32> to vector<32x128xf32>
    %453 = arith.mulf %452, %81 : vector<32x128xf32>
    %454 = arith.addf %450, %453 : vector<32x128xf32>
    %455 = vector.extract_strided_slice %203 {offsets = [5, 0], sizes = [1, 128], strides = [1, 1]} : vector<8x128xf32> to vector<1x128xf32>
    %456 = vector.broadcast %455 : vector<1x128xf32> to vector<32x128xf32>
    %457 = arith.mulf %456, %91 : vector<32x128xf32>
    %458 = arith.addf %454, %457 : vector<32x128xf32>
    %459 = vector.extract_strided_slice %211 {offsets = [5, 0], sizes = [1, 128], strides = [1, 1]} : vector<8x128xf32> to vector<1x128xf32>
    %460 = vector.broadcast %459 : vector<1x128xf32> to vector<32x128xf32>
    %461 = arith.mulf %458, %460 : vector<32x128xf32>
    %cst_42 = arith.constant 0.000000e+00 : f32
    %462 = vector.broadcast %cst_42 : f32 to vector<32x128xf32>
    %463 = arith.maximumf %461, %462 : vector<32x128xf32>
    %cst_43 = arith.constant dense<0.000000e+00> : vector<32x128xf32>
    %464 = tpu.matmul %11, %463, %cst_43 {dimension_numbers = #tpu.dot_dimension_numbers<[1], [0], [0], [1], [0, 0, 1, 1], [], []>} : vector<32x32xf32>, vector<32x128xf32>, vector<32x128xf32> -> vector<32x128xf32>
    %465 = vector.broadcast %2 : vector<32x1xf32> to vector<32x128xf32>
    %466 = arith.addf %464, %465 : vector<32x128xf32>
    %467 = vector.extract_strided_slice %9 {offsets = [5, 0, 0], sizes = [1, 32, 128], strides = [1, 1, 1]} : vector<8x32x128xf32> to vector<1x32x128xf32>
    %468 = vector.shape_cast %467 : vector<1x32x128xf32> to vector<32x128xf32>
    %469 = arith.addf %427, %468 : vector<32x128xf32>
    %470 = arith.addf %469, %466 : vector<32x128xf32>
    %471 = vector.extract_strided_slice %189 {offsets = [6, 0], sizes = [1, 128], strides = [1, 1]} : vector<8x128xf32> to vector<1x128xf32>
    %472 = vector.broadcast %471 : vector<1x128xf32> to vector<32x128xf32>
    %473 = arith.mulf %472, %21 : vector<32x128xf32>
    %474 = vector.extract_strided_slice %191 {offsets = [6, 0], sizes = [1, 128], strides = [1, 1]} : vector<8x128xf32> to vector<1x128xf32>
    %475 = vector.broadcast %474 : vector<1x128xf32> to vector<32x128xf32>
    %476 = arith.mulf %475, %31 : vector<32x128xf32>
    %477 = arith.addf %473, %476 : vector<32x128xf32>
    %478 = vector.extract_strided_slice %193 {offsets = [6, 0], sizes = [1, 128], strides = [1, 1]} : vector<8x128xf32> to vector<1x128xf32>
    %479 = vector.broadcast %478 : vector<1x128xf32> to vector<32x128xf32>
    %480 = arith.mulf %479, %41 : vector<32x128xf32>
    %481 = arith.addf %477, %480 : vector<32x128xf32>
    %482 = vector.extract_strided_slice %195 {offsets = [6, 0], sizes = [1, 128], strides = [1, 1]} : vector<8x128xf32> to vector<1x128xf32>
    %483 = vector.broadcast %482 : vector<1x128xf32> to vector<32x128xf32>
    %484 = arith.mulf %483, %51 : vector<32x128xf32>
    %485 = arith.addf %481, %484 : vector<32x128xf32>
    %486 = vector.extract_strided_slice %197 {offsets = [6, 0], sizes = [1, 128], strides = [1, 1]} : vector<8x128xf32> to vector<1x128xf32>
    %487 = vector.broadcast %486 : vector<1x128xf32> to vector<32x128xf32>
    %488 = arith.mulf %487, %61 : vector<32x128xf32>
    %489 = arith.addf %485, %488 : vector<32x128xf32>
    %490 = vector.extract_strided_slice %199 {offsets = [6, 0], sizes = [1, 128], strides = [1, 1]} : vector<8x128xf32> to vector<1x128xf32>
    %491 = vector.broadcast %490 : vector<1x128xf32> to vector<32x128xf32>
    %492 = arith.mulf %491, %71 : vector<32x128xf32>
    %493 = arith.addf %489, %492 : vector<32x128xf32>
    %494 = vector.extract_strided_slice %201 {offsets = [6, 0], sizes = [1, 128], strides = [1, 1]} : vector<8x128xf32> to vector<1x128xf32>
    %495 = vector.broadcast %494 : vector<1x128xf32> to vector<32x128xf32>
    %496 = arith.mulf %495, %81 : vector<32x128xf32>
    %497 = arith.addf %493, %496 : vector<32x128xf32>
    %498 = vector.extract_strided_slice %203 {offsets = [6, 0], sizes = [1, 128], strides = [1, 1]} : vector<8x128xf32> to vector<1x128xf32>
    %499 = vector.broadcast %498 : vector<1x128xf32> to vector<32x128xf32>
    %500 = arith.mulf %499, %91 : vector<32x128xf32>
    %501 = arith.addf %497, %500 : vector<32x128xf32>
    %502 = vector.extract_strided_slice %211 {offsets = [6, 0], sizes = [1, 128], strides = [1, 1]} : vector<8x128xf32> to vector<1x128xf32>
    %503 = vector.broadcast %502 : vector<1x128xf32> to vector<32x128xf32>
    %504 = arith.mulf %501, %503 : vector<32x128xf32>
    %cst_44 = arith.constant 0.000000e+00 : f32
    %505 = vector.broadcast %cst_44 : f32 to vector<32x128xf32>
    %506 = arith.maximumf %504, %505 : vector<32x128xf32>
    %cst_45 = arith.constant dense<0.000000e+00> : vector<32x128xf32>
    %507 = tpu.matmul %11, %506, %cst_45 {dimension_numbers = #tpu.dot_dimension_numbers<[1], [0], [0], [1], [0, 0, 1, 1], [], []>} : vector<32x32xf32>, vector<32x128xf32>, vector<32x128xf32> -> vector<32x128xf32>
    %508 = vector.broadcast %2 : vector<32x1xf32> to vector<32x128xf32>
    %509 = arith.addf %507, %508 : vector<32x128xf32>
    %510 = vector.extract_strided_slice %9 {offsets = [6, 0, 0], sizes = [1, 32, 128], strides = [1, 1, 1]} : vector<8x32x128xf32> to vector<1x32x128xf32>
    %511 = vector.shape_cast %510 : vector<1x32x128xf32> to vector<32x128xf32>
    %512 = arith.addf %470, %511 : vector<32x128xf32>
    %513 = arith.addf %512, %509 : vector<32x128xf32>
    %514 = vector.extract_strided_slice %189 {offsets = [7, 0], sizes = [1, 128], strides = [1, 1]} : vector<8x128xf32> to vector<1x128xf32>
    %515 = vector.broadcast %514 : vector<1x128xf32> to vector<32x128xf32>
    %516 = arith.mulf %515, %21 : vector<32x128xf32>
    %517 = vector.extract_strided_slice %191 {offsets = [7, 0], sizes = [1, 128], strides = [1, 1]} : vector<8x128xf32> to vector<1x128xf32>
    %518 = vector.broadcast %517 : vector<1x128xf32> to vector<32x128xf32>
    %519 = arith.mulf %518, %31 : vector<32x128xf32>
    %520 = arith.addf %516, %519 : vector<32x128xf32>
    %521 = vector.extract_strided_slice %193 {offsets = [7, 0], sizes = [1, 128], strides = [1, 1]} : vector<8x128xf32> to vector<1x128xf32>
    %522 = vector.broadcast %521 : vector<1x128xf32> to vector<32x128xf32>
    %523 = arith.mulf %522, %41 : vector<32x128xf32>
    %524 = arith.addf %520, %523 : vector<32x128xf32>
    %525 = vector.extract_strided_slice %195 {offsets = [7, 0], sizes = [1, 128], strides = [1, 1]} : vector<8x128xf32> to vector<1x128xf32>
    %526 = vector.broadcast %525 : vector<1x128xf32> to vector<32x128xf32>
    %527 = arith.mulf %526, %51 : vector<32x128xf32>
    %528 = arith.addf %524, %527 : vector<32x128xf32>
    %529 = vector.extract_strided_slice %197 {offsets = [7, 0], sizes = [1, 128], strides = [1, 1]} : vector<8x128xf32> to vector<1x128xf32>
    %530 = vector.broadcast %529 : vector<1x128xf32> to vector<32x128xf32>
    %531 = arith.mulf %530, %61 : vector<32x128xf32>
    %532 = arith.addf %528, %531 : vector<32x128xf32>
    %533 = vector.extract_strided_slice %199 {offsets = [7, 0], sizes = [1, 128], strides = [1, 1]} : vector<8x128xf32> to vector<1x128xf32>
    %534 = vector.broadcast %533 : vector<1x128xf32> to vector<32x128xf32>
    %535 = arith.mulf %534, %71 : vector<32x128xf32>
    %536 = arith.addf %532, %535 : vector<32x128xf32>
    %537 = vector.extract_strided_slice %201 {offsets = [7, 0], sizes = [1, 128], strides = [1, 1]} : vector<8x128xf32> to vector<1x128xf32>
    %538 = vector.broadcast %537 : vector<1x128xf32> to vector<32x128xf32>
    %539 = arith.mulf %538, %81 : vector<32x128xf32>
    %540 = arith.addf %536, %539 : vector<32x128xf32>
    %541 = vector.extract_strided_slice %203 {offsets = [7, 0], sizes = [1, 128], strides = [1, 1]} : vector<8x128xf32> to vector<1x128xf32>
    %542 = vector.broadcast %541 : vector<1x128xf32> to vector<32x128xf32>
    %543 = arith.mulf %542, %91 : vector<32x128xf32>
    %544 = arith.addf %540, %543 : vector<32x128xf32>
    %545 = vector.extract_strided_slice %211 {offsets = [7, 0], sizes = [1, 128], strides = [1, 1]} : vector<8x128xf32> to vector<1x128xf32>
    %546 = vector.broadcast %545 : vector<1x128xf32> to vector<32x128xf32>
    %547 = arith.mulf %544, %546 : vector<32x128xf32>
    %cst_46 = arith.constant 0.000000e+00 : f32
    %548 = vector.broadcast %cst_46 : f32 to vector<32x128xf32>
    %549 = arith.maximumf %547, %548 : vector<32x128xf32>
    %cst_47 = arith.constant dense<0.000000e+00> : vector<32x128xf32>
    %550 = tpu.matmul %11, %549, %cst_47 {dimension_numbers = #tpu.dot_dimension_numbers<[1], [0], [0], [1], [0, 0, 1, 1], [], []>} : vector<32x32xf32>, vector<32x128xf32>, vector<32x128xf32> -> vector<32x128xf32>
    %551 = vector.broadcast %2 : vector<32x1xf32> to vector<32x128xf32>
    %552 = arith.addf %550, %551 : vector<32x128xf32>
    %553 = vector.extract_strided_slice %9 {offsets = [7, 0, 0], sizes = [1, 32, 128], strides = [1, 1, 1]} : vector<8x32x128xf32> to vector<1x32x128xf32>
    %554 = vector.shape_cast %553 : vector<1x32x128xf32> to vector<32x128xf32>
    %555 = arith.addf %513, %554 : vector<32x128xf32>
    %556 = arith.addf %555, %552 : vector<32x128xf32>
    %cst_48 = arith.constant 1.250000e-01 : f32
    %557 = vector.broadcast %cst_48 : f32 to vector<32x128xf32>
    %558 = arith.mulf %556, %557 : vector<32x128xf32>
    %c0_49 = arith.constant 0 : index
    %c0_50 = arith.constant 0 : index
    %559 = vector.load %arg1[%c0_49, %c0_50] : memref<8x128xf32, #tpu.memory_space<vmem>>, vector<8x128xf32>
    %560 = tpu.concatenate %559, %558 in 0 : vector<8x128xf32>, vector<32x128xf32> -> vector<40x128xf32>
    %c0_51 = arith.constant 0 : index
    %c0_52 = arith.constant 0 : index
    %561 = vector.load %arg5[%c0_51, %c0_52] : memref<32x40xf32, #tpu.memory_space<vmem>>, vector<32x40xf32>
    %cst_53 = arith.constant dense<0.000000e+00> : vector<32x128xf32>
    %562 = tpu.matmul %561, %560, %cst_53 {dimension_numbers = #tpu.dot_dimension_numbers<[1], [0], [0], [1], [0, 0, 1, 1], [], []>} : vector<32x40xf32>, vector<40x128xf32>, vector<32x128xf32> -> vector<32x128xf32>
    %563 = vector.broadcast %3 : vector<32x1xf32> to vector<32x128xf32>
    %564 = arith.addf %562, %563 : vector<32x128xf32>
    %c0_54 = arith.constant 0 : index
    %c0_55 = arith.constant 0 : index
    %c0_56 = arith.constant 0 : index
    %565 = vector.load %arg6[%c0_54, %c0_55, %c0_56] : memref<4x32x32xf32, #tpu.memory_space<vmem>>, vector<1x32x32xf32>
    %566 = vector.shape_cast %565 : vector<1x32x32xf32> to vector<32x32xf32>
    %c1 = arith.constant 1 : index
    %c0_57 = arith.constant 0 : index
    %c0_58 = arith.constant 0 : index
    %567 = vector.load %arg6[%c1, %c0_57, %c0_58] : memref<4x32x32xf32, #tpu.memory_space<vmem>>, vector<1x32x32xf32>
    %568 = vector.shape_cast %567 : vector<1x32x32xf32> to vector<32x32xf32>
    %cst_59 = arith.constant 0.000000e+00 : f32
    %569 = vector.broadcast %cst_59 : f32 to vector<32x128xf32>
    %570 = arith.maximumf %564, %569 : vector<32x128xf32>
    %cst_60 = arith.constant dense<0.000000e+00> : vector<32x128xf32>
    %571 = tpu.matmul %566, %570, %cst_60 {dimension_numbers = #tpu.dot_dimension_numbers<[1], [0], [0], [1], [0, 0, 1, 1], [], []>} : vector<32x32xf32>, vector<32x128xf32>, vector<32x128xf32> -> vector<32x128xf32>
    %572 = vector.broadcast %4 : vector<32x1xf32> to vector<32x128xf32>
    %573 = arith.addf %571, %572 : vector<32x128xf32>
    %cst_61 = arith.constant 0.000000e+00 : f32
    %574 = vector.broadcast %cst_61 : f32 to vector<32x128xf32>
    %575 = arith.maximumf %573, %574 : vector<32x128xf32>
    %cst_62 = arith.constant dense<0.000000e+00> : vector<32x128xf32>
    %576 = tpu.matmul %568, %575, %cst_62 {dimension_numbers = #tpu.dot_dimension_numbers<[1], [0], [0], [1], [0, 0, 1, 1], [], []>} : vector<32x32xf32>, vector<32x128xf32>, vector<32x128xf32> -> vector<32x128xf32>
    %577 = vector.broadcast %5 : vector<32x1xf32> to vector<32x128xf32>
    %578 = arith.addf %576, %577 : vector<32x128xf32>
    %579 = arith.addf %564, %578 : vector<32x128xf32>
    %c2 = arith.constant 2 : index
    %c0_63 = arith.constant 0 : index
    %c0_64 = arith.constant 0 : index
    %580 = vector.load %arg6[%c2, %c0_63, %c0_64] : memref<4x32x32xf32, #tpu.memory_space<vmem>>, vector<1x32x32xf32>
    %581 = vector.shape_cast %580 : vector<1x32x32xf32> to vector<32x32xf32>
    %c3 = arith.constant 3 : index
    %c0_65 = arith.constant 0 : index
    %c0_66 = arith.constant 0 : index
    %582 = vector.load %arg6[%c3, %c0_65, %c0_66] : memref<4x32x32xf32, #tpu.memory_space<vmem>>, vector<1x32x32xf32>
    %583 = vector.shape_cast %582 : vector<1x32x32xf32> to vector<32x32xf32>
    %cst_67 = arith.constant 0.000000e+00 : f32
    %584 = vector.broadcast %cst_67 : f32 to vector<32x128xf32>
    %585 = arith.maximumf %579, %584 : vector<32x128xf32>
    %cst_68 = arith.constant dense<0.000000e+00> : vector<32x128xf32>
    %586 = tpu.matmul %581, %585, %cst_68 {dimension_numbers = #tpu.dot_dimension_numbers<[1], [0], [0], [1], [0, 0, 1, 1], [], []>} : vector<32x32xf32>, vector<32x128xf32>, vector<32x128xf32> -> vector<32x128xf32>
    %587 = vector.broadcast %6 : vector<32x1xf32> to vector<32x128xf32>
    %588 = arith.addf %586, %587 : vector<32x128xf32>
    %cst_69 = arith.constant 0.000000e+00 : f32
    %589 = vector.broadcast %cst_69 : f32 to vector<32x128xf32>
    %590 = arith.maximumf %588, %589 : vector<32x128xf32>
    %cst_70 = arith.constant dense<0.000000e+00> : vector<32x128xf32>
    %591 = tpu.matmul %583, %590, %cst_70 {dimension_numbers = #tpu.dot_dimension_numbers<[1], [0], [0], [1], [0, 0, 1, 1], [], []>} : vector<32x32xf32>, vector<32x128xf32>, vector<32x128xf32> -> vector<32x128xf32>
    %592 = vector.broadcast %7 : vector<32x1xf32> to vector<32x128xf32>
    %593 = arith.addf %591, %592 : vector<32x128xf32>
    %594 = arith.addf %579, %593 : vector<32x128xf32>
    %c0_71 = arith.constant 0 : index
    %c0_72 = arith.constant 0 : index
    %595 = vector.load %arg7[%c0_71, %c0_72] : memref<1x32xf32, #tpu.memory_space<vmem>>, vector<1x32xf32>
    %cst_73 = arith.constant 0.000000e+00 : f32
    %596 = vector.broadcast %cst_73 : f32 to vector<32x128xf32>
    %597 = arith.maximumf %594, %596 : vector<32x128xf32>
    %cst_74 = arith.constant dense<0.000000e+00> : vector<1x128xf32>
    %598 = tpu.matmul %595, %597, %cst_74 {dimension_numbers = #tpu.dot_dimension_numbers<[1], [0], [0], [1], [0, 0, 1, 1], [], []>} : vector<1x32xf32>, vector<32x128xf32>, vector<1x128xf32> -> vector<1x128xf32>
    %599 = vector.broadcast %8 : vector<1x1xf32> to vector<1x128xf32>
    %600 = arith.addf %598, %599 : vector<1x128xf32>
    %601 = vector.shape_cast %600 : vector<1x128xf32> to vector<1x1x128xf32>
    %c0_75 = arith.constant 0 : index
    %c0_76 = arith.constant 0 : index
    %c0_77 = arith.constant 0 : index
    %602 = vector.load %arg9[%c0_75, %c0_76, %c0_77] : memref<1x1x128xf32, #tpu.memory_space<vmem>>, vector<1x1x128xf32>
    tpu.vector_store %arg9[%c0_75, %c0_76, %c0_77], %601 {strides = array<i32>} : memref<1x1x128xf32, #tpu.memory_space<vmem>>, vector<1x1x128xf32>,
    return
  }
  func.func @transform_0(%arg0: i32) -> (i32, i32) {
    %c0_i32 = arith.constant 0 : i32
    %c0_i32_0 = arith.constant 0 : i32
    return %c0_i32, %arg0 : i32, i32
  }
  func.func @transform_1(%arg0: i32) -> (i32, i32, i32) {
    %c0_i32 = arith.constant 0 : i32
    %c0_i32_0 = arith.constant 0 : i32
    %c0_i32_1 = arith.constant 0 : i32
    return %c0_i32, %c0_i32_0, %arg0 : i32, i32, i32
  }
  func.func @transform_2(%arg0: i32) -> (i32, i32) {
    %c0_i32 = arith.constant 0 : i32
    %c0_i32_0 = arith.constant 0 : i32
    %c0_i32_1 = arith.constant 0 : i32
    return %c0_i32, %c0_i32_0 : i32, i32
  }
  func.func @transform_3(%arg0: i32) -> (i32, i32) {
    %c0_i32 = arith.constant 0 : i32
    %c0_i32_0 = arith.constant 0 : i32
    %c0_i32_1 = arith.constant 0 : i32
    return %c0_i32, %c0_i32_0 : i32, i32
  }
  func.func @transform_4(%arg0: i32) -> (i32, i32) {
    %c0_i32 = arith.constant 0 : i32
    %c0_i32_0 = arith.constant 0 : i32
    %c0_i32_1 = arith.constant 0 : i32
    return %c0_i32, %c0_i32_0 : i32, i32
  }
  func.func @transform_5(%arg0: i32) -> (i32, i32, i32) {
    %c0_i32 = arith.constant 0 : i32
    %c0_i32_0 = arith.constant 0 : i32
    %c0_i32_1 = arith.constant 0 : i32
    %c0_i32_2 = arith.constant 0 : i32
    return %c0_i32, %c0_i32_0, %c0_i32_1 : i32, i32, i32
  }
  func.func @transform_6(%arg0: i32) -> (i32, i32) {
    %c0_i32 = arith.constant 0 : i32
    %c0_i32_0 = arith.constant 0 : i32
    %c0_i32_1 = arith.constant 0 : i32
    return %c0_i32, %c0_i32_0 : i32, i32
  }
  func.func @transform_7(%arg0: i32) -> (i32, i32) {
    %c0_i32 = arith.constant 0 : i32
    %c0_i32_0 = arith.constant 0 : i32
    %c0_i32_1 = arith.constant 0 : i32
    return %c0_i32, %c0_i32_0 : i32, i32
  }
  func.func @transform_8(%arg0: i32) -> (i32, i32, i32) {
    %c0_i32 = arith.constant 0 : i32
    %c0_i32_0 = arith.constant 0 : i32
    %c0_i32_1 = arith.constant 0 : i32
    return %arg0, %c0_i32, %c0_i32_0 : i32, i32, i32
  }
}

</mosaic_0001>

<llo_original>
// kernel: tpu_custom_call.1
$region0: #{tpu_custom_call.1}
  #allocation0 [shape = 'u32[]', space=smem, size = 0x4, offset = 0x4, fixed_abs, tag = 'smem constant byte address 0x4 - core index']
  #allocation1 [shape = 'u32[144,128]{1,0:T(1,128)}', space=vmem, size = 0x12000, scoped, tag = 'internal scratch']
  %s0 = inlined_call_operand.vmem [shape: f32[8,128], index: 0, kind: input, shape index: {}]
  %s1 = inlined_call_operand.vmem [shape: f32[8,32,128], index: 1, kind: input, shape index: {}]
  %s2 = inlined_call_operand.vmem [shape: f32[96,32], index: 2, kind: input, shape index: {}]
  %s3 = inlined_call_operand.vmem [shape: f32[32,32], index: 3, kind: input, shape index: {}]
  %s4 = inlined_call_operand.hbm [shape: f32[32,40], index: 4, kind: input, shape index: {}]
  %s5 = inlined_call_operand.vmem [shape: f32[4,32,32], index: 5, kind: input, shape index: {}]
  %s6 = inlined_call_operand.vmem [shape: f32[1,32], index: 6, kind: input, shape index: {}]
  %s7 = inlined_call_operand.vmem [shape: f32[296,1], index: 7, kind: input, shape index: {}]
  %s8 = inlined_call_operand.hbm [shape: f32[1,1,128], index: 8, kind: output, shape index: {}]
  %s9 = sld [smem:[#allocation0]]
  $region46: #{tpu_custom_call.1} parent=0
    _
  %s11 = ssub.s32 1, %s9
  %s12 = scalar_select 0, %s11, %s9
  $region1: #{tpu_custom_call.1} parent=0
    #allocation2 [shape = 'u8[16384]{0}', space=vmem, size = 0x4000, scoped, tag = 'input window, operand 4, single buffered']
    #allocation3 [shape = 's32[1]{0}', space=sflag, size = 0x4, scoped, tag = 'scoped memory for tpu_custom_call.1']
    #allocation4 [shape = 's32[1]{0}', space=sflag, size = 0x4, scoped, tag = 'scoped memory for tpu_custom_call.1']
    #allocation5 [shape = 'u8[512]{0}', space=vmem, size = 0x400, scoped, tag = 'output window, operand 0, single buffered']
    %13 = vsyncpa [#allocation3], 0
    %14 = vsyncpa [#allocation4], 0
    // Predicated region
    $region2: #{tpu_custom_call.1} parent=1 // pred_check
      _
    $region3: #{tpu_custom_call.1} parent=1 // pred_check_branch
      %16 = sbr.rel (0) target = $region5
    $region4: #{tpu_custom_call.1} parent=1 // pred_region
      _
    $region5: #{tpu_custom_call.1} parent=1 // pred_fallthru
      _
    // Predicated region
    $region6: #{tpu_custom_call.1} parent=1 // pred_check
      _
    $region7: #{tpu_custom_call.1} parent=1 // pred_check_branch
      %18 = sbr.rel (0) target = $region9
    $region8: #{tpu_custom_call.1} parent=1 // pred_region
      _
    $region9: #{tpu_custom_call.1} parent=1 // pred_fallthru
      _
    // Predicated region
    $region10: #{tpu_custom_call.1} parent=1 // pred_check
      _
    $region11: #{tpu_custom_call.1} parent=1 // pred_check_branch
      %20 = sbr.rel (0) target = $region13
    $region12: #{tpu_custom_call.1} parent=1 // pred_region
      _
    $region13: #{tpu_custom_call.1} parent=1 // pred_fallthru
      _
    // Predicated region
    $region14: #{tpu_custom_call.1} parent=1 // pred_check
      _
    $region15: #{tpu_custom_call.1} parent=1 // pred_check_branch
      %22 = sbr.rel (0) target = $region17
    $region16: #{tpu_custom_call.1} parent=1 // pred_region
      _
    $region17: #{tpu_custom_call.1} parent=1 // pred_fallthru
      _
    // Predicated region
    $region18: #{tpu_custom_call.1} parent=1 // pred_check
      _
    $region19: #{tpu_custom_call.1} parent=1 // pred_check_branch
      %24 = sbr.rel (0) target = $region21
    $region20: #{tpu_custom_call.1} parent=1 // pred_region
      %s26 = ssub.s32 512, 512
      %27 = vsyncadd [#allocation3], %s26
      %s28 = sshll.u32 [#allocation2], 4
      %s29 = int_to_ptr.vmem [resolvable:$true] %s28
      %34 = dma.hbm_to_vmem [thread:$0]  %s4, 512, %s29, [#allocation3], 128, 128, 8
    $region21: #{tpu_custom_call.1} parent=1 // pred_fallthru
      _
    // Predicated region
    $region22: #{tpu_custom_call.1} parent=1 // pred_check
      _
    $region23: #{tpu_custom_call.1} parent=1 // pred_check_branch
      %36 = sbr.rel (0) target = $region25
    $region24: #{tpu_custom_call.1} parent=1 // pred_region
      _
    $region25: #{tpu_custom_call.1} parent=1 // pred_fallthru
      _
    // Predicated region
    $region26: #{tpu_custom_call.1} parent=1 // pred_check
      _
    $region27: #{tpu_custom_call.1} parent=1 // pred_check_branch
      %38 = sbr.rel (0) target = $region29
    $region28: #{tpu_custom_call.1} parent=1 // pred_region
      _
    $region29: #{tpu_custom_call.1} parent=1 // pred_fallthru
      _
    // Predicated region
    $region30: #{tpu_custom_call.1} parent=1 // pred_check
      _
    $region31: #{tpu_custom_call.1} parent=1 // pred_check_branch
      %40 = sbr.rel (0) target = $region33
    $region32: #{tpu_custom_call.1} parent=1 // pred_region
      _
    $region33: #{tpu_custom_call.1} parent=1 // pred_fallthru
      _
    // Predicated region
    $region34: #{tpu_custom_call.1} parent=1 // pred_check
      _
    $region35: #{tpu_custom_call.1} parent=1 // pred_check_branch
      %42 = sbr.rel (0) target = $region37
    $region36: #{tpu_custom_call.1} parent=1 // pred_region
      %43 = dma.done [#allocation3], 512
    $region37: #{tpu_custom_call.1} parent=1 // pred_fallthru
      _
    %v44 = vld [vmem:[%s7] sm:$0xff]
    %v45 = vld [vmem:[%s7 + $0x8] sm:$0xff]
    %v46 = vld [vmem:[%s7 + $0x10] sm:$0xff]
    %v47 = vld [vmem:[%s7 + $0x18] sm:$0xff]
    %v48 = vld [vmem:[%s7 + $0x20] sm:$0xff]
    %v49 = vld [vmem:[%s7 + $0x28] sm:$0xff]
    %v50 = vld [vmem:[%s7 + $0x30] sm:$0xff]
    %v51 = vld [vmem:[%s7 + $0x38] sm:$0xff]
    %v52 = vld [vmem:[%s7 + $0x40] sm:$0xff]
    %v53 = vld [vmem:[%s7 + $0x48] sm:$0xff]
    %v54 = vld [vmem:[%s7 + $0x50] sm:$0xff]
    %v55 = vld [vmem:[%s7 + $0x58] sm:$0xff]
    %v56 = vld [vmem:[%s7 + $0x60] sm:$0xff]
    %v57 = vld [vmem:[%s7 + $0x68] sm:$0xff]
    %v58 = vld [vmem:[%s7 + $0x70] sm:$0xff]
    %v59 = vld [vmem:[%s7 + $0x78] sm:$0xff]
    %v60 = vld [vmem:[%s7 + $0x80] sm:$0xff]
    %v61 = vld [vmem:[%s7 + $0x88] sm:$0xff]
    %v62 = vld [vmem:[%s7 + $0x90] sm:$0xff]
    %v63 = vld [vmem:[%s7 + $0x98] sm:$0xff]
    %v64 = vld [vmem:[%s7 + $0xa0] sm:$0xff]
    %v65 = vld [vmem:[%s7 + $0xa8] sm:$0xff]
    %v66 = vld [vmem:[%s7 + $0xb0] sm:$0xff]
    %v67 = vld [vmem:[%s7 + $0xb8] sm:$0xff]
    %v68 = vld [vmem:[%s7 + $0xc0] sm:$0xff]
    %v69 = vld [vmem:[%s7 + $0xc8] sm:$0xff]
    %v70 = vld [vmem:[%s7 + $0xd0] sm:$0xff]
    %v71 = vld [vmem:[%s7 + $0xd8] sm:$0xff]
    %v72 = vld [vmem:[%s7 + $0xe0] sm:$0xff]
    %v73 = vld [vmem:[%s7 + $0xe8] sm:$0xff]
    %v74 = vld [vmem:[%s7 + $0xf0] sm:$0xff]
    %v75 = vld [vmem:[%s7 + $0xf8] sm:$0xff]
    %v76 = vld [vmem:[%s7 + $0x100] sm:$0xff]
    %v77 = vld [vmem:[%s7 + $0x108] sm:$0xff]
    %v78 = vld [vmem:[%s7 + $0x110] sm:$0xff]
    %v79 = vld [vmem:[%s7 + $0x118] sm:$0xff]
    %v80 = vld [vmem:[%s7 + $0x120] sm:$0xff]
    %v81 = vld [vmem:[%s1] sm:$0xff]
    %v82 = vld [vmem:[%s1 + $0x8] sm:$0xff]
    %v83 = vld [vmem:[%s1 + $0x10] sm:$0xff]
    %v84 = vld [vmem:[%s1 + $0x18] sm:$0xff]
    %v85 = vld [vmem:[%s1 + $0x20] sm:$0xff]
    %v86 = vld [vmem:[%s1 + $0x28] sm:$0xff]
    %v87 = vld [vmem:[%s1 + $0x30] sm:$0xff]
    %v88 = vld [vmem:[%s1 + $0x38] sm:$0xff]
    %v89 = vld [vmem:[%s1 + $0x40] sm:$0xff]
    %v90 = vld [vmem:[%s1 + $0x48] sm:$0xff]
    %v91 = vld [vmem:[%s1 + $0x50] sm:$0xff]
    %v92 = vld [vmem:[%s1 + $0x58] sm:$0xff]
    %v93 = vld [vmem:[%s1 + $0x60] sm:$0xff]
    %v94 = vld [vmem:[%s1 + $0x68] sm:$0xff]
    %v95 = vld [vmem:[%s1 + $0x70] sm:$0xff]
    %v96 = vld [vmem:[%s1 + $0x78] sm:$0xff]
    %v97 = vld [vmem:[%s1 + $0x80] sm:$0xff]
    %v98 = vld [vmem:[%s1 + $0x88] sm:$0xff]
    %v99 = vld [vmem:[%s1 + $0x90] sm:$0xff]
    %v100 = vld [vmem:[%s1 + $0x98] sm:$0xff]
    %v101 = vld [vmem:[%s1 + $0xa0] sm:$0xff]
    %v102 = vld [vmem:[%s1 + $0xa8] sm:$0xff]
    %v103 = vld [vmem:[%s1 + $0xb0] sm:$0xff]
    %v104 = vld [vmem:[%s1 + $0xb8] sm:$0xff]
    %v105 = vld [vmem:[%s1 + $0xc0] sm:$0xff]
    %v106 = vld [vmem:[%s1 + $0xc8] sm:$0xff]
    %v107 = vld [vmem:[%s1 + $0xd0] sm:$0xff]
    %v108 = vld [vmem:[%s1 + $0xd8] sm:$0xff]
    %v109 = vld [vmem:[%s1 + $0xe0] sm:$0xff]
    %v110 = vld [vmem:[%s1 + $0xe8] sm:$0xff]
    %v111 = vld [vmem:[%s1 + $0xf0] sm:$0xff]
    %v112 = vld [vmem:[%s1 + $0xf8] sm:$0xff]
    %v113 = vld [vmem:[%s2] sm:$0xff]
    %v114 = vld [vmem:[%s2 + $0x8] sm:$0xff]
    %v115 = vld [vmem:[%s2 + $0x10] sm:$0xff]
    %v116 = vld [vmem:[%s2 + $0x18] sm:$0xff]
    %v117 = vld [vmem:[%s2 + $0x20] sm:$0xff]
    %v118 = vld [vmem:[%s2 + $0x28] sm:$0xff]
    %v119 = vld [vmem:[%s2 + $0x30] sm:$0xff]
    %v120 = vld [vmem:[%s2 + $0x38] sm:$0xff]
    %v121 = vld [vmem:[%s2 + $0x40] sm:$0xff]
    %v122 = vld [vmem:[%s2 + $0x48] sm:$0xff]
    %v123 = vld [vmem:[%s2 + $0x50] sm:$0xff]
    %v124 = vld [vmem:[%s2 + $0x58] sm:$0xff]
    %v125 = vld [vmem:[%s3] sm:$0xff]
    %v126 = vld [vmem:[%s3 + $0x8] sm:$0xff]
    %v127 = vld [vmem:[%s3 + $0x10] sm:$0xff]
    %v128 = vld [vmem:[%s3 + $0x18] sm:$0xff]
    %v129 = vmax.f32 %v81, 0.0
    %v130 = vmax.f32 %v82, 0.0
    %v131 = vmax.f32 %v83, 0.0
    %v132 = vmax.f32 %v84, 0.0
    %134 = vset.pattern.permute.xlu0 0
    %135 = vperm.xlu0 %134, %v44
    %v136 = vpop.permute.xlu0 %135
    %139 = vset.pattern.permute.xlu0 0
    %140 = vperm.xlu0 %139, %v45
    %v141 = vpop.permute.xlu0 %140
    %144 = vset.pattern.permute.xlu0 0
    %145 = vperm.xlu0 %144, %v46
    %v146 = vpop.permute.xlu0 %145
    %149 = vset.pattern.permute.xlu0 0
    %150 = vperm.xlu0 %149, %v47
    %v151 = vpop.permute.xlu0 %150
    %154 = vset.pattern.permute.xlu0 0
    %155 = vperm.xlu0 %154, %v48
    %v156 = vpop.permute.xlu0 %155
    %159 = vset.pattern.permute.xlu0 0
    %160 = vperm.xlu0 %159, %v49
    %v161 = vpop.permute.xlu0 %160
    %164 = vset.pattern.permute.xlu0 0
    %165 = vperm.xlu0 %164, %v50
    %v166 = vpop.permute.xlu0 %165
    %169 = vset.pattern.permute.xlu0 0
    %170 = vperm.xlu0 %169, %v51
    %v171 = vpop.permute.xlu0 %170
    %174 = vset.pattern.permute.xlu0 0
    %175 = vperm.xlu0 %174, %v52
    %v176 = vpop.permute.xlu0 %175
    %179 = vset.pattern.permute.xlu0 0
    %180 = vperm.xlu0 %179, %v53
    %v181 = vpop.permute.xlu0 %180
    %184 = vset.pattern.permute.xlu0 0
    %185 = vperm.xlu0 %184, %v54
    %v186 = vpop.permute.xlu0 %185
    %189 = vset.pattern.permute.xlu0 0
    %190 = vperm.xlu0 %189, %v55
    %v191 = vpop.permute.xlu0 %190
    %vm193 = vcmask 261120
    %v195 = vsel %vm193, %v113, 0
    %v198 = vsel %vm193, %v114, 0
    %v201 = vsel %vm193, %v115, 0
    %v204 = vsel %vm193, %v116, 0
    %v207 = vsel %vm193, %v117, 0
    %v210 = vsel %vm193, %v118, 0
    %v213 = vsel %vm193, %v119, 0
    %v216 = vsel %vm193, %v120, 0
    %v219 = vsel %vm193, %v121, 0
    %v222 = vsel %vm193, %v122, 0
    %v225 = vsel %vm193, %v123, 0
    %v228 = vsel %vm193, %v124, 0
    %230 = vmatprep.subr.mxu0 0.0
    %231 = vmatpush1.msra.mxu0 %v129
    %232 = vmatprep.subr.mxu0 0.0
    %233 = vmatpush1.msra.mxu0 %v130
    %234 = vmatprep.subr.mxu0 0.0
    %235 = vmatpush1.msra.mxu0 %v131
    %236 = vmatprep.subr.mxu0 0.0
    %237 = vmatpush1.msra.mxu0 %v132
    %238 = vmatprep.subr.mxu0 0.0
    %239 = vmatpush1.msra.mxu0 0.0
    %240 = vmatprep.subr.mxu0 0.0
    %241 = vmatpush1.msra.mxu0 0.0
    %242 = vmatprep.subr.mxu0 0.0
    %243 = vmatpush1.msra.mxu0 0.0
    %244 = vmatprep.subr.mxu0 0.0
    %245 = vmatpush1.msra.mxu0 0.0
    %246 = vmatprep.subr.mxu0 0.0
    %247 = vmatpush1.msra.mxu0 0.0
    %248 = vmatprep.subr.mxu0 0.0
    %249 = vmatpush1.msra.mxu0 0.0
    %250 = vmatprep.subr.mxu0 0.0
    %251 = vmatpush1.msra.mxu0 0.0
    %252 = vmatprep.subr.mxu0 0.0
    %253 = vmatpush1.msra.mxu0 0.0
    %254 = vmatprep.subr.mxu0 0.0
    %255 = vmatpush1.msra.mxu0 0.0
    %256 = vmatprep.subr.mxu0 0.0
    %257 = vmatpush1.msra.mxu0 0.0
    %258 = vmatprep.subr.mxu0 0.0
    %259 = vmatpush1.msra.mxu0 0.0
    %260 = vmatprep.subr.mxu0 0.0
    %261 = vmatpush1.msra.mxu0 0.0
    %262 = vmatprep.subr.mxu0 0.0
    %263 = vmatpush1.msra.mxu0 0.0
    %264 = vmatprep.subr.mxu0 0.0
    %265 = vmatpush1.msra.mxu0 0.0
    %266 = vmatprep.subr.mxu0 0.0
    %267 = vmatpush1.msra.mxu0 0.0
    %268 = vmatprep.subr.mxu0 0.0
    %269 = vmatpush1.msra.mxu0 0.0
    %270 = vmatprep.subr.mxu0 0.0
    %271 = vmatpush1.msra.mxu0 0.0
    %272 = vmatprep.subr.mxu0 0.0
    %273 = vmatpush1.msra.mxu0 0.0
    %274 = vmatprep.subr.mxu0 0.0
    %275 = vmatpush1.msra.mxu0 0.0
    %276 = vmatprep.subr.mxu0 0.0
    %277 = vmatpush1.msra.mxu0 0.0
    %278 = vmatprep.subr.mxu0 0.0
    %279 = vmatpush1.msra.mxu0 0.0
    %280 = vmatprep.subr.mxu0 0.0
    %281 = vmatpush1.msra.mxu0 0.0
    %282 = vmatprep.subr.mxu0 0.0
    %283 = vmatpush1.msra.mxu0 0.0
    %284 = vmatprep.subr.mxu0 0.0
    %285 = vmatpush1.msra.mxu0 0.0
    %286 = vmatprep.subr.mxu0 0.0
    %287 = vmatpush1.msra.mxu0 0.0
    %288 = vmatprep.subr.mxu0 0.0
    %289 = vmatpush1.msra.mxu0 0.0
    %290 = vmatprep.subr.mxu0 0.0
    %291 = vmatpush1.msra.mxu0 0.0
    %292 = vmatprep.subr.mxu0 0.0
    %293 = vmatpush1.msra.mxu0 0.0
    %294 = vmatprep.mubr.f32.mxu0 0.0
    %295 = vmatmul.mubr.f32.gmra.mrb[0].mxu0 %v195
    %v296 = vpop.f32.mrb[0].mxu0
    %v297 = vadd.f32 %v136, %v296
    %v298 = vpop.f32.mrb[0].mxu0
    %299 = vmatprep.mubr.f32.mxu0 0.0
    %300 = vmatmul.mubr.f32.gmra.mrb[0].mxu0 %v198
    %v301 = vpop.f32.mrb[0].mxu0
    %v302 = vadd.f32 %v141, %v301
    %v303 = vpop.f32.mrb[0].mxu0
    %304 = vmatprep.mubr.f32.mxu0 0.0
    %305 = vmatmul.mubr.f32.gmra.mrb[0].mxu0 %v201
    %v306 = vpop.f32.mrb[0].mxu0
    %v307 = vadd.f32 %v146, %v306
    %v308 = vpop.f32.mrb[0].mxu0
    %309 = vmatprep.mubr.f32.mxu0 0.0
    %310 = vmatmul.mubr.f32.gmra.mrb[0].mxu0 %v204
    %v311 = vpop.f32.mrb[0].mxu0
    %v312 = vadd.f32 %v151, %v311
    %v313 = vpop.f32.mrb[0].mxu0
    %314 = vmatprep.mubr.f32.mxu0 0.0
    %315 = vmatmul.mubr.f32.gmra.mrb[0].mxu0 %v207
    %v316 = vpop.f32.mrb[0].mxu0
    %v317 = vadd.f32 %v156, %v316
    %v318 = vpop.f32.mrb[0].mxu0
    %319 = vmatprep.mubr.f32.mxu0 0.0
    %320 = vmatmul.mubr.f32.gmra.mrb[0].mxu0 %v210
    %v321 = vpop.f32.mrb[0].mxu0
    %v322 = vadd.f32 %v161, %v321
    %v323 = vpop.f32.mrb[0].mxu0
    %324 = vmatprep.mubr.f32.mxu0 0.0
    %325 = vmatmul.mubr.f32.gmra.mrb[0].mxu0 %v213
    %v326 = vpop.f32.mrb[0].mxu0
    %v327 = vadd.f32 %v166, %v326
    %v328 = vpop.f32.mrb[0].mxu0
    %329 = vmatprep.mubr.f32.mxu0 0.0
    %330 = vmatmul.mubr.f32.gmra.mrb[0].mxu0 %v216
    %v331 = vpop.f32.mrb[0].mxu0
    %v332 = vadd.f32 %v171, %v331
    %v333 = vpop.f32.mrb[0].mxu0
    %334 = vmatprep.mubr.f32.mxu0 0.0
    %335 = vmatmul.mubr.f32.gmra.mrb[0].mxu0 %v219
    %v336 = vpop.f32.mrb[0].mxu0
    %v337 = vadd.f32 %v176, %v336
    %v338 = vpop.f32.mrb[0].mxu0
    %339 = vmatprep.mubr.f32.mxu0 0.0
    %340 = vmatmul.mubr.f32.gmra.mrb[0].mxu0 %v222
    %v341 = vpop.f32.mrb[0].mxu0
    %v342 = vadd.f32 %v181, %v341
    %v343 = vpop.f32.mrb[0].mxu0
    %344 = vmatprep.mubr.f32.mxu0 0.0
    %345 = vmatmul.mubr.f32.gmra.mrb[0].mxu0 %v225
    %v346 = vpop.f32.mrb[0].mxu0
    %v347 = vadd.f32 %v186, %v346
    %v348 = vpop.f32.mrb[0].mxu0
    %349 = vmatprep.mubr.f32.mxu0 0.0
    %350 = vmatmul.mubr.f32.gmra.mrb[0].mxu0 %v228
    %v351 = vpop.f32.mrb[0].mxu0
    %v352 = vadd.f32 %v191, %v351
    %v353 = vpop.f32.mrb[0].mxu0
    %354 = vdwg.mxu0
    %v355 = vmax.f32 %v85, 0.0
    %v356 = vmax.f32 %v86, 0.0
    %v357 = vmax.f32 %v87, 0.0
    %v358 = vmax.f32 %v88, 0.0
    %359 = vmatprep.subr.mxu0 0.0
    %360 = vmatpush1.msra.mxu0 %v355
    %361 = vmatprep.subr.mxu0 0.0
    %362 = vmatpush1.msra.mxu0 %v356
    %363 = vmatprep.subr.mxu0 0.0
    %364 = vmatpush1.msra.mxu0 %v357
    %365 = vmatprep.subr.mxu0 0.0
    %366 = vmatpush1.msra.mxu0 %v358
    %367 = vmatprep.subr.mxu0 0.0
    %368 = vmatpush1.msra.mxu0 0.0
    %369 = vmatprep.subr.mxu0 0.0
    %370 = vmatpush1.msra.mxu0 0.0
    %371 = vmatprep.subr.mxu0 0.0
    %372 = vmatpush1.msra.mxu0 0.0
    %373 = vmatprep.subr.mxu0 0.0
    %374 = vmatpush1.msra.mxu0 0.0
    %375 = vmatprep.subr.mxu0 0.0
    %376 = vmatpush1.msra.mxu0 0.0
    %377 = vmatprep.subr.mxu0 0.0
    %378 = vmatpush1.msra.mxu0 0.0
    %379 = vmatprep.subr.mxu0 0.0
    %380 = vmatpush1.msra.mxu0 0.0
    %381 = vmatprep.subr.mxu0 0.0
    %382 = vmatpush1.msra.mxu0 0.0
    %383 = vmatprep.subr.mxu0 0.0
    %384 = vmatpush1.msra.mxu0 0.0
    %385 = vmatprep.subr.mxu0 0.0
    %386 = vmatpush1.msra.mxu0 0.0
    %387 = vmatprep.subr.mxu0 0.0
    %388 = vmatpush1.msra.mxu0 0.0
    %389 = vmatprep.subr.mxu0 0.0
    %390 = vmatpush1.msra.mxu0 0.0
    %391 = vmatprep.subr.mxu0 0.0
    %392 = vmatpush1.msra.mxu0 0.0
    %393 = vmatprep.subr.mxu0 0.0
    %394 = vmatpush1.msra.mxu0 0.0
    %395 = vmatprep.subr.mxu0 0.0
    %396 = vmatpush1.msra.mxu0 0.0
    %397 = vmatprep.subr.mxu0 0.0
    %398 = vmatpush1.msra.mxu0 0.0
    %399 = vmatprep.subr.mxu0 0.0
    %400 = vmatpush1.msra.mxu0 0.0
    %401 = vmatprep.subr.mxu0 0.0
    %402 = vmatpush1.msra.mxu0 0.0
    %403 = vmatprep.subr.mxu0 0.0
    %404 = vmatpush1.msra.mxu0 0.0
    %405 = vmatprep.subr.mxu0 0.0
    %406 = vmatpush1.msra.mxu0 0.0
    %407 = vmatprep.subr.mxu0 0.0
    %408 = vmatpush1.msra.mxu0 0.0
    %409 = vmatprep.subr.mxu0 0.0
    %410 = vmatpush1.msra.mxu0 0.0
    %411 = vmatprep.subr.mxu0 0.0
    %412 = vmatpush1.msra.mxu0 0.0
    %413 = vmatprep.subr.mxu0 0.0
    %414 = vmatpush1.msra.mxu0 0.0
    %415 = vmatprep.subr.mxu0 0.0
    %416 = vmatpush1.msra.mxu0 0.0
    %417 = vmatprep.subr.mxu0 0.0
    %418 = vmatpush1.msra.mxu0 0.0
    %419 = vmatprep.subr.mxu0 0.0
    %420 = vmatpush1.msra.mxu0 0.0
    %421 = vmatprep.subr.mxu0 0.0
    %422 = vmatpush1.msra.mxu0 0.0
    %423 = vmatprep.mubr.f32.mxu0 0.0
    %424 = vmatmul.mubr.f32.gmra.mrb[0].mxu0 %v195
    %v425 = vpop.f32.mrb[0].mxu0
    %v426 = vadd.f32 %v136, %v425
    %v427 = vpop.f32.mrb[0].mxu0
    %428 = vmatprep.mubr.f32.mxu0 0.0
    %429 = vmatmul.mubr.f32.gmra.mrb[0].mxu0 %v198
    %v430 = vpop.f32.mrb[0].mxu0
    %v431 = vadd.f32 %v141, %v430
    %v432 = vpop.f32.mrb[0].mxu0
    %433 = vmatprep.mubr.f32.mxu0 0.0
    %434 = vmatmul.mubr.f32.gmra.mrb[0].mxu0 %v201
    %v435 = vpop.f32.mrb[0].mxu0
    %v436 = vadd.f32 %v146, %v435
    %v437 = vpop.f32.mrb[0].mxu0
    %438 = vmatprep.mubr.f32.mxu0 0.0
    %439 = vmatmul.mubr.f32.gmra.mrb[0].mxu0 %v204
    %v440 = vpop.f32.mrb[0].mxu0
    %v441 = vadd.f32 %v151, %v440
    %v442 = vpop.f32.mrb[0].mxu0
    %443 = vmatprep.mubr.f32.mxu0 0.0
    %444 = vmatmul.mubr.f32.gmra.mrb[0].mxu0 %v207
    %v445 = vpop.f32.mrb[0].mxu0
    %v446 = vadd.f32 %v156, %v445
    %v447 = vpop.f32.mrb[0].mxu0
    %448 = vmatprep.mubr.f32.mxu0 0.0
    %449 = vmatmul.mubr.f32.gmra.mrb[0].mxu0 %v210
    %v450 = vpop.f32.mrb[0].mxu0
    %v451 = vadd.f32 %v161, %v450
    %v452 = vpop.f32.mrb[0].mxu0
    %453 = vmatprep.mubr.f32.mxu0 0.0
    %454 = vmatmul.mubr.f32.gmra.mrb[0].mxu0 %v213
    %v455 = vpop.f32.mrb[0].mxu0
    %v456 = vadd.f32 %v166, %v455
    %v457 = vpop.f32.mrb[0].mxu0
    %458 = vmatprep.mubr.f32.mxu0 0.0
    %459 = vmatmul.mubr.f32.gmra.mrb[0].mxu0 %v216
    %v460 = vpop.f32.mrb[0].mxu0
    %v461 = vadd.f32 %v171, %v460
    %v462 = vpop.f32.mrb[0].mxu0
    %463 = vmatprep.mubr.f32.mxu0 0.0
    %464 = vmatmul.mubr.f32.gmra.mrb[0].mxu0 %v219
    %v465 = vpop.f32.mrb[0].mxu0
    %v466 = vadd.f32 %v176, %v465
    %v467 = vpop.f32.mrb[0].mxu0
    %468 = vmatprep.mubr.f32.mxu0 0.0
    %469 = vmatmul.mubr.f32.gmra.mrb[0].mxu0 %v222
    %v470 = vpop.f32.mrb[0].mxu0
    %v471 = vadd.f32 %v181, %v470
    %v472 = vpop.f32.mrb[0].mxu0
    %473 = vmatprep.mubr.f32.mxu0 0.0
    %474 = vmatmul.mubr.f32.gmra.mrb[0].mxu0 %v225
    %v475 = vpop.f32.mrb[0].mxu0
    %v476 = vadd.f32 %v186, %v475
    %v477 = vpop.f32.mrb[0].mxu0
    %478 = vmatprep.mubr.f32.mxu0 0.0
    %479 = vmatmul.mubr.f32.gmra.mrb[0].mxu0 %v228
    %v480 = vpop.f32.mrb[0].mxu0
    %v481 = vadd.f32 %v191, %v480
    %v482 = vpop.f32.mrb[0].mxu0
    %483 = vdwg.mxu0
    %v484 = vmax.f32 %v89, 0.0
    %v485 = vmax.f32 %v90, 0.0
    %v486 = vmax.f32 %v91, 0.0
    %v487 = vmax.f32 %v92, 0.0
    %488 = vmatprep.subr.mxu0 0.0
    %489 = vmatpush1.msra.mxu0 %v484
    %490 = vmatprep.subr.mxu0 0.0
    %491 = vmatpush1.msra.mxu0 %v485
    %492 = vmatprep.subr.mxu0 0.0
    %493 = vmatpush1.msra.mxu0 %v486
    %494 = vmatprep.subr.mxu0 0.0
    %495 = vmatpush1.msra.mxu0 %v487
    %496 = vmatprep.subr.mxu0 0.0
    %497 = vmatpush1.msra.mxu0 0.0
    %498 = vmatprep.subr.mxu0 0.0
    %499 = vmatpush1.msra.mxu0 0.0
    %500 = vmatprep.subr.mxu0 0.0
    %501 = vmatpush1.msra.mxu0 0.0
    %502 = vmatprep.subr.mxu0 0.0
    %503 = vmatpush1.msra.mxu0 0.0
    %504 = vmatprep.subr.mxu0 0.0
    %505 = vmatpush1.msra.mxu0 0.0
    %506 = vmatprep.subr.mxu0 0.0
    %507 = vmatpush1.msra.mxu0 0.0
    %508 = vmatprep.subr.mxu0 0.0
    %509 = vmatpush1.msra.mxu0 0.0
    %510 = vmatprep.subr.mxu0 0.0
    %511 = vmatpush1.msra.mxu0 0.0
    %512 = vmatprep.subr.mxu0 0.0
    %513 = vmatpush1.msra.mxu0 0.0
    %514 = vmatprep.subr.mxu0 0.0
    %515 = vmatpush1.msra.mxu0 0.0
    %516 = vmatprep.subr.mxu0 0.0
    %517 = vmatpush1.msra.mxu0 0.0
    %518 = vmatprep.subr.mxu0 0.0
    %519 = vmatpush1.msra.mxu0 0.0
    %520 = vmatprep.subr.mxu0 0.0
    %521 = vmatpush1.msra.mxu0 0.0
    %522 = vmatprep.subr.mxu0 0.0
    %523 = vmatpush1.msra.mxu0 0.0
    %524 = vmatprep.subr.mxu0 0.0
    %525 = vmatpush1.msra.mxu0 0.0
    %526 = vmatprep.subr.mxu0 0.0
    %527 = vmatpush1.msra.mxu0 0.0
    %528 = vmatprep.subr.mxu0 0.0
    %529 = vmatpush1.msra.mxu0 0.0
    %530 = vmatprep.subr.mxu0 0.0
    %531 = vmatpush1.msra.mxu0 0.0
    %532 = vmatprep.subr.mxu0 0.0
    %533 = vmatpush1.msra.mxu0 0.0
    %534 = vmatprep.subr.mxu0 0.0
    %535 = vmatpush1.msra.mxu0 0.0
    %536 = vmatprep.subr.mxu0 0.0
    %537 = vmatpush1.msra.mxu0 0.0
    %538 = vmatprep.subr.mxu0 0.0
    %539 = vmatpush1.msra.mxu0 0.0
    %540 = vmatprep.subr.mxu0 0.0
    %541 = vmatpush1.msra.mxu0 0.0
    %542 = vmatprep.subr.mxu0 0.0
    %543 = vmatpush1.msra.mxu0 0.0
    %544 = vmatprep.subr.mxu0 0.0
    %545 = vmatpush1.msra.mxu0 0.0
    %546 = vmatprep.subr.mxu0 0.0
    %547 = vmatpush1.msra.mxu0 0.0
    %548 = vmatprep.subr.mxu0 0.0
    %549 = vmatpush1.msra.mxu0 0.0
    %550 = vmatprep.subr.mxu0 0.0
    %551 = vmatpush1.msra.mxu0 0.0
    %552 = vmatprep.mubr.f32.mxu0 0.0
    %553 = vmatmul.mubr.f32.gmra.mrb[0].mxu0 %v195
    %v554 = vpop.f32.mrb[0].mxu0
    %v555 = vadd.f32 %v136, %v554
    %v556 = vpop.f32.mrb[0].mxu0
    %557 = vmatprep.mubr.f32.mxu0 0.0
    %558 = vmatmul.mubr.f32.gmra.mrb[0].mxu0 %v198
    %v559 = vpop.f32.mrb[0].mxu0
    %v560 = vadd.f32 %v141, %v559
    %v561 = vpop.f32.mrb[0].mxu0
    %562 = vmatprep.mubr.f32.mxu0 0.0
    %563 = vmatmul.mubr.f32.gmra.mrb[0].mxu0 %v201
    %v564 = vpop.f32.mrb[0].mxu0
    %v565 = vadd.f32 %v146, %v564
    %v566 = vpop.f32.mrb[0].mxu0
    %567 = vmatprep.mubr.f32.mxu0 0.0
    %568 = vmatmul.mubr.f32.gmra.mrb[0].mxu0 %v204
    %v569 = vpop.f32.mrb[0].mxu0
    %v570 = vadd.f32 %v151, %v569
    %v571 = vpop.f32.mrb[0].mxu0
    %572 = vmatprep.mubr.f32.mxu0 0.0
    %573 = vmatmul.mubr.f32.gmra.mrb[0].mxu0 %v207
    %v574 = vpop.f32.mrb[0].mxu0
    %v575 = vadd.f32 %v156, %v574
    %v576 = vpop.f32.mrb[0].mxu0
    %577 = vmatprep.mubr.f32.mxu0 0.0
    %578 = vmatmul.mubr.f32.gmra.mrb[0].mxu0 %v210
    %v579 = vpop.f32.mrb[0].mxu0
    %v580 = vadd.f32 %v161, %v579
    %v581 = vpop.f32.mrb[0].mxu0
    %582 = vmatprep.mubr.f32.mxu0 0.0
    %583 = vmatmul.mubr.f32.gmra.mrb[0].mxu0 %v213
    %v584 = vpop.f32.mrb[0].mxu0
    %v585 = vadd.f32 %v166, %v584
    %v586 = vpop.f32.mrb[0].mxu0
    %587 = vmatprep.mubr.f32.mxu0 0.0
    %588 = vmatmul.mubr.f32.gmra.mrb[0].mxu0 %v216
    %v589 = vpop.f32.mrb[0].mxu0
    %v590 = vadd.f32 %v171, %v589
    %v591 = vpop.f32.mrb[0].mxu0
    %592 = vmatprep.mubr.f32.mxu0 0.0
    %593 = vmatmul.mubr.f32.gmra.mrb[0].mxu0 %v219
    %v594 = vpop.f32.mrb[0].mxu0
    %v595 = vadd.f32 %v176, %v594
    %v596 = vpop.f32.mrb[0].mxu0
    %597 = vmatprep.mubr.f32.mxu0 0.0
    %598 = vmatmul.mubr.f32.gmra.mrb[0].mxu0 %v222
    %v599 = vpop.f32.mrb[0].mxu0
    %v600 = vadd.f32 %v181, %v599
    %v601 = vpop.f32.mrb[0].mxu0
    %602 = vmatprep.mubr.f32.mxu0 0.0
    %603 = vmatmul.mubr.f32.gmra.mrb[0].mxu0 %v225
    %v604 = vpop.f32.mrb[0].mxu0
    %v605 = vadd.f32 %v186, %v604
    %v606 = vpop.f32.mrb[0].mxu0
    %607 = vmatprep.mubr.f32.mxu0 0.0
    %608 = vmatmul.mubr.f32.gmra.mrb[0].mxu0 %v228
    %v609 = vpop.f32.mrb[0].mxu0
    %v610 = vadd.f32 %v191, %v609
    %v611 = vpop.f32.mrb[0].mxu0
    %612 = vdwg.mxu0
    %v613 = vmax.f32 %v93, 0.0
    %v614 = vmax.f32 %v94, 0.0
    %v615 = vmax.f32 %v95, 0.0
    %v616 = vmax.f32 %v96, 0.0
    %617 = vmatprep.subr.mxu0 0.0
    %618 = vmatpush1.msra.mxu0 %v613
    %619 = vmatprep.subr.mxu0 0.0
    %620 = vmatpush1.msra.mxu0 %v614
    %621 = vmatprep.subr.mxu0 0.0
    %622 = vmatpush1.msra.mxu0 %v615
    %623 = vmatprep.subr.mxu0 0.0
    %624 = vmatpush1.msra.mxu0 %v616
    %625 = vmatprep.subr.mxu0 0.0
    %626 = vmatpush1.msra.mxu0 0.0
    %627 = vmatprep.subr.mxu0 0.0
    %628 = vmatpush1.msra.mxu0 0.0
    %629 = vmatprep.subr.mxu0 0.0
    %630 = vmatpush1.msra.mxu0 0.0
    %631 = vmatprep.subr.mxu0 0.0
    %632 = vmatpush1.msra.mxu0 0.0
    %633 = vmatprep.subr.mxu0 0.0
    %634 = vmatpush1.msra.mxu0 0.0
    %635 = vmatprep.subr.mxu0 0.0
    %636 = vmatpush1.msra.mxu0 0.0
    %637 = vmatprep.subr.mxu0 0.0
    %638 = vmatpush1.msra.mxu0 0.0
    %639 = vmatprep.subr.mxu0 0.0
    %640 = vmatpush1.msra.mxu0 0.0
    %641 = vmatprep.subr.mxu0 0.0
    %642 = vmatpush1.msra.mxu0 0.0
    %643 = vmatprep.subr.mxu0 0.0
    %644 = vmatpush1.msra.mxu0 0.0
    %645 = vmatprep.subr.mxu0 0.0
    %646 = vmatpush1.msra.mxu0 0.0
    %647 = vmatprep.subr.mxu0 0.0
    %648 = vmatpush1.msra.mxu0 0.0
    %649 = vmatprep.subr.mxu0 0.0
    %650 = vmatpush1.msra.mxu0 0.0
    %651 = vmatprep.subr.mxu0 0.0
    %652 = vmatpush1.msra.mxu0 0.0
    %653 = vmatprep.subr.mxu0 0.0
    %654 = vmatpush1.msra.mxu0 0.0
    %655 = vmatprep.subr.mxu0 0.0
    %656 = vmatpush1.msra.mxu0 0.0
    %657 = vmatprep.subr.mxu0 0.0
    %658 = vmatpush1.msra.mxu0 0.0
    %659 = vmatprep.subr.mxu0 0.0
    %660 = vmatpush1.msra.mxu0 0.0
    %661 = vmatprep.subr.mxu0 0.0
    %662 = vmatpush1.msra.mxu0 0.0
    %663 = vmatprep.subr.mxu0 0.0
    %664 = vmatpush1.msra.mxu0 0.0
    %665 = vmatprep.subr.mxu0 0.0
    %666 = vmatpush1.msra.mxu0 0.0
    %667 = vmatprep.subr.mxu0 0.0
    %668 = vmatpush1.msra.mxu0 0.0
    %669 = vmatprep.subr.mxu0 0.0
    %670 = vmatpush1.msra.mxu0 0.0
    %671 = vmatprep.subr.mxu0 0.0
    %672 = vmatpush1.msra.mxu0 0.0
    %673 = vmatprep.subr.mxu0 0.0
    %674 = vmatpush1.msra.mxu0 0.0
    %675 = vmatprep.subr.mxu0 0.0
    %676 = vmatpush1.msra.mxu0 0.0
    %677 = vmatprep.subr.mxu0 0.0
    %678 = vmatpush1.msra.mxu0 0.0
    %679 = vmatprep.subr.mxu0 0.0
    %680 = vmatpush1.msra.mxu0 0.0
    %681 = vmatprep.mubr.f32.mxu0 0.0
    %682 = vmatmul.mubr.f32.gmra.mrb[0].mxu0 %v195
    %v683 = vpop.f32.mrb[0].mxu0
    %v684 = vadd.f32 %v136, %v683
    %v685 = vpop.f32.mrb[0].mxu0
    %686 = vmatprep.mubr.f32.mxu0 0.0
    %687 = vmatmul.mubr.f32.gmra.mrb[0].mxu0 %v198
    %v688 = vpop.f32.mrb[0].mxu0
    %v689 = vadd.f32 %v141, %v688
    %v690 = vpop.f32.mrb[0].mxu0
    %691 = vmatprep.mubr.f32.mxu0 0.0
    %692 = vmatmul.mubr.f32.gmra.mrb[0].mxu0 %v201
    %v693 = vpop.f32.mrb[0].mxu0
    %v694 = vadd.f32 %v146, %v693
    %v695 = vpop.f32.mrb[0].mxu0
    %696 = vmatprep.mubr.f32.mxu0 0.0
    %697 = vmatmul.mubr.f32.gmra.mrb[0].mxu0 %v204
    %v698 = vpop.f32.mrb[0].mxu0
    %v699 = vadd.f32 %v151, %v698
    %v700 = vpop.f32.mrb[0].mxu0
    %701 = vmatprep.mubr.f32.mxu0 0.0
    %702 = vmatmul.mubr.f32.gmra.mrb[0].mxu0 %v207
    %v703 = vpop.f32.mrb[0].mxu0
    %v704 = vadd.f32 %v156, %v703
    %v705 = vpop.f32.mrb[0].mxu0
    %706 = vmatprep.mubr.f32.mxu0 0.0
    %707 = vmatmul.mubr.f32.gmra.mrb[0].mxu0 %v210
    %v708 = vpop.f32.mrb[0].mxu0
    %v709 = vadd.f32 %v161, %v708
    %v710 = vpop.f32.mrb[0].mxu0
    %711 = vmatprep.mubr.f32.mxu0 0.0
    %712 = vmatmul.mubr.f32.gmra.mrb[0].mxu0 %v213
    %v713 = vpop.f32.mrb[0].mxu0
    %v714 = vadd.f32 %v166, %v713
    %v715 = vpop.f32.mrb[0].mxu0
    %716 = vmatprep.mubr.f32.mxu0 0.0
    %717 = vmatmul.mubr.f32.gmra.mrb[0].mxu0 %v216
    %v718 = vpop.f32.mrb[0].mxu0
    %v719 = vadd.f32 %v171, %v718
    %v720 = vpop.f32.mrb[0].mxu0
    %721 = vmatprep.mubr.f32.mxu0 0.0
    %722 = vmatmul.mubr.f32.gmra.mrb[0].mxu0 %v219
    %v723 = vpop.f32.mrb[0].mxu0
    %v724 = vadd.f32 %v176, %v723
    %v725 = vpop.f32.mrb[0].mxu0
    %726 = vmatprep.mubr.f32.mxu0 0.0
    %727 = vmatmul.mubr.f32.gmra.mrb[0].mxu0 %v222
    %v728 = vpop.f32.mrb[0].mxu0
    %v729 = vadd.f32 %v181, %v728
    %v730 = vpop.f32.mrb[0].mxu0
    %731 = vmatprep.mubr.f32.mxu0 0.0
    %732 = vmatmul.mubr.f32.gmra.mrb[0].mxu0 %v225
    %v733 = vpop.f32.mrb[0].mxu0
    %v734 = vadd.f32 %v186, %v733
    %v735 = vpop.f32.mrb[0].mxu0
    %736 = vmatprep.mubr.f32.mxu0 0.0
    %737 = vmatmul.mubr.f32.gmra.mrb[0].mxu0 %v228
    %v738 = vpop.f32.mrb[0].mxu0
    %v739 = vadd.f32 %v191, %v738
    %v740 = vpop.f32.mrb[0].mxu0
    %741 = vdwg.mxu0
    %v742 = vmax.f32 %v97, 0.0
    %v743 = vmax.f32 %v98, 0.0
    %v744 = vmax.f32 %v99, 0.0
    %v745 = vmax.f32 %v100, 0.0
    %746 = vmatprep.subr.mxu0 0.0
    %747 = vmatpush1.msra.mxu0 %v742
    %748 = vmatprep.subr.mxu0 0.0
    %749 = vmatpush1.msra.mxu0 %v743
    %750 = vmatprep.subr.mxu0 0.0
    %751 = vmatpush1.msra.mxu0 %v744
    %752 = vmatprep.subr.mxu0 0.0
    %753 = vmatpush1.msra.mxu0 %v745
    %754 = vmatprep.subr.mxu0 0.0
    %755 = vmatpush1.msra.mxu0 0.0
    %756 = vmatprep.subr.mxu0 0.0
    %757 = vmatpush1.msra.mxu0 0.0
    %758 = vmatprep.subr.mxu0 0.0
    %759 = vmatpush1.msra.mxu0 0.0
    %760 = vmatprep.subr.mxu0 0.0
    %761 = vmatpush1.msra.mxu0 0.0
    %762 = vmatprep.subr.mxu0 0.0
    %763 = vmatpush1.msra.mxu0 0.0
    %764 = vmatprep.subr.mxu0 0.0
    %765 = vmatpush1.msra.mxu0 0.0
    %766 = vmatprep.subr.mxu0 0.0
    %767 = vmatpush1.msra.mxu0 0.0
    %768 = vmatprep.subr.mxu0 0.0
    %769 = vmatpush1.msra.mxu0 0.0
    %770 = vmatprep.subr.mxu0 0.0
    %771 = vmatpush1.msra.mxu0 0.0
    %772 = vmatprep.subr.mxu0 0.0
    %773 = vmatpush1.msra.mxu0 0.0
    %774 = vmatprep.subr.mxu0 0.0
    %775 = vmatpush1.msra.mxu0 0.0
    %776 = vmatprep.subr.mxu0 0.0
    %777 = vmatpush1.msra.mxu0 0.0
    %778 = vmatprep.subr.mxu0 0.0
    %779 = vmatpush1.msra.mxu0 0.0
    %780 = vmatprep.subr.mxu0 0.0
    %781 = vmatpush1.msra.mxu0 0.0
    %782 = vmatprep.subr.mxu0 0.0
    %783 = vmatpush1.msra.mxu0 0.0
    %784 = vmatprep.subr.mxu0 0.0
    %785 = vmatpush1.msra.mxu0 0.0
    %786 = vmatprep.subr.mxu0 0.0
    %787 = vmatpush1.msra.mxu0 0.0
    %788 = vmatprep.subr.mxu0 0.0
    %789 = vmatpush1.msra.mxu0 0.0
    %790 = vmatprep.subr.mxu0 0.0
    %791 = vmatpush1.msra.mxu0 0.0
    %792 = vmatprep.subr.mxu0 0.0
    %793 = vmatpush1.msra.mxu0 0.0
    %794 = vmatprep.subr.mxu0 0.0
    %795 = vmatpush1.msra.mxu0 0.0
    %796 = vmatprep.subr.mxu0 0.0
    %797 = vmatpush1.msra.mxu0 0.0
    %798 = vmatprep.subr.mxu0 0.0
    %799 = vmatpush1.msra.mxu0 0.0
    %800 = vmatprep.subr.mxu0 0.0
    %801 = vmatpush1.msra.mxu0 0.0
    %802 = vmatprep.subr.mxu0 0.0
    %803 = vmatpush1.msra.mxu0 0.0
    %804 = vmatprep.subr.mxu0 0.0
    %805 = vmatpush1.msra.mxu0 0.0
    %806 = vmatprep.subr.mxu0 0.0
    %807 = vmatpush1.msra.mxu0 0.0
    %808 = vmatprep.subr.mxu0 0.0
    %809 = vmatpush1.msra.mxu0 0.0
    %810 = vmatprep.mubr.f32.mxu0 0.0
    %811 = vmatmul.mubr.f32.gmra.mrb[0].mxu0 %v195
    %v812 = vpop.f32.mrb[0].mxu0
    %v813 = vadd.f32 %v136, %v812
    %v814 = vpop.f32.mrb[0].mxu0
    %815 = vmatprep.mubr.f32.mxu0 0.0
    %816 = vmatmul.mubr.f32.gmra.mrb[0].mxu0 %v198
    %v817 = vpop.f32.mrb[0].mxu0
    %v818 = vadd.f32 %v141, %v817
    %v819 = vpop.f32.mrb[0].mxu0
    %820 = vmatprep.mubr.f32.mxu0 0.0
    %821 = vmatmul.mubr.f32.gmra.mrb[0].mxu0 %v201
    %v822 = vpop.f32.mrb[0].mxu0
    %v823 = vadd.f32 %v146, %v822
    %v824 = vpop.f32.mrb[0].mxu0
    %825 = vmatprep.mubr.f32.mxu0 0.0
    %826 = vmatmul.mubr.f32.gmra.mrb[0].mxu0 %v204
    %v827 = vpop.f32.mrb[0].mxu0
    %v828 = vadd.f32 %v151, %v827
    %v829 = vpop.f32.mrb[0].mxu0
    %830 = vmatprep.mubr.f32.mxu0 0.0
    %831 = vmatmul.mubr.f32.gmra.mrb[0].mxu0 %v207
    %v832 = vpop.f32.mrb[0].mxu0
    %v833 = vadd.f32 %v156, %v832
    %v834 = vpop.f32.mrb[0].mxu0
    %835 = vmatprep.mubr.f32.mxu0 0.0
    %836 = vmatmul.mubr.f32.gmra.mrb[0].mxu0 %v210
    %v837 = vpop.f32.mrb[0].mxu0
    %v838 = vadd.f32 %v161, %v837
    %v839 = vpop.f32.mrb[0].mxu0
    %840 = vmatprep.mubr.f32.mxu0 0.0
    %841 = vmatmul.mubr.f32.gmra.mrb[0].mxu0 %v213
    %v842 = vpop.f32.mrb[0].mxu0
    %v843 = vadd.f32 %v166, %v842
    %v844 = vpop.f32.mrb[0].mxu0
    %845 = vmatprep.mubr.f32.mxu0 0.0
    %846 = vmatmul.mubr.f32.gmra.mrb[0].mxu0 %v216
    %v847 = vpop.f32.mrb[0].mxu0
    %v848 = vadd.f32 %v171, %v847
    %v849 = vpop.f32.mrb[0].mxu0
    %850 = vmatprep.mubr.f32.mxu0 0.0
    %851 = vmatmul.mubr.f32.gmra.mrb[0].mxu0 %v219
    %v852 = vpop.f32.mrb[0].mxu0
    %v853 = vadd.f32 %v176, %v852
    %v854 = vpop.f32.mrb[0].mxu0
    %855 = vmatprep.mubr.f32.mxu0 0.0
    %856 = vmatmul.mubr.f32.gmra.mrb[0].mxu0 %v222
    %v857 = vpop.f32.mrb[0].mxu0
    %v858 = vadd.f32 %v181, %v857
    %v859 = vpop.f32.mrb[0].mxu0
    %860 = vmatprep.mubr.f32.mxu0 0.0
    %861 = vmatmul.mubr.f32.gmra.mrb[0].mxu0 %v225
    %v862 = vpop.f32.mrb[0].mxu0
    %v863 = vadd.f32 %v186, %v862
    %v864 = vpop.f32.mrb[0].mxu0
    %865 = vmatprep.mubr.f32.mxu0 0.0
    %866 = vmatmul.mubr.f32.gmra.mrb[0].mxu0 %v228
    %v867 = vpop.f32.mrb[0].mxu0
    %v868 = vadd.f32 %v191, %v867
    %v869 = vpop.f32.mrb[0].mxu0
    %870 = vdwg.mxu0
    %v871 = vmax.f32 %v101, 0.0
    %v872 = vmax.f32 %v102, 0.0
    %v873 = vmax.f32 %v103, 0.0
    %v874 = vmax.f32 %v104, 0.0
    %875 = vmatprep.subr.mxu0 0.0
    %876 = vmatpush1.msra.mxu0 %v871
    %877 = vmatprep.subr.mxu0 0.0
    %878 = vmatpush1.msra.mxu0 %v872
    %879 = vmatprep.subr.mxu0 0.0
    %880 = vmatpush1.msra.mxu0 %v873
    %881 = vmatprep.subr.mxu0 0.0
    %882 = vmatpush1.msra.mxu0 %v874
    %883 = vmatprep.subr.mxu0 0.0
    %884 = vmatpush1.msra.mxu0 0.0
    %885 = vmatprep.subr.mxu0 0.0
    %886 = vmatpush1.msra.mxu0 0.0
    %887 = vmatprep.subr.mxu0 0.0
    %888 = vmatpush1.msra.mxu0 0.0
    %889 = vmatprep.subr.mxu0 0.0
    %890 = vmatpush1.msra.mxu0 0.0
    %891 = vmatprep.subr.mxu0 0.0
    %892 = vmatpush1.msra.mxu0 0.0
    %893 = vmatprep.subr.mxu0 0.0
    %894 = vmatpush1.msra.mxu0 0.0
    %895 = vmatprep.subr.mxu0 0.0
    %896 = vmatpush1.msra.mxu0 0.0
    %897 = vmatprep.subr.mxu0 0.0
    %898 = vmatpush1.msra.mxu0 0.0
    %899 = vmatprep.subr.mxu0 0.0
    %900 = vmatpush1.msra.mxu0 0.0
    %901 = vmatprep.subr.mxu0 0.0
    %902 = vmatpush1.msra.mxu0 0.0
    %903 = vmatprep.subr.mxu0 0.0
    %904 = vmatpush1.msra.mxu0 0.0
    %905 = vmatprep.subr.mxu0 0.0
    %906 = vmatpush1.msra.mxu0 0.0
    %907 = vmatprep.subr.mxu0 0.0
    %908 = vmatpush1.msra.mxu0 0.0
    %909 = vmatprep.subr.mxu0 0.0
    %910 = vmatpush1.msra.mxu0 0.0
    %911 = vmatprep.subr.mxu0 0.0
    %912 = vmatpush1.msra.mxu0 0.0
    %913 = vmatprep.subr.mxu0 0.0
    %914 = vmatpush1.msra.mxu0 0.0
    %915 = vmatprep.subr.mxu0 0.0
    %916 = vmatpush1.msra.mxu0 0.0
    %917 = vmatprep.subr.mxu0 0.0
    %918 = vmatpush1.msra.mxu0 0.0
    %919 = vmatprep.subr.mxu0 0.0
    %920 = vmatpush1.msra.mxu0 0.0
    %921 = vmatprep.subr.mxu0 0.0
    %922 = vmatpush1.msra.mxu0 0.0
    %923 = vmatprep.subr.mxu0 0.0
    %924 = vmatpush1.msra.mxu0 0.0
    %925 = vmatprep.subr.mxu0 0.0
    %926 = vmatpush1.msra.mxu0 0.0
    %927 = vmatprep.subr.mxu0 0.0
    %928 = vmatpush1.msra.mxu0 0.0
    %929 = vmatprep.subr.mxu0 0.0
    %930 = vmatpush1.msra.mxu0 0.0
    %931 = vmatprep.subr.mxu0 0.0
    %932 = vmatpush1.msra.mxu0 0.0
    %933 = vmatprep.subr.mxu0 0.0
    %934 = vmatpush1.msra.mxu0 0.0
    %935 = vmatprep.subr.mxu0 0.0
    %936 = vmatpush1.msra.mxu0 0.0
    %937 = vmatprep.subr.mxu0 0.0
    %938 = vmatpush1.msra.mxu0 0.0
    %939 = vmatprep.mubr.f32.mxu0 0.0
    %940 = vmatmul.mubr.f32.gmra.mrb[0].mxu0 %v195
    %v941 = vpop.f32.mrb[0].mxu0
    %v942 = vadd.f32 %v136, %v941
    %v943 = vpop.f32.mrb[0].mxu0
    %944 = vmatprep.mubr.f32.mxu0 0.0
    %945 = vmatmul.mubr.f32.gmra.mrb[0].mxu0 %v198
    %v946 = vpop.f32.mrb[0].mxu0
    %v947 = vadd.f32 %v141, %v946
    %v948 = vpop.f32.mrb[0].mxu0
    %949 = vmatprep.mubr.f32.mxu0 0.0
    %950 = vmatmul.mubr.f32.gmra.mrb[0].mxu0 %v201
    %v951 = vpop.f32.mrb[0].mxu0
    %v952 = vadd.f32 %v146, %v951
    %v953 = vpop.f32.mrb[0].mxu0
    %954 = vmatprep.mubr.f32.mxu0 0.0
    %955 = vmatmul.mubr.f32.gmra.mrb[0].mxu0 %v204
    %v956 = vpop.f32.mrb[0].mxu0
    %v957 = vadd.f32 %v151, %v956
    %v958 = vpop.f32.mrb[0].mxu0
    %959 = vmatprep.mubr.f32.mxu0 0.0
    %960 = vmatmul.mubr.f32.gmra.mrb[0].mxu0 %v207
    %v961 = vpop.f32.mrb[0].mxu0
    %v962 = vadd.f32 %v156, %v961
    %v963 = vpop.f32.mrb[0].mxu0
    %964 = vmatprep.mubr.f32.mxu0 0.0
    %965 = vmatmul.mubr.f32.gmra.mrb[0].mxu0 %v210
    %v966 = vpop.f32.mrb[0].mxu0
    %v967 = vadd.f32 %v161, %v966
    %v968 = vpop.f32.mrb[0].mxu0
    %969 = vmatprep.mubr.f32.mxu0 0.0
    %970 = vmatmul.mubr.f32.gmra.mrb[0].mxu0 %v213
    %v971 = vpop.f32.mrb[0].mxu0
    %v972 = vadd.f32 %v166, %v971
    %v973 = vpop.f32.mrb[0].mxu0
    %974 = vmatprep.mubr.f32.mxu0 0.0
    %975 = vmatmul.mubr.f32.gmra.mrb[0].mxu0 %v216
    %v976 = vpop.f32.mrb[0].mxu0
    %v977 = vadd.f32 %v171, %v976
    %v978 = vpop.f32.mrb[0].mxu0
    %979 = vmatprep.mubr.f32.mxu0 0.0
    %980 = vmatmul.mubr.f32.gmra.mrb[0].mxu0 %v219
    %v981 = vpop.f32.mrb[0].mxu0
    %v982 = vadd.f32 %v176, %v981
    %v983 = vpop.f32.mrb[0].mxu0
    %984 = vmatprep.mubr.f32.mxu0 0.0
    %985 = vmatmul.mubr.f32.gmra.mrb[0].mxu0 %v222
    %v986 = vpop.f32.mrb[0].mxu0
    %v987 = vadd.f32 %v181, %v986
    %v988 = vpop.f32.mrb[0].mxu0
    %989 = vmatprep.mubr.f32.mxu0 0.0
    %990 = vmatmul.mubr.f32.gmra.mrb[0].mxu0 %v225
    %v991 = vpop.f32.mrb[0].mxu0
    %v992 = vadd.f32 %v186, %v991
    %v993 = vpop.f32.mrb[0].mxu0
    %994 = vmatprep.mubr.f32.mxu0 0.0
    %995 = vmatmul.mubr.f32.gmra.mrb[0].mxu0 %v228
    %v996 = vpop.f32.mrb[0].mxu0
    %v997 = vadd.f32 %v191, %v996
    %v998 = vpop.f32.mrb[0].mxu0
    %999 = vdwg.mxu0
    %v1000 = vmax.f32 %v105, 0.0
    %v1001 = vmax.f32 %v106, 0.0
    %v1002 = vmax.f32 %v107, 0.0
    %v1003 = vmax.f32 %v108, 0.0
    %1004 = vmatprep.subr.mxu0 0.0
    %1005 = vmatpush1.msra.mxu0 %v1000
    %1006 = vmatprep.subr.mxu0 0.0
    %1007 = vmatpush1.msra.mxu0 %v1001
    %1008 = vmatprep.subr.mxu0 0.0
    %1009 = vmatpush1.msra.mxu0 %v1002
    %1010 = vmatprep.subr.mxu0 0.0
    %1011 = vmatpush1.msra.mxu0 %v1003
    %1012 = vmatprep.subr.mxu0 0.0
    %1013 = vmatpush1.msra.mxu0 0.0
    %1014 = vmatprep.subr.mxu0 0.0
    %1015 = vmatpush1.msra.mxu0 0.0
    %1016 = vmatprep.subr.mxu0 0.0
    %1017 = vmatpush1.msra.mxu0 0.0
    %1018 = vmatprep.subr.mxu0 0.0
    %1019 = vmatpush1.msra.mxu0 0.0
    %1020 = vmatprep.subr.mxu0 0.0
    %1021 = vmatpush1.msra.mxu0 0.0
    %1022 = vmatprep.subr.mxu0 0.0
    %1023 = vmatpush1.msra.mxu0 0.0
    %1024 = vmatprep.subr.mxu0 0.0
    %1025 = vmatpush1.msra.mxu0 0.0
    %1026 = vmatprep.subr.mxu0 0.0
    %1027 = vmatpush1.msra.mxu0 0.0
    %1028 = vmatprep.subr.mxu0 0.0
    %1029 = vmatpush1.msra.mxu0 0.0
    %1030 = vmatprep.subr.mxu0 0.0
    %1031 = vmatpush1.msra.mxu0 0.0
    %1032 = vmatprep.subr.mxu0 0.0
    %1033 = vmatpush1.msra.mxu0 0.0
    %1034 = vmatprep.subr.mxu0 0.0
    %1035 = vmatpush1.msra.mxu0 0.0
    %1036 = vmatprep.subr.mxu0 0.0
    %1037 = vmatpush1.msra.mxu0 0.0
    %1038 = vmatprep.subr.mxu0 0.0
    %1039 = vmatpush1.msra.mxu0 0.0
    %1040 = vmatprep.subr.mxu0 0.0
    %1041 = vmatpush1.msra.mxu0 0.0
    %1042 = vmatprep.subr.mxu0 0.0
    %1043 = vmatpush1.msra.mxu0 0.0
    %1044 = vmatprep.subr.mxu0 0.0
    %1045 = vmatpush1.msra.mxu0 0.0
    %1046 = vmatprep.subr.mxu0 0.0
    %1047 = vmatpush1.msra.mxu0 0.0
    %1048 = vmatprep.subr.mxu0 0.0
    %1049 = vmatpush1.msra.mxu0 0.0
    %1050 = vmatprep.subr.mxu0 0.0
    %1051 = vmatpush1.msra.mxu0 0.0
    %1052 = vmatprep.subr.mxu0 0.0
    %1053 = vmatpush1.msra.mxu0 0.0
    %1054 = vmatprep.subr.mxu0 0.0
    %1055 = vmatpush1.msra.mxu0 0.0
    %1056 = vmatprep.subr.mxu0 0.0
    %1057 = vmatpush1.msra.mxu0 0.0
    %1058 = vmatprep.subr.mxu0 0.0
    %1059 = vmatpush1.msra.mxu0 0.0
    %1060 = vmatprep.subr.mxu0 0.0
    %1061 = vmatpush1.msra.mxu0 0.0
    %1062 = vmatprep.subr.mxu0 0.0
    %1063 = vmatpush1.msra.mxu0 0.0
    %1064 = vmatprep.subr.mxu0 0.0
    %1065 = vmatpush1.msra.mxu0 0.0
    %1066 = vmatprep.subr.mxu0 0.0
    %1067 = vmatpush1.msra.mxu0 0.0
    %1068 = vmatprep.mubr.f32.mxu0 0.0
    %1069 = vmatmul.mubr.f32.gmra.mrb[0].mxu0 %v195
    %v1070 = vpop.f32.mrb[0].mxu0
    %v1071 = vadd.f32 %v136, %v1070
    %v1072 = vpop.f32.mrb[0].mxu0
    %1073 = vmatprep.mubr.f32.mxu0 0.0
    %1074 = vmatmul.mubr.f32.gmra.mrb[0].mxu0 %v198
    %v1075 = vpop.f32.mrb[0].mxu0
    %v1076 = vadd.f32 %v141, %v1075
    %v1077 = vpop.f32.mrb[0].mxu0
    %1078 = vmatprep.mubr.f32.mxu0 0.0
    %1079 = vmatmul.mubr.f32.gmra.mrb[0].mxu0 %v201
    %v1080 = vpop.f32.mrb[0].mxu0
    %v1081 = vadd.f32 %v146, %v1080
    %v1082 = vpop.f32.mrb[0].mxu0
    %1083 = vmatprep.mubr.f32.mxu0 0.0
    %1084 = vmatmul.mubr.f32.gmra.mrb[0].mxu0 %v204
    %v1085 = vpop.f32.mrb[0].mxu0
    %v1086 = vadd.f32 %v151, %v1085
    %v1087 = vpop.f32.mrb[0].mxu0
    %1088 = vmatprep.mubr.f32.mxu0 0.0
    %1089 = vmatmul.mubr.f32.gmra.mrb[0].mxu0 %v207
    %v1090 = vpop.f32.mrb[0].mxu0
    %v1091 = vadd.f32 %v156, %v1090
    %v1092 = vpop.f32.mrb[0].mxu0
    %1093 = vmatprep.mubr.f32.mxu0 0.0
    %1094 = vmatmul.mubr.f32.gmra.mrb[0].mxu0 %v210
    %v1095 = vpop.f32.mrb[0].mxu0
    %v1096 = vadd.f32 %v161, %v1095
    %v1097 = vpop.f32.mrb[0].mxu0
    %1098 = vmatprep.mubr.f32.mxu0 0.0
    %1099 = vmatmul.mubr.f32.gmra.mrb[0].mxu0 %v213
    %v1100 = vpop.f32.mrb[0].mxu0
    %v1101 = vadd.f32 %v166, %v1100
    %v1102 = vpop.f32.mrb[0].mxu0
    %1103 = vmatprep.mubr.f32.mxu0 0.0
    %1104 = vmatmul.mubr.f32.gmra.mrb[0].mxu0 %v216
    %v1105 = vpop.f32.mrb[0].mxu0
    %v1106 = vadd.f32 %v171, %v1105
    %v1107 = vpop.f32.mrb[0].mxu0
    %1108 = vmatprep.mubr.f32.mxu0 0.0
    %1109 = vmatmul.mubr.f32.gmra.mrb[0].mxu0 %v219
    %v1110 = vpop.f32.mrb[0].mxu0
    %v1111 = vadd.f32 %v176, %v1110
    %v1112 = vpop.f32.mrb[0].mxu0
    %1113 = vmatprep.mubr.f32.mxu0 0.0
    %1114 = vmatmul.mubr.f32.gmra.mrb[0].mxu0 %v222
    %v1115 = vpop.f32.mrb[0].mxu0
    %v1116 = vadd.f32 %v181, %v1115
    %v1117 = vpop.f32.mrb[0].mxu0
    %1118 = vmatprep.mubr.f32.mxu0 0.0
    %1119 = vmatmul.mubr.f32.gmra.mrb[0].mxu0 %v225
    %v1120 = vpop.f32.mrb[0].mxu0
    %v1121 = vadd.f32 %v186, %v1120
    %v1122 = vpop.f32.mrb[0].mxu0
    %1123 = vmatprep.mubr.f32.mxu0 0.0
    %1124 = vmatmul.mubr.f32.gmra.mrb[0].mxu0 %v228
    %v1125 = vpop.f32.mrb[0].mxu0
    %v1126 = vadd.f32 %v191, %v1125
    %v1127 = vpop.f32.mrb[0].mxu0
    %1128 = vdwg.mxu0
    %v1129 = vmax.f32 %v109, 0.0
    %v1130 = vmax.f32 %v110, 0.0
    %v1131 = vmax.f32 %v111, 0.0
    %v1132 = vmax.f32 %v112, 0.0
    %1133 = vmatprep.subr.mxu0 0.0
    %1134 = vmatpush1.msra.mxu0 %v1129
    %1135 = vmatprep.subr.mxu0 0.0
    %1136 = vmatpush1.msra.mxu0 %v1130
    %1137 = vmatprep.subr.mxu0 0.0
    %1138 = vmatpush1.msra.mxu0 %v1131
    %1139 = vmatprep.subr.mxu0 0.0
    %1140 = vmatpush1.msra.mxu0 %v1132
    %1141 = vmatprep.subr.mxu0 0.0
    %1142 = vmatpush1.msra.mxu0 0.0
    %1143 = vmatprep.subr.mxu0 0.0
    %1144 = vmatpush1.msra.mxu0 0.0
    %1145 = vmatprep.subr.mxu0 0.0
    %1146 = vmatpush1.msra.mxu0 0.0
    %1147 = vmatprep.subr.mxu0 0.0
    %1148 = vmatpush1.msra.mxu0 0.0
    %1149 = vmatprep.subr.mxu0 0.0
    %1150 = vmatpush1.msra.mxu0 0.0
    %1151 = vmatprep.subr.mxu0 0.0
    %1152 = vmatpush1.msra.mxu0 0.0
    %1153 = vmatprep.subr.mxu0 0.0
    %1154 = vmatpush1.msra.mxu0 0.0
    %1155 = vmatprep.subr.mxu0 0.0
    %1156 = vmatpush1.msra.mxu0 0.0
    %1157 = vmatprep.subr.mxu0 0.0
    %1158 = vmatpush1.msra.mxu0 0.0
    %1159 = vmatprep.subr.mxu0 0.0
    %1160 = vmatpush1.msra.mxu0 0.0
    %1161 = vmatprep.subr.mxu0 0.0
    %1162 = vmatpush1.msra.mxu0 0.0
    %1163 = vmatprep.subr.mxu0 0.0
    %1164 = vmatpush1.msra.mxu0 0.0
    %1165 = vmatprep.subr.mxu0 0.0
    %1166 = vmatpush1.msra.mxu0 0.0
    %1167 = vmatprep.subr.mxu0 0.0
    %1168 = vmatpush1.msra.mxu0 0.0
    %1169 = vmatprep.subr.mxu0 0.0
    %1170 = vmatpush1.msra.mxu0 0.0
    %1171 = vmatprep.subr.mxu0 0.0
    %1172 = vmatpush1.msra.mxu0 0.0
    %1173 = vmatprep.subr.mxu0 0.0
    %1174 = vmatpush1.msra.mxu0 0.0
    %1175 = vmatprep.subr.mxu0 0.0
    %1176 = vmatpush1.msra.mxu0 0.0
    %1177 = vmatprep.subr.mxu0 0.0
    %1178 = vmatpush1.msra.mxu0 0.0
    %1179 = vmatprep.subr.mxu0 0.0
    %1180 = vmatpush1.msra.mxu0 0.0
    %1181 = vmatprep.subr.mxu0 0.0
    %1182 = vmatpush1.msra.mxu0 0.0
    %1183 = vmatprep.subr.mxu0 0.0
    %1184 = vmatpush1.msra.mxu0 0.0
    %1185 = vmatprep.subr.mxu0 0.0
    %1186 = vmatpush1.msra.mxu0 0.0
    %1187 = vmatprep.subr.mxu0 0.0
    %1188 = vmatpush1.msra.mxu0 0.0
    %1189 = vmatprep.subr.mxu0 0.0
    %1190 = vmatpush1.msra.mxu0 0.0
    %1191 = vmatprep.subr.mxu0 0.0
    %1192 = vmatpush1.msra.mxu0 0.0
    %1193 = vmatprep.subr.mxu0 0.0
    %1194 = vmatpush1.msra.mxu0 0.0
    %1195 = vmatprep.subr.mxu0 0.0
    %1196 = vmatpush1.msra.mxu0 0.0
    %1197 = vmatprep.mubr.f32.mxu0 0.0
    %1198 = vmatmul.mubr.f32.gmra.mrb[0].mxu0 %v195
    %v1199 = vpop.f32.mrb[0].mxu0
    %v1200 = vadd.f32 %v136, %v1199
    %v1201 = vpop.f32.mrb[0].mxu0
    %1202 = vmatprep.mubr.f32.mxu0 0.0
    %1203 = vmatmul.mubr.f32.gmra.mrb[0].mxu0 %v198
    %v1204 = vpop.f32.mrb[0].mxu0
    %v1205 = vadd.f32 %v141, %v1204
    %v1206 = vpop.f32.mrb[0].mxu0
    %1207 = vmatprep.mubr.f32.mxu0 0.0
    %1208 = vmatmul.mubr.f32.gmra.mrb[0].mxu0 %v201
    %v1209 = vpop.f32.mrb[0].mxu0
    %v1210 = vadd.f32 %v146, %v1209
    %v1211 = vpop.f32.mrb[0].mxu0
    %1212 = vmatprep.mubr.f32.mxu0 0.0
    %1213 = vmatmul.mubr.f32.gmra.mrb[0].mxu0 %v204
    %v1214 = vpop.f32.mrb[0].mxu0
    %v1215 = vadd.f32 %v151, %v1214
    %v1216 = vpop.f32.mrb[0].mxu0
    %1217 = vmatprep.mubr.f32.mxu0 0.0
    %1218 = vmatmul.mubr.f32.gmra.mrb[0].mxu0 %v207
    %v1219 = vpop.f32.mrb[0].mxu0
    %v1220 = vadd.f32 %v156, %v1219
    %v1221 = vpop.f32.mrb[0].mxu0
    %1222 = vmatprep.mubr.f32.mxu0 0.0
    %1223 = vmatmul.mubr.f32.gmra.mrb[0].mxu0 %v210
    %v1224 = vpop.f32.mrb[0].mxu0
    %v1225 = vadd.f32 %v161, %v1224
    %v1226 = vpop.f32.mrb[0].mxu0
    %1227 = vmatprep.mubr.f32.mxu0 0.0
    %1228 = vmatmul.mubr.f32.gmra.mrb[0].mxu0 %v213
    %v1229 = vpop.f32.mrb[0].mxu0
    %v1230 = vadd.f32 %v166, %v1229
    %v1231 = vpop.f32.mrb[0].mxu0
    %1232 = vmatprep.mubr.f32.mxu0 0.0
    %1233 = vmatmul.mubr.f32.gmra.mrb[0].mxu0 %v216
    %v1234 = vpop.f32.mrb[0].mxu0
    %v1235 = vadd.f32 %v171, %v1234
    %v1236 = vpop.f32.mrb[0].mxu0
    %1237 = vmatprep.mubr.f32.mxu0 0.0
    %1238 = vmatmul.mubr.f32.gmra.mrb[0].mxu0 %v219
    %v1239 = vpop.f32.mrb[0].mxu0
    %v1240 = vadd.f32 %v176, %v1239
    %v1241 = vpop.f32.mrb[0].mxu0
    %1242 = vmatprep.mubr.f32.mxu0 0.0
    %1243 = vmatmul.mubr.f32.gmra.mrb[0].mxu0 %v222
    %v1244 = vpop.f32.mrb[0].mxu0
    %v1245 = vadd.f32 %v181, %v1244
    %v1246 = vpop.f32.mrb[0].mxu0
    %1247 = vmatprep.mubr.f32.mxu0 0.0
    %1248 = vmatmul.mubr.f32.gmra.mrb[0].mxu0 %v225
    %v1249 = vpop.f32.mrb[0].mxu0
    %v1250 = vadd.f32 %v186, %v1249
    %v1251 = vpop.f32.mrb[0].mxu0
    %1252 = vmatprep.mubr.f32.mxu0 0.0
    %1253 = vmatmul.mubr.f32.gmra.mrb[0].mxu0 %v228
    %v1254 = vpop.f32.mrb[0].mxu0
    %v1255 = vadd.f32 %v191, %v1254
    %v1256 = vpop.f32.mrb[0].mxu0
    %1257 = vdwg.mxu0
    %v1258 = vmul.f32 %v297, %v317
    %v1259 = vmul.f32 %v302, %v322
    %v1260 = vmul.f32 %v307, %v327
    %v1261 = vmul.f32 %v312, %v332
    %v1262 = vmul.f32 %v426, %v317
    %v1263 = vmul.f32 %v431, %v322
    %v1264 = vmul.f32 %v436, %v327
    %v1265 = vmul.f32 %v441, %v332
    %v1266 = vmul.f32 %v555, %v317
    %v1267 = vmul.f32 %v560, %v322
    %v1268 = vmul.f32 %v565, %v327
    %v1269 = vmul.f32 %v570, %v332
    %v1270 = vmul.f32 %v684, %v317
    %v1271 = vmul.f32 %v689, %v322
    %v1272 = vmul.f32 %v694, %v327
    %v1273 = vmul.f32 %v699, %v332
    %v1274 = vmul.f32 %v813, %v317
    %v1275 = vmul.f32 %v818, %v322
    %v1276 = vmul.f32 %v823, %v327
    %v1277 = vmul.f32 %v828, %v332
    %v1278 = vmul.f32 %v942, %v317
    %v1279 = vmul.f32 %v947, %v322
    %v1280 = vmul.f32 %v952, %v327
    %v1281 = vmul.f32 %v957, %v332
    %v1282 = vmul.f32 %v1071, %v317
    %v1283 = vmul.f32 %v1076, %v322
    %v1284 = vmul.f32 %v1081, %v327
    %v1285 = vmul.f32 %v1086, %v332
    %v1286 = vmul.f32 %v1200, %v317
    %v1287 = vmul.f32 %v1205, %v322
    %v1288 = vmul.f32 %v1210, %v327
    %v1289 = vmul.f32 %v1215, %v332
    %v1290 = vadd.f32 %v1258, %v1260
    %v1291 = vadd.f32 %v1259, %v1261
    %v1292 = vadd.f32 %v1262, %v1264
    %v1293 = vadd.f32 %v1263, %v1265
    %v1294 = vadd.f32 %v1266, %v1268
    %v1295 = vadd.f32 %v1267, %v1269
    %v1296 = vadd.f32 %v1270, %v1272
    %v1297 = vadd.f32 %v1271, %v1273
    %v1298 = vadd.f32 %v1274, %v1276
    %v1299 = vadd.f32 %v1275, %v1277
    %v1300 = vadd.f32 %v1278, %v1280
    %v1301 = vadd.f32 %v1279, %v1281
    %v1302 = vadd.f32 %v1282, %v1284
    %v1303 = vadd.f32 %v1283, %v1285
    %v1304 = vadd.f32 %v1286, %v1288
    %v1305 = vadd.f32 %v1287, %v1289
    %v1306 = vadd.f32 %v1290, %v1291
    %v1307 = vadd.f32 %v1292, %v1293
    %v1308 = vadd.f32 %v1294, %v1295
    %v1309 = vadd.f32 %v1296, %v1297
    %v1310 = vadd.f32 %v1298, %v1299
    %v1311 = vadd.f32 %v1300, %v1301
    %v1312 = vadd.f32 %v1302, %v1303
    %v1313 = vadd.f32 %v1304, %v1305
    %v1314 = vrot.slane %v1306, 4
    %v1315 = vadd.f32 %v1306, %v1314
    %v1316 = vrot.slane %v1315, 2
    %v1317 = vadd.f32 %v1315, %v1316
    %v1318 = vrot.slane %v1317, 1
    %v1319 = vadd.f32 %v1317, %v1318
    %v1320 = vrot.slane %v1307, 4
    %v1321 = vadd.f32 %v1307, %v1320
    %v1322 = vrot.slane %v1321, 2
    %v1323 = vadd.f32 %v1321, %v1322
    %v1324 = vrot.slane %v1323, 1
    %v1325 = vadd.f32 %v1323, %v1324
    %v1326 = vrot.slane %v1308, 4
    %v1327 = vadd.f32 %v1308, %v1326
    %v1328 = vrot.slane %v1327, 2
    %v1329 = vadd.f32 %v1327, %v1328
    %v1330 = vrot.slane %v1329, 1
    %v1331 = vadd.f32 %v1329, %v1330
    %v1332 = vrot.slane %v1309, 4
    %v1333 = vadd.f32 %v1309, %v1332
    %v1334 = vrot.slane %v1333, 2
    %v1335 = vadd.f32 %v1333, %v1334
    %v1336 = vrot.slane %v1335, 1
    %v1337 = vadd.f32 %v1335, %v1336
    %v1338 = vrot.slane %v1310, 4
    %v1339 = vadd.f32 %v1310, %v1338
    %v1340 = vrot.slane %v1339, 2
    %v1341 = vadd.f32 %v1339, %v1340
    %v1342 = vrot.slane %v1341, 1
    %v1343 = vadd.f32 %v1341, %v1342
    %v1344 = vrot.slane %v1311, 4
    %v1345 = vadd.f32 %v1311, %v1344
    %v1346 = vrot.slane %v1345, 2
    %v1347 = vadd.f32 %v1345, %v1346
    %v1348 = vrot.slane %v1347, 1
    %v1349 = vadd.f32 %v1347, %v1348
    %v1350 = vrot.slane %v1312, 4
    %v1351 = vadd.f32 %v1312, %v1350
    %v1352 = vrot.slane %v1351, 2
    %v1353 = vadd.f32 %v1351, %v1352
    %v1354 = vrot.slane %v1353, 1
    %v1355 = vadd.f32 %v1353, %v1354
    %v1356 = vrot.slane %v1313, 4
    %v1357 = vadd.f32 %v1313, %v1356
    %v1358 = vrot.slane %v1357, 2
    %v1359 = vadd.f32 %v1357, %v1358
    %v1360 = vrot.slane %v1359, 1
    %v1361 = vadd.f32 %v1359, %v1360
    %v1362 = vmul.f32 %v297, %v446
    %v1363 = vmul.f32 %v302, %v451
    %v1364 = vmul.f32 %v307, %v456
    %v1365 = vmul.f32 %v312, %v461
    %v1366 = vmul.f32 %v426, %v446
    %v1367 = vmul.f32 %v431, %v451
    %v1368 = vmul.f32 %v436, %v456
    %v1369 = vmul.f32 %v441, %v461
    %v1370 = vmul.f32 %v555, %v446
    %v1371 = vmul.f32 %v560, %v451
    %v1372 = vmul.f32 %v565, %v456
    %v1373 = vmul.f32 %v570, %v461
    %v1374 = vmul.f32 %v684, %v446
    %v1375 = vmul.f32 %v689, %v451
    %v1376 = vmul.f32 %v694, %v456
    %v1377 = vmul.f32 %v699, %v461
    %v1378 = vmul.f32 %v813, %v446
    %v1379 = vmul.f32 %v818, %v451
    %v1380 = vmul.f32 %v823, %v456
    %v1381 = vmul.f32 %v828, %v461
    %v1382 = vmul.f32 %v942, %v446
    %v1383 = vmul.f32 %v947, %v451
    %v1384 = vmul.f32 %v952, %v456
    %v1385 = vmul.f32 %v957, %v461
    %v1386 = vmul.f32 %v1071, %v446
    %v1387 = vmul.f32 %v1076, %v451
    %v1388 = vmul.f32 %v1081, %v456
    %v1389 = vmul.f32 %v1086, %v461
    %v1390 = vmul.f32 %v1200, %v446
    %v1391 = vmul.f32 %v1205, %v451
    %v1392 = vmul.f32 %v1210, %v456
    %v1393 = vmul.f32 %v1215, %v461
    %v1394 = vadd.f32 %v1362, %v1364
    %v1395 = vadd.f32 %v1363, %v1365
    %v1396 = vadd.f32 %v1366, %v1368
    %v1397 = vadd.f32 %v1367, %v1369
    %v1398 = vadd.f32 %v1370, %v1372
    %v1399 = vadd.f32 %v1371, %v1373
    %v1400 = vadd.f32 %v1374, %v1376
    %v1401 = vadd.f32 %v1375, %v1377
    %v1402 = vadd.f32 %v1378, %v1380
    %v1403 = vadd.f32 %v1379, %v1381
    %v1404 = vadd.f32 %v1382, %v1384
    %v1405 = vadd.f32 %v1383, %v1385
    %v1406 = vadd.f32 %v1386, %v1388
    %v1407 = vadd.f32 %v1387, %v1389
    %v1408 = vadd.f32 %v1390, %v1392
    %v1409 = vadd.f32 %v1391, %v1393
    %v1410 = vadd.f32 %v1394, %v1395
    %v1411 = vadd.f32 %v1396, %v1397
    %v1412 = vadd.f32 %v1398, %v1399
    %v1413 = vadd.f32 %v1400, %v1401
    %v1414 = vadd.f32 %v1402, %v1403
    %v1415 = vadd.f32 %v1404, %v1405
    %v1416 = vadd.f32 %v1406, %v1407
    %v1417 = vadd.f32 %v1408, %v1409
    %v1418 = vrot.slane %v1410, 4
    %v1419 = vadd.f32 %v1410, %v1418
    %v1420 = vrot.slane %v1419, 2
    %v1421 = vadd.f32 %v1419, %v1420
    %v1422 = vrot.slane %v1421, 1
    %v1423 = vadd.f32 %v1421, %v1422
    %v1424 = vrot.slane %v1411, 4
    %v1425 = vadd.f32 %v1411, %v1424
    %v1426 = vrot.slane %v1425, 2
    %v1427 = vadd.f32 %v1425, %v1426
    %v1428 = vrot.slane %v1427, 1
    %v1429 = vadd.f32 %v1427, %v1428
    %v1430 = vrot.slane %v1412, 4
    %v1431 = vadd.f32 %v1412, %v1430
    %v1432 = vrot.slane %v1431, 2
    %v1433 = vadd.f32 %v1431, %v1432
    %v1434 = vrot.slane %v1433, 1
    %v1435 = vadd.f32 %v1433, %v1434
    %v1436 = vrot.slane %v1413, 4
    %v1437 = vadd.f32 %v1413, %v1436
    %v1438 = vrot.slane %v1437, 2
    %v1439 = vadd.f32 %v1437, %v1438
    %v1440 = vrot.slane %v1439, 1
    %v1441 = vadd.f32 %v1439, %v1440
    %v1442 = vrot.slane %v1414, 4
    %v1443 = vadd.f32 %v1414, %v1442
    %v1444 = vrot.slane %v1443, 2
    %v1445 = vadd.f32 %v1443, %v1444
    %v1446 = vrot.slane %v1445, 1
    %v1447 = vadd.f32 %v1445, %v1446
    %v1448 = vrot.slane %v1415, 4
    %v1449 = vadd.f32 %v1415, %v1448
    %v1450 = vrot.slane %v1449, 2
    %v1451 = vadd.f32 %v1449, %v1450
    %v1452 = vrot.slane %v1451, 1
    %v1453 = vadd.f32 %v1451, %v1452
    %v1454 = vrot.slane %v1416, 4
    %v1455 = vadd.f32 %v1416, %v1454
    %v1456 = vrot.slane %v1455, 2
    %v1457 = vadd.f32 %v1455, %v1456
    %v1458 = vrot.slane %v1457, 1
    %v1459 = vadd.f32 %v1457, %v1458
    %v1460 = vrot.slane %v1417, 4
    %v1461 = vadd.f32 %v1417, %v1460
    %v1462 = vrot.slane %v1461, 2
    %v1463 = vadd.f32 %v1461, %v1462
    %v1464 = vrot.slane %v1463, 1
    %v1465 = vadd.f32 %v1463, %v1464
    %v1466 = vmul.f32 %v297, %v575
    %v1467 = vmul.f32 %v302, %v580
    %v1468 = vmul.f32 %v307, %v585
    %v1469 = vmul.f32 %v312, %v590
    %v1470 = vmul.f32 %v426, %v575
    %v1471 = vmul.f32 %v431, %v580
    %v1472 = vmul.f32 %v436, %v585
    %v1473 = vmul.f32 %v441, %v590
    %v1474 = vmul.f32 %v555, %v575
    %v1475 = vmul.f32 %v560, %v580
    %v1476 = vmul.f32 %v565, %v585
    %v1477 = vmul.f32 %v570, %v590
    %v1478 = vmul.f32 %v684, %v575
    %v1479 = vmul.f32 %v689, %v580
    %v1480 = vmul.f32 %v694, %v585
    %v1481 = vmul.f32 %v699, %v590
    %v1482 = vmul.f32 %v813, %v575
    %v1483 = vmul.f32 %v818, %v580
    %v1484 = vmul.f32 %v823, %v585
    %v1485 = vmul.f32 %v828, %v590
    %v1486 = vmul.f32 %v942, %v575
    %v1487 = vmul.f32 %v947, %v580
    %v1488 = vmul.f32 %v952, %v585
    %v1489 = vmul.f32 %v957, %v590
    %v1490 = vmul.f32 %v1071, %v575
    %v1491 = vmul.f32 %v1076, %v580
    %v1492 = vmul.f32 %v1081, %v585
    %v1493 = vmul.f32 %v1086, %v590
    %v1494 = vmul.f32 %v1200, %v575
    %v1495 = vmul.f32 %v1205, %v580
    %v1496 = vmul.f32 %v1210, %v585
    %v1497 = vmul.f32 %v1215, %v590
    %v1498 = vadd.f32 %v1466, %v1468
    %v1499 = vadd.f32 %v1467, %v1469
    %v1500 = vadd.f32 %v1470, %v1472
    %v1501 = vadd.f32 %v1471, %v1473
    %v1502 = vadd.f32 %v1474, %v1476
    %v1503 = vadd.f32 %v1475, %v1477
    %v1504 = vadd.f32 %v1478, %v1480
    %v1505 = vadd.f32 %v1479, %v1481
    %v1506 = vadd.f32 %v1482, %v1484
    %v1507 = vadd.f32 %v1483, %v1485
    %v1508 = vadd.f32 %v1486, %v1488
    %v1509 = vadd.f32 %v1487, %v1489
    %v1510 = vadd.f32 %v1490, %v1492
    %v1511 = vadd.f32 %v1491, %v1493
    %v1512 = vadd.f32 %v1494, %v1496
    %v1513 = vadd.f32 %v1495, %v1497
    %v1514 = vadd.f32 %v1498, %v1499
    %v1515 = vadd.f32 %v1500, %v1501
    %v1516 = vadd.f32 %v1502, %v1503
    %v1517 = vadd.f32 %v1504, %v1505
    %v1518 = vadd.f32 %v1506, %v1507
    %v1519 = vadd.f32 %v1508, %v1509
    %v1520 = vadd.f32 %v1510, %v1511
    %v1521 = vadd.f32 %v1512, %v1513
    %v1522 = vrot.slane %v1514, 4
    %v1523 = vadd.f32 %v1514, %v1522
    %v1524 = vrot.slane %v1523, 2
    %v1525 = vadd.f32 %v1523, %v1524
    %v1526 = vrot.slane %v1525, 1
    %v1527 = vadd.f32 %v1525, %v1526
    %v1528 = vrot.slane %v1515, 4
    %v1529 = vadd.f32 %v1515, %v1528
    %v1530 = vrot.slane %v1529, 2
    %v1531 = vadd.f32 %v1529, %v1530
    %v1532 = vrot.slane %v1531, 1
    %v1533 = vadd.f32 %v1531, %v1532
    %v1534 = vrot.slane %v1516, 4
    %v1535 = vadd.f32 %v1516, %v1534
    %v1536 = vrot.slane %v1535, 2
    %v1537 = vadd.f32 %v1535, %v1536
    %v1538 = vrot.slane %v1537, 1
    %v1539 = vadd.f32 %v1537, %v1538
    %v1540 = vrot.slane %v1517, 4
    %v1541 = vadd.f32 %v1517, %v1540
    %v1542 = vrot.slane %v1541, 2
    %v1543 = vadd.f32 %v1541, %v1542
    %v1544 = vrot.slane %v1543, 1
    %v1545 = vadd.f32 %v1543, %v1544
    %v1546 = vrot.slane %v1518, 4
    %v1547 = vadd.f32 %v1518, %v1546
    %v1548 = vrot.slane %v1547, 2
    %v1549 = vadd.f32 %v1547, %v1548
    %v1550 = vrot.slane %v1549, 1
    %v1551 = vadd.f32 %v1549, %v1550
    %v1552 = vrot.slane %v1519, 4
    %v1553 = vadd.f32 %v1519, %v1552
    %v1554 = vrot.slane %v1553, 2
    %v1555 = vadd.f32 %v1553, %v1554
    %v1556 = vrot.slane %v1555, 1
    %v1557 = vadd.f32 %v1555, %v1556
    %v1558 = vrot.slane %v1520, 4
    %v1559 = vadd.f32 %v1520, %v1558
    %v1560 = vrot.slane %v1559, 2
    %v1561 = vadd.f32 %v1559, %v1560
    %v1562 = vrot.slane %v1561, 1
    %v1563 = vadd.f32 %v1561, %v1562
    %v1564 = vrot.slane %v1521, 4
    %v1565 = vadd.f32 %v1521, %v1564
    %v1566 = vrot.slane %v1565, 2
    %v1567 = vadd.f32 %v1565, %v1566
    %v1568 = vrot.slane %v1567, 1
    %v1569 = vadd.f32 %v1567, %v1568
    %v1570 = vmul.f32 %v297, %v704
    %v1571 = vmul.f32 %v302, %v709
    %v1572 = vmul.f32 %v307, %v714
    %v1573 = vmul.f32 %v312, %v719
    %v1574 = vmul.f32 %v426, %v704
    %v1575 = vmul.f32 %v431, %v709
    %v1576 = vmul.f32 %v436, %v714
    %v1577 = vmul.f32 %v441, %v719
    %v1578 = vmul.f32 %v555, %v704
    %v1579 = vmul.f32 %v560, %v709
    %v1580 = vmul.f32 %v565, %v714
    %v1581 = vmul.f32 %v570, %v719
    %v1582 = vmul.f32 %v684, %v704
    %v1583 = vmul.f32 %v689, %v709
    %v1584 = vmul.f32 %v694, %v714
    %v1585 = vmul.f32 %v699, %v719
    %v1586 = vmul.f32 %v813, %v704
    %v1587 = vmul.f32 %v818, %v709
    %v1588 = vmul.f32 %v823, %v714
    %v1589 = vmul.f32 %v828, %v719
    %v1590 = vmul.f32 %v942, %v704
    %v1591 = vmul.f32 %v947, %v709
    %v1592 = vmul.f32 %v952, %v714
    %v1593 = vmul.f32 %v957, %v719
    %v1594 = vmul.f32 %v1071, %v704
    %v1595 = vmul.f32 %v1076, %v709
    %v1596 = vmul.f32 %v1081, %v714
    %v1597 = vmul.f32 %v1086, %v719
    %v1598 = vmul.f32 %v1200, %v704
    %v1599 = vmul.f32 %v1205, %v709
    %v1600 = vmul.f32 %v1210, %v714
    %v1601 = vmul.f32 %v1215, %v719
    %v1602 = vadd.f32 %v1570, %v1572
    %v1603 = vadd.f32 %v1571, %v1573
    %v1604 = vadd.f32 %v1574, %v1576
    %v1605 = vadd.f32 %v1575, %v1577
    %v1606 = vadd.f32 %v1578, %v1580
    %v1607 = vadd.f32 %v1579, %v1581
    %v1608 = vadd.f32 %v1582, %v1584
    %v1609 = vadd.f32 %v1583, %v1585
    %v1610 = vadd.f32 %v1586, %v1588
    %v1611 = vadd.f32 %v1587, %v1589
    %v1612 = vadd.f32 %v1590, %v1592
    %v1613 = vadd.f32 %v1591, %v1593
    %v1614 = vadd.f32 %v1594, %v1596
    %v1615 = vadd.f32 %v1595, %v1597
    %v1616 = vadd.f32 %v1598, %v1600
    %v1617 = vadd.f32 %v1599, %v1601
    %v1618 = vadd.f32 %v1602, %v1603
    %v1619 = vadd.f32 %v1604, %v1605
    %v1620 = vadd.f32 %v1606, %v1607
    %v1621 = vadd.f32 %v1608, %v1609
    %v1622 = vadd.f32 %v1610, %v1611
    %v1623 = vadd.f32 %v1612, %v1613
    %v1624 = vadd.f32 %v1614, %v1615
    %v1625 = vadd.f32 %v1616, %v1617
    %v1626 = vrot.slane %v1618, 4
    %v1627 = vadd.f32 %v1618, %v1626
    %v1628 = vrot.slane %v1627, 2
    %v1629 = vadd.f32 %v1627, %v1628
    %v1630 = vrot.slane %v1629, 1
    %v1631 = vadd.f32 %v1629, %v1630
    %v1632 = vrot.slane %v1619, 4
    %v1633 = vadd.f32 %v1619, %v1632
    %v1634 = vrot.slane %v1633, 2
    %v1635 = vadd.f32 %v1633, %v1634
    %v1636 = vrot.slane %v1635, 1
    %v1637 = vadd.f32 %v1635, %v1636
    %v1638 = vrot.slane %v1620, 4
    %v1639 = vadd.f32 %v1620, %v1638
    %v1640 = vrot.slane %v1639, 2
    %v1641 = vadd.f32 %v1639, %v1640
    %v1642 = vrot.slane %v1641, 1
    %v1643 = vadd.f32 %v1641, %v1642
    %v1644 = vrot.slane %v1621, 4
    %v1645 = vadd.f32 %v1621, %v1644
    %v1646 = vrot.slane %v1645, 2
    %v1647 = vadd.f32 %v1645, %v1646
    %v1648 = vrot.slane %v1647, 1
    %v1649 = vadd.f32 %v1647, %v1648
    %v1650 = vrot.slane %v1622, 4
    %v1651 = vadd.f32 %v1622, %v1650
    %v1652 = vrot.slane %v1651, 2
    %v1653 = vadd.f32 %v1651, %v1652
    %v1654 = vrot.slane %v1653, 1
    %v1655 = vadd.f32 %v1653, %v1654
    %v1656 = vrot.slane %v1623, 4
    %v1657 = vadd.f32 %v1623, %v1656
    %v1658 = vrot.slane %v1657, 2
    %v1659 = vadd.f32 %v1657, %v1658
    %v1660 = vrot.slane %v1659, 1
    %v1661 = vadd.f32 %v1659, %v1660
    %v1662 = vrot.slane %v1624, 4
    %v1663 = vadd.f32 %v1624, %v1662
    %v1664 = vrot.slane %v1663, 2
    %v1665 = vadd.f32 %v1663, %v1664
    %v1666 = vrot.slane %v1665, 1
    %v1667 = vadd.f32 %v1665, %v1666
    %v1668 = vrot.slane %v1625, 4
    %v1669 = vadd.f32 %v1625, %v1668
    %v1670 = vrot.slane %v1669, 2
    %v1671 = vadd.f32 %v1669, %v1670
    %v1672 = vrot.slane %v1671, 1
    %v1673 = vadd.f32 %v1671, %v1672
    %v1674 = vmul.f32 %v297, %v833
    %v1675 = vmul.f32 %v302, %v838
    %v1676 = vmul.f32 %v307, %v843
    %v1677 = vmul.f32 %v312, %v848
    %v1678 = vmul.f32 %v426, %v833
    %v1679 = vmul.f32 %v431, %v838
    %v1680 = vmul.f32 %v436, %v843
    %v1681 = vmul.f32 %v441, %v848
    %v1682 = vmul.f32 %v555, %v833
    %v1683 = vmul.f32 %v560, %v838
    %v1684 = vmul.f32 %v565, %v843
    %v1685 = vmul.f32 %v570, %v848
    %v1686 = vmul.f32 %v684, %v833
    %v1687 = vmul.f32 %v689, %v838
    %v1688 = vmul.f32 %v694, %v843
    %v1689 = vmul.f32 %v699, %v848
    %v1690 = vmul.f32 %v813, %v833
    %v1691 = vmul.f32 %v818, %v838
    %v1692 = vmul.f32 %v823, %v843
    %v1693 = vmul.f32 %v828, %v848
    %v1694 = vmul.f32 %v942, %v833
    %v1695 = vmul.f32 %v947, %v838
    %v1696 = vmul.f32 %v952, %v843
    %v1697 = vmul.f32 %v957, %v848
    %v1698 = vmul.f32 %v1071, %v833
    %v1699 = vmul.f32 %v1076, %v838
    %v1700 = vmul.f32 %v1081, %v843
    %v1701 = vmul.f32 %v1086, %v848
    %v1702 = vmul.f32 %v1200, %v833
    %v1703 = vmul.f32 %v1205, %v838
    %v1704 = vmul.f32 %v1210, %v843
    %v1705 = vmul.f32 %v1215, %v848
    %v1706 = vadd.f32 %v1674, %v1676
    %v1707 = vadd.f32 %v1675, %v1677
    %v1708 = vadd.f32 %v1678, %v1680
    %v1709 = vadd.f32 %v1679, %v1681
    %v1710 = vadd.f32 %v1682, %v1684
    %v1711 = vadd.f32 %v1683, %v1685
    %v1712 = vadd.f32 %v1686, %v1688
    %v1713 = vadd.f32 %v1687, %v1689
    %v1714 = vadd.f32 %v1690, %v1692
    %v1715 = vadd.f32 %v1691, %v1693
    %v1716 = vadd.f32 %v1694, %v1696
    %v1717 = vadd.f32 %v1695, %v1697
    %v1718 = vadd.f32 %v1698, %v1700
    %v1719 = vadd.f32 %v1699, %v1701
    %v1720 = vadd.f32 %v1702, %v1704
    %v1721 = vadd.f32 %v1703, %v1705
    %v1722 = vadd.f32 %v1706, %v1707
    %v1723 = vadd.f32 %v1708, %v1709
    %v1724 = vadd.f32 %v1710, %v1711
    %v1725 = vadd.f32 %v1712, %v1713
    %v1726 = vadd.f32 %v1714, %v1715
    %v1727 = vadd.f32 %v1716, %v1717
    %v1728 = vadd.f32 %v1718, %v1719
    %v1729 = vadd.f32 %v1720, %v1721
    %v1730 = vrot.slane %v1722, 4
    %v1731 = vadd.f32 %v1722, %v1730
    %v1732 = vrot.slane %v1731, 2
    %v1733 = vadd.f32 %v1731, %v1732
    %v1734 = vrot.slane %v1733, 1
    %v1735 = vadd.f32 %v1733, %v1734
    %v1736 = vrot.slane %v1723, 4
    %v1737 = vadd.f32 %v1723, %v1736
    %v1738 = vrot.slane %v1737, 2
    %v1739 = vadd.f32 %v1737, %v1738
    %v1740 = vrot.slane %v1739, 1
    %v1741 = vadd.f32 %v1739, %v1740
    %v1742 = vrot.slane %v1724, 4
    %v1743 = vadd.f32 %v1724, %v1742
    %v1744 = vrot.slane %v1743, 2
    %v1745 = vadd.f32 %v1743, %v1744
    %v1746 = vrot.slane %v1745, 1
    %v1747 = vadd.f32 %v1745, %v1746
    %v1748 = vrot.slane %v1725, 4
    %v1749 = vadd.f32 %v1725, %v1748
    %v1750 = vrot.slane %v1749, 2
    %v1751 = vadd.f32 %v1749, %v1750
    %v1752 = vrot.slane %v1751, 1
    %v1753 = vadd.f32 %v1751, %v1752
    %v1754 = vrot.slane %v1726, 4
    %v1755 = vadd.f32 %v1726, %v1754
    %v1756 = vrot.slane %v1755, 2
    %v1757 = vadd.f32 %v1755, %v1756
    %v1758 = vrot.slane %v1757, 1
    %v1759 = vadd.f32 %v1757, %v1758
    %v1760 = vrot.slane %v1727, 4
    %v1761 = vadd.f32 %v1727, %v1760
    %v1762 = vrot.slane %v1761, 2
    %v1763 = vadd.f32 %v1761, %v1762
    %v1764 = vrot.slane %v1763, 1
    %v1765 = vadd.f32 %v1763, %v1764
    %v1766 = vrot.slane %v1728, 4
    %v1767 = vadd.f32 %v1728, %v1766
    %v1768 = vrot.slane %v1767, 2
    %v1769 = vadd.f32 %v1767, %v1768
    %v1770 = vrot.slane %v1769, 1
    %v1771 = vadd.f32 %v1769, %v1770
    %v1772 = vrot.slane %v1729, 4
    %v1773 = vadd.f32 %v1729, %v1772
    %v1774 = vrot.slane %v1773, 2
    %v1775 = vadd.f32 %v1773, %v1774
    %v1776 = vrot.slane %v1775, 1
    %v1777 = vadd.f32 %v1775, %v1776
    %v1778 = vmul.f32 %v297, %v962
    %v1779 = vmul.f32 %v302, %v967
    %v1780 = vmul.f32 %v307, %v972
    %v1781 = vmul.f32 %v312, %v977
    %v1782 = vmul.f32 %v426, %v962
    %v1783 = vmul.f32 %v431, %v967
    %v1784 = vmul.f32 %v436, %v972
    %v1785 = vmul.f32 %v441, %v977
    %v1786 = vmul.f32 %v555, %v962
    %v1787 = vmul.f32 %v560, %v967
    %v1788 = vmul.f32 %v565, %v972
    %v1789 = vmul.f32 %v570, %v977
    %v1790 = vmul.f32 %v684, %v962
    %v1791 = vmul.f32 %v689, %v967
    %v1792 = vmul.f32 %v694, %v972
    %v1793 = vmul.f32 %v699, %v977
    %v1794 = vmul.f32 %v813, %v962
    %v1795 = vmul.f32 %v818, %v967
    %v1796 = vmul.f32 %v823, %v972
    %v1797 = vmul.f32 %v828, %v977
    %v1798 = vmul.f32 %v942, %v962
    %v1799 = vmul.f32 %v947, %v967
    %v1800 = vmul.f32 %v952, %v972
    %v1801 = vmul.f32 %v957, %v977
    %v1802 = vmul.f32 %v1071, %v962
    %v1803 = vmul.f32 %v1076, %v967
    %v1804 = vmul.f32 %v1081, %v972
    %v1805 = vmul.f32 %v1086, %v977
    %v1806 = vmul.f32 %v1200, %v962
    %v1807 = vmul.f32 %v1205, %v967
    %v1808 = vmul.f32 %v1210, %v972
    %v1809 = vmul.f32 %v1215, %v977
    %v1810 = vadd.f32 %v1778, %v1780
    %v1811 = vadd.f32 %v1779, %v1781
    %v1812 = vadd.f32 %v1782, %v1784
    %v1813 = vadd.f32 %v1783, %v1785
    %v1814 = vadd.f32 %v1786, %v1788
    %v1815 = vadd.f32 %v1787, %v1789
    %v1816 = vadd.f32 %v1790, %v1792
    %v1817 = vadd.f32 %v1791, %v1793
    %v1818 = vadd.f32 %v1794, %v1796
    %v1819 = vadd.f32 %v1795, %v1797
    %v1820 = vadd.f32 %v1798, %v1800
    %v1821 = vadd.f32 %v1799, %v1801
    %v1822 = vadd.f32 %v1802, %v1804
    %v1823 = vadd.f32 %v1803, %v1805
    %v1824 = vadd.f32 %v1806, %v1808
    %v1825 = vadd.f32 %v1807, %v1809
    %v1826 = vadd.f32 %v1810, %v1811
    %v1827 = vadd.f32 %v1812, %v1813
    %v1828 = vadd.f32 %v1814, %v1815
    %v1829 = vadd.f32 %v1816, %v1817
    %v1830 = vadd.f32 %v1818, %v1819
    %v1831 = vadd.f32 %v1820, %v1821
    %v1832 = vadd.f32 %v1822, %v1823
    %v1833 = vadd.f32 %v1824, %v1825
    %v1834 = vrot.slane %v1826, 4
    %v1835 = vadd.f32 %v1826, %v1834
    %v1836 = vrot.slane %v1835, 2
    %v1837 = vadd.f32 %v1835, %v1836
    %v1838 = vrot.slane %v1837, 1
    %v1839 = vadd.f32 %v1837, %v1838
    %v1840 = vrot.slane %v1827, 4
    %v1841 = vadd.f32 %v1827, %v1840
    %v1842 = vrot.slane %v1841, 2
    %v1843 = vadd.f32 %v1841, %v1842
    %v1844 = vrot.slane %v1843, 1
    %v1845 = vadd.f32 %v1843, %v1844
    %v1846 = vrot.slane %v1828, 4
    %v1847 = vadd.f32 %v1828, %v1846
    %v1848 = vrot.slane %v1847, 2
    %v1849 = vadd.f32 %v1847, %v1848
    %v1850 = vrot.slane %v1849, 1
    %v1851 = vadd.f32 %v1849, %v1850
    %v1852 = vrot.slane %v1829, 4
    %v1853 = vadd.f32 %v1829, %v1852
    %v1854 = vrot.slane %v1853, 2
    %v1855 = vadd.f32 %v1853, %v1854
    %v1856 = vrot.slane %v1855, 1
    %v1857 = vadd.f32 %v1855, %v1856
    %v1858 = vrot.slane %v1830, 4
    %v1859 = vadd.f32 %v1830, %v1858
    %v1860 = vrot.slane %v1859, 2
    %v1861 = vadd.f32 %v1859, %v1860
    %v1862 = vrot.slane %v1861, 1
    %v1863 = vadd.f32 %v1861, %v1862
    %v1864 = vrot.slane %v1831, 4
    %v1865 = vadd.f32 %v1831, %v1864
    %v1866 = vrot.slane %v1865, 2
    %v1867 = vadd.f32 %v1865, %v1866
    %v1868 = vrot.slane %v1867, 1
    %v1869 = vadd.f32 %v1867, %v1868
    %v1870 = vrot.slane %v1832, 4
    %v1871 = vadd.f32 %v1832, %v1870
    %v1872 = vrot.slane %v1871, 2
    %v1873 = vadd.f32 %v1871, %v1872
    %v1874 = vrot.slane %v1873, 1
    %v1875 = vadd.f32 %v1873, %v1874
    %v1876 = vrot.slane %v1833, 4
    %v1877 = vadd.f32 %v1833, %v1876
    %v1878 = vrot.slane %v1877, 2
    %v1879 = vadd.f32 %v1877, %v1878
    %v1880 = vrot.slane %v1879, 1
    %v1881 = vadd.f32 %v1879, %v1880
    %v1882 = vmul.f32 %v297, %v1091
    %v1883 = vmul.f32 %v302, %v1096
    %v1884 = vmul.f32 %v307, %v1101
    %v1885 = vmul.f32 %v312, %v1106
    %v1886 = vmul.f32 %v426, %v1091
    %v1887 = vmul.f32 %v431, %v1096
    %v1888 = vmul.f32 %v436, %v1101
    %v1889 = vmul.f32 %v441, %v1106
    %v1890 = vmul.f32 %v555, %v1091
    %v1891 = vmul.f32 %v560, %v1096
    %v1892 = vmul.f32 %v565, %v1101
    %v1893 = vmul.f32 %v570, %v1106
    %v1894 = vmul.f32 %v684, %v1091
    %v1895 = vmul.f32 %v689, %v1096
    %v1896 = vmul.f32 %v694, %v1101
    %v1897 = vmul.f32 %v699, %v1106
    %v1898 = vmul.f32 %v813, %v1091
    %v1899 = vmul.f32 %v818, %v1096
    %v1900 = vmul.f32 %v823, %v1101
    %v1901 = vmul.f32 %v828, %v1106
    %v1902 = vmul.f32 %v942, %v1091
    %v1903 = vmul.f32 %v947, %v1096
    %v1904 = vmul.f32 %v952, %v1101
    %v1905 = vmul.f32 %v957, %v1106
    %v1906 = vmul.f32 %v1071, %v1091
    %v1907 = vmul.f32 %v1076, %v1096
    %v1908 = vmul.f32 %v1081, %v1101
    %v1909 = vmul.f32 %v1086, %v1106
    %v1910 = vmul.f32 %v1200, %v1091
    %v1911 = vmul.f32 %v1205, %v1096
    %v1912 = vmul.f32 %v1210, %v1101
    %v1913 = vmul.f32 %v1215, %v1106
    %v1914 = vadd.f32 %v1882, %v1884
    %v1915 = vadd.f32 %v1883, %v1885
    %v1916 = vadd.f32 %v1886, %v1888
    %v1917 = vadd.f32 %v1887, %v1889
    %v1918 = vadd.f32 %v1890, %v1892
    %v1919 = vadd.f32 %v1891, %v1893
    %v1920 = vadd.f32 %v1894, %v1896
    %v1921 = vadd.f32 %v1895, %v1897
    %v1922 = vadd.f32 %v1898, %v1900
    %v1923 = vadd.f32 %v1899, %v1901
    %v1924 = vadd.f32 %v1902, %v1904
    %v1925 = vadd.f32 %v1903, %v1905
    %v1926 = vadd.f32 %v1906, %v1908
    %v1927 = vadd.f32 %v1907, %v1909
    %v1928 = vadd.f32 %v1910, %v1912
    %v1929 = vadd.f32 %v1911, %v1913
    %v1930 = vadd.f32 %v1914, %v1915
    %v1931 = vadd.f32 %v1916, %v1917
    %v1932 = vadd.f32 %v1918, %v1919
    %v1933 = vadd.f32 %v1920, %v1921
    %v1934 = vadd.f32 %v1922, %v1923
    %v1935 = vadd.f32 %v1924, %v1925
    %v1936 = vadd.f32 %v1926, %v1927
    %v1937 = vadd.f32 %v1928, %v1929
    %v1938 = vrot.slane %v1930, 4
    %v1939 = vadd.f32 %v1930, %v1938
    %v1940 = vrot.slane %v1939, 2
    %v1941 = vadd.f32 %v1939, %v1940
    %v1942 = vrot.slane %v1941, 1
    %v1943 = vadd.f32 %v1941, %v1942
    %v1944 = vrot.slane %v1931, 4
    %v1945 = vadd.f32 %v1931, %v1944
    %v1946 = vrot.slane %v1945, 2
    %v1947 = vadd.f32 %v1945, %v1946
    %v1948 = vrot.slane %v1947, 1
    %v1949 = vadd.f32 %v1947, %v1948
    %v1950 = vrot.slane %v1932, 4
    %v1951 = vadd.f32 %v1932, %v1950
    %v1952 = vrot.slane %v1951, 2
    %v1953 = vadd.f32 %v1951, %v1952
    %v1954 = vrot.slane %v1953, 1
    %v1955 = vadd.f32 %v1953, %v1954
    %v1956 = vrot.slane %v1933, 4
    %v1957 = vadd.f32 %v1933, %v1956
    %v1958 = vrot.slane %v1957, 2
    %v1959 = vadd.f32 %v1957, %v1958
    %v1960 = vrot.slane %v1959, 1
    %v1961 = vadd.f32 %v1959, %v1960
    %v1962 = vrot.slane %v1934, 4
    %v1963 = vadd.f32 %v1934, %v1962
    %v1964 = vrot.slane %v1963, 2
    %v1965 = vadd.f32 %v1963, %v1964
    %v1966 = vrot.slane %v1965, 1
    %v1967 = vadd.f32 %v1965, %v1966
    %v1968 = vrot.slane %v1935, 4
    %v1969 = vadd.f32 %v1935, %v1968
    %v1970 = vrot.slane %v1969, 2
    %v1971 = vadd.f32 %v1969, %v1970
    %v1972 = vrot.slane %v1971, 1
    %v1973 = vadd.f32 %v1971, %v1972
    %v1974 = vrot.slane %v1936, 4
    %v1975 = vadd.f32 %v1936, %v1974
    %v1976 = vrot.slane %v1975, 2
    %v1977 = vadd.f32 %v1975, %v1976
    %v1978 = vrot.slane %v1977, 1
    %v1979 = vadd.f32 %v1977, %v1978
    %v1980 = vrot.slane %v1937, 4
    %v1981 = vadd.f32 %v1937, %v1980
    %v1982 = vrot.slane %v1981, 2
    %v1983 = vadd.f32 %v1981, %v1982
    %v1984 = vrot.slane %v1983, 1
    %v1985 = vadd.f32 %v1983, %v1984
    %v1986 = vmul.f32 %v297, %v1220
    %v1987 = vmul.f32 %v302, %v1225
    %v1988 = vmul.f32 %v307, %v1230
    %v1989 = vmul.f32 %v312, %v1235
    %v1990 = vmul.f32 %v426, %v1220
    %v1991 = vmul.f32 %v431, %v1225
    %v1992 = vmul.f32 %v436, %v1230
    %v1993 = vmul.f32 %v441, %v1235
    %v1994 = vmul.f32 %v555, %v1220
    %v1995 = vmul.f32 %v560, %v1225
    %v1996 = vmul.f32 %v565, %v1230
    %v1997 = vmul.f32 %v570, %v1235
    %v1998 = vmul.f32 %v684, %v1220
    %v1999 = vmul.f32 %v689, %v1225
    %v2000 = vmul.f32 %v694, %v1230
    %v2001 = vmul.f32 %v699, %v1235
    %v2002 = vmul.f32 %v813, %v1220
    %v2003 = vmul.f32 %v818, %v1225
    %v2004 = vmul.f32 %v823, %v1230
    %v2005 = vmul.f32 %v828, %v1235
    %v2006 = vmul.f32 %v942, %v1220
    %v2007 = vmul.f32 %v947, %v1225
    %v2008 = vmul.f32 %v952, %v1230
    %v2009 = vmul.f32 %v957, %v1235
    %v2010 = vmul.f32 %v1071, %v1220
    %v2011 = vmul.f32 %v1076, %v1225
    %v2012 = vmul.f32 %v1081, %v1230
    %v2013 = vmul.f32 %v1086, %v1235
    %v2014 = vmul.f32 %v1200, %v1220
    %v2015 = vmul.f32 %v1205, %v1225
    %v2016 = vmul.f32 %v1210, %v1230
    %v2017 = vmul.f32 %v1215, %v1235
    %v2018 = vadd.f32 %v1986, %v1988
    %v2019 = vadd.f32 %v1987, %v1989
    %v2020 = vadd.f32 %v1990, %v1992
    %v2021 = vadd.f32 %v1991, %v1993
    %v2022 = vadd.f32 %v1994, %v1996
    %v2023 = vadd.f32 %v1995, %v1997
    %v2024 = vadd.f32 %v1998, %v2000
    %v2025 = vadd.f32 %v1999, %v2001
    %v2026 = vadd.f32 %v2002, %v2004
    %v2027 = vadd.f32 %v2003, %v2005
    %v2028 = vadd.f32 %v2006, %v2008
    %v2029 = vadd.f32 %v2007, %v2009
    %v2030 = vadd.f32 %v2010, %v2012
    %v2031 = vadd.f32 %v2011, %v2013
    %v2032 = vadd.f32 %v2014, %v2016
    %v2033 = vadd.f32 %v2015, %v2017
    %v2034 = vadd.f32 %v2018, %v2019
    %v2035 = vadd.f32 %v2020, %v2021
    %v2036 = vadd.f32 %v2022, %v2023
    %v2037 = vadd.f32 %v2024, %v2025
    %v2038 = vadd.f32 %v2026, %v2027
    %v2039 = vadd.f32 %v2028, %v2029
    %v2040 = vadd.f32 %v2030, %v2031
    %v2041 = vadd.f32 %v2032, %v2033
    %v2042 = vrot.slane %v2034, 4
    %v2043 = vadd.f32 %v2034, %v2042
    %v2044 = vrot.slane %v2043, 2
    %v2045 = vadd.f32 %v2043, %v2044
    %v2046 = vrot.slane %v2045, 1
    %v2047 = vadd.f32 %v2045, %v2046
    %v2048 = vrot.slane %v2035, 4
    %v2049 = vadd.f32 %v2035, %v2048
    %v2050 = vrot.slane %v2049, 2
    %v2051 = vadd.f32 %v2049, %v2050
    %v2052 = vrot.slane %v2051, 1
    %v2053 = vadd.f32 %v2051, %v2052
    %v2054 = vrot.slane %v2036, 4
    %v2055 = vadd.f32 %v2036, %v2054
    %v2056 = vrot.slane %v2055, 2
    %v2057 = vadd.f32 %v2055, %v2056
    %v2058 = vrot.slane %v2057, 1
    %v2059 = vadd.f32 %v2057, %v2058
    %v2060 = vrot.slane %v2037, 4
    %v2061 = vadd.f32 %v2037, %v2060
    %v2062 = vrot.slane %v2061, 2
    %v2063 = vadd.f32 %v2061, %v2062
    %v2064 = vrot.slane %v2063, 1
    %v2065 = vadd.f32 %v2063, %v2064
    %v2066 = vrot.slane %v2038, 4
    %v2067 = vadd.f32 %v2038, %v2066
    %v2068 = vrot.slane %v2067, 2
    %v2069 = vadd.f32 %v2067, %v2068
    %v2070 = vrot.slane %v2069, 1
    %v2071 = vadd.f32 %v2069, %v2070
    %v2072 = vrot.slane %v2039, 4
    %v2073 = vadd.f32 %v2039, %v2072
    %v2074 = vrot.slane %v2073, 2
    %v2075 = vadd.f32 %v2073, %v2074
    %v2076 = vrot.slane %v2075, 1
    %v2077 = vadd.f32 %v2075, %v2076
    %v2078 = vrot.slane %v2040, 4
    %v2079 = vadd.f32 %v2040, %v2078
    %v2080 = vrot.slane %v2079, 2
    %v2081 = vadd.f32 %v2079, %v2080
    %v2082 = vrot.slane %v2081, 1
    %v2083 = vadd.f32 %v2081, %v2082
    %v2084 = vrot.slane %v2041, 4
    %v2085 = vadd.f32 %v2041, %v2084
    %v2086 = vrot.slane %v2085, 2
    %v2087 = vadd.f32 %v2085, %v2086
    %v2088 = vrot.slane %v2087, 1
    %v2089 = vadd.f32 %v2087, %v2088
    %v2090 = vmax.f32 %v1319, %v1423
    %v2091 = vmax.f32 %v1325, %v1429
    %v2092 = vmax.f32 %v1331, %v1435
    %v2093 = vmax.f32 %v1337, %v1441
    %v2094 = vmax.f32 %v1343, %v1447
    %v2095 = vmax.f32 %v1349, %v1453
    %v2096 = vmax.f32 %v1355, %v1459
    %v2097 = vmax.f32 %v1361, %v1465
    %v2098 = vmax.f32 %v2090, %v1527
    %v2099 = vmax.f32 %v2091, %v1533
    %v2100 = vmax.f32 %v2092, %v1539
    %v2101 = vmax.f32 %v2093, %v1545
    %v2102 = vmax.f32 %v2094, %v1551
    %v2103 = vmax.f32 %v2095, %v1557
    %v2104 = vmax.f32 %v2096, %v1563
    %v2105 = vmax.f32 %v2097, %v1569
    %v2106 = vmax.f32 %v2098, %v1631
    %v2107 = vmax.f32 %v2099, %v1637
    %v2108 = vmax.f32 %v2100, %v1643
    %v2109 = vmax.f32 %v2101, %v1649
    %v2110 = vmax.f32 %v2102, %v1655
    %v2111 = vmax.f32 %v2103, %v1661
    %v2112 = vmax.f32 %v2104, %v1667
    %v2113 = vmax.f32 %v2105, %v1673
    %v2114 = vmax.f32 %v2106, %v1735
    %v2115 = vmax.f32 %v2107, %v1741
    %v2116 = vmax.f32 %v2108, %v1747
    %v2117 = vmax.f32 %v2109, %v1753
    %v2118 = vmax.f32 %v2110, %v1759
    %v2119 = vmax.f32 %v2111, %v1765
    %v2120 = vmax.f32 %v2112, %v1771
    %v2121 = vmax.f32 %v2113, %v1777
    %v2122 = vmax.f32 %v2114, %v1839
    %v2123 = vmax.f32 %v2115, %v1845
    %v2124 = vmax.f32 %v2116, %v1851
    %v2125 = vmax.f32 %v2117, %v1857
    %v2126 = vmax.f32 %v2118, %v1863
    %v2127 = vmax.f32 %v2119, %v1869
    %v2128 = vmax.f32 %v2120, %v1875
    %v2129 = vmax.f32 %v2121, %v1881
    %v2130 = vmax.f32 %v2122, %v1943
    %v2131 = vmax.f32 %v2123, %v1949
    %v2132 = vmax.f32 %v2124, %v1955
    %v2133 = vmax.f32 %v2125, %v1961
    %v2134 = vmax.f32 %v2126, %v1967
    %v2135 = vmax.f32 %v2127, %v1973
    %v2136 = vmax.f32 %v2128, %v1979
    %v2137 = vmax.f32 %v2129, %v1985
    %v2138 = vmax.f32 %v2130, %v2047
    %v2139 = vmax.f32 %v2131, %v2053
    %v2140 = vmax.f32 %v2132, %v2059
    %v2141 = vmax.f32 %v2133, %v2065
    %v2142 = vmax.f32 %v2134, %v2071
    %v2143 = vmax.f32 %v2135, %v2077
    %v2144 = vmax.f32 %v2136, %v2083
    %v2145 = vmax.f32 %v2137, %v2089
    %v2146 = vsub.f32 %v1319, %v2138
    %v2147 = vsub.f32 %v1325, %v2139
    %v2148 = vsub.f32 %v1331, %v2140
    %v2149 = vsub.f32 %v1337, %v2141
    %v2150 = vsub.f32 %v1343, %v2142
    %v2151 = vsub.f32 %v1349, %v2143
    %v2152 = vsub.f32 %v1355, %v2144
    %v2153 = vsub.f32 %v1361, %v2145
    %v2154 = vmul.f32 %v2146, 1.442695
    %v2155 = vpow.pop %v2154
    %v2156 = vmul.f32 %v2147, 1.442695
    %v2157 = vpow.pop %v2156
    %v2158 = vmul.f32 %v2148, 1.442695
    %v2159 = vpow.pop %v2158
    %v2160 = vmul.f32 %v2149, 1.442695
    %v2161 = vpow.pop %v2160
    %v2162 = vmul.f32 %v2150, 1.442695
    %v2163 = vpow.pop %v2162
    %v2164 = vmul.f32 %v2151, 1.442695
    %v2165 = vpow.pop %v2164
    %v2166 = vmul.f32 %v2152, 1.442695
    %v2167 = vpow.pop %v2166
    %v2168 = vmul.f32 %v2153, 1.442695
    %v2169 = vpow.pop %v2168
    %v2170 = vsub.f32 %v1423, %v2138
    %v2171 = vsub.f32 %v1429, %v2139
    %v2172 = vsub.f32 %v1435, %v2140
    %v2173 = vsub.f32 %v1441, %v2141
    %v2174 = vsub.f32 %v1447, %v2142
    %v2175 = vsub.f32 %v1453, %v2143
    %v2176 = vsub.f32 %v1459, %v2144
    %v2177 = vsub.f32 %v1465, %v2145
    %v2178 = vmul.f32 %v2170, 1.442695
    %v2179 = vpow.pop %v2178
    %v2180 = vmul.f32 %v2171, 1.442695
    %v2181 = vpow.pop %v2180
    %v2182 = vmul.f32 %v2172, 1.442695
    %v2183 = vpow.pop %v2182
    %v2184 = vmul.f32 %v2173, 1.442695
    %v2185 = vpow.pop %v2184
    %v2186 = vmul.f32 %v2174, 1.442695
    %v2187 = vpow.pop %v2186
    %v2188 = vmul.f32 %v2175, 1.442695
    %v2189 = vpow.pop %v2188
    %v2190 = vmul.f32 %v2176, 1.442695
    %v2191 = vpow.pop %v2190
    %v2192 = vmul.f32 %v2177, 1.442695
    %v2193 = vpow.pop %v2192
    %v2194 = vsub.f32 %v1527, %v2138
    %v2195 = vsub.f32 %v1533, %v2139
    %v2196 = vsub.f32 %v1539, %v2140
    %v2197 = vsub.f32 %v1545, %v2141
    %v2198 = vsub.f32 %v1551, %v2142
    %v2199 = vsub.f32 %v1557, %v2143
    %v2200 = vsub.f32 %v1563, %v2144
    %v2201 = vsub.f32 %v1569, %v2145
    %v2202 = vmul.f32 %v2194, 1.442695
    %v2203 = vpow.pop %v2202
    %v2204 = vmul.f32 %v2195, 1.442695
    %v2205 = vpow.pop %v2204
    %v2206 = vmul.f32 %v2196, 1.442695
    %v2207 = vpow.pop %v2206
    %v2208 = vmul.f32 %v2197, 1.442695
    %v2209 = vpow.pop %v2208
    %v2210 = vmul.f32 %v2198, 1.442695
    %v2211 = vpow.pop %v2210
    %v2212 = vmul.f32 %v2199, 1.442695
    %v2213 = vpow.pop %v2212
    %v2214 = vmul.f32 %v2200, 1.442695
    %v2215 = vpow.pop %v2214
    %v2216 = vmul.f32 %v2201, 1.442695
    %v2217 = vpow.pop %v2216
    %v2218 = vsub.f32 %v1631, %v2138
    %v2219 = vsub.f32 %v1637, %v2139
    %v2220 = vsub.f32 %v1643, %v2140
    %v2221 = vsub.f32 %v1649, %v2141
    %v2222 = vsub.f32 %v1655, %v2142
    %v2223 = vsub.f32 %v1661, %v2143
    %v2224 = vsub.f32 %v1667, %v2144
    %v2225 = vsub.f32 %v1673, %v2145
    %v2226 = vmul.f32 %v2218, 1.442695
    %v2227 = vpow.pop %v2226
    %v2228 = vmul.f32 %v2219, 1.442695
    %v2229 = vpow.pop %v2228
    %v2230 = vmul.f32 %v2220, 1.442695
    %v2231 = vpow.pop %v2230
    %v2232 = vmul.f32 %v2221, 1.442695
    %v2233 = vpow.pop %v2232
    %v2234 = vmul.f32 %v2222, 1.442695
    %v2235 = vpow.pop %v2234
    %v2236 = vmul.f32 %v2223, 1.442695
    %v2237 = vpow.pop %v2236
    %v2238 = vmul.f32 %v2224, 1.442695
    %v2239 = vpow.pop %v2238
    %v2240 = vmul.f32 %v2225, 1.442695
    %v2241 = vpow.pop %v2240
    %v2242 = vsub.f32 %v1735, %v2138
    %v2243 = vsub.f32 %v1741, %v2139
    %v2244 = vsub.f32 %v1747, %v2140
    %v2245 = vsub.f32 %v1753, %v2141
    %v2246 = vsub.f32 %v1759, %v2142
    %v2247 = vsub.f32 %v1765, %v2143
    %v2248 = vsub.f32 %v1771, %v2144
    %v2249 = vsub.f32 %v1777, %v2145
    %v2250 = vmul.f32 %v2242, 1.442695
    %v2251 = vpow.pop %v2250
    %v2252 = vmul.f32 %v2243, 1.442695
    %v2253 = vpow.pop %v2252
    %v2254 = vmul.f32 %v2244, 1.442695
    %v2255 = vpow.pop %v2254
    %v2256 = vmul.f32 %v2245, 1.442695
    %v2257 = vpow.pop %v2256
    %v2258 = vmul.f32 %v2246, 1.442695
    %v2259 = vpow.pop %v2258
    %v2260 = vmul.f32 %v2247, 1.442695
    %v2261 = vpow.pop %v2260
    %v2262 = vmul.f32 %v2248, 1.442695
    %v2263 = vpow.pop %v2262
    %v2264 = vmul.f32 %v2249, 1.442695
    %v2265 = vpow.pop %v2264
    %v2266 = vsub.f32 %v1839, %v2138
    %v2267 = vsub.f32 %v1845, %v2139
    %v2268 = vsub.f32 %v1851, %v2140
    %v2269 = vsub.f32 %v1857, %v2141
    %v2270 = vsub.f32 %v1863, %v2142
    %v2271 = vsub.f32 %v1869, %v2143
    %v2272 = vsub.f32 %v1875, %v2144
    %v2273 = vsub.f32 %v1881, %v2145
    %v2274 = vmul.f32 %v2266, 1.442695
    %v2275 = vpow.pop %v2274
    %v2276 = vmul.f32 %v2267, 1.442695
    %v2277 = vpow.pop %v2276
    %v2278 = vmul.f32 %v2268, 1.442695
    %v2279 = vpow.pop %v2278
    %v2280 = vmul.f32 %v2269, 1.442695
    %v2281 = vpow.pop %v2280
    %v2282 = vmul.f32 %v2270, 1.442695
    %v2283 = vpow.pop %v2282
    %v2284 = vmul.f32 %v2271, 1.442695
    %v2285 = vpow.pop %v2284
    %v2286 = vmul.f32 %v2272, 1.442695
    %v2287 = vpow.pop %v2286
    %v2288 = vmul.f32 %v2273, 1.442695
    %v2289 = vpow.pop %v2288
    %v2290 = vsub.f32 %v1943, %v2138
    %v2291 = vsub.f32 %v1949, %v2139
    %v2292 = vsub.f32 %v1955, %v2140
    %v2293 = vsub.f32 %v1961, %v2141
    %v2294 = vsub.f32 %v1967, %v2142
    %v2295 = vsub.f32 %v1973, %v2143
    %v2296 = vsub.f32 %v1979, %v2144
    %v2297 = vsub.f32 %v1985, %v2145
    %v2298 = vmul.f32 %v2290, 1.442695
    %v2299 = vpow.pop %v2298
    %v2300 = vmul.f32 %v2291, 1.442695
    %v2301 = vpow.pop %v2300
    %v2302 = vmul.f32 %v2292, 1.442695
    %v2303 = vpow.pop %v2302
    %v2304 = vmul.f32 %v2293, 1.442695
    %v2305 = vpow.pop %v2304
    %v2306 = vmul.f32 %v2294, 1.442695
    %v2307 = vpow.pop %v2306
    %v2308 = vmul.f32 %v2295, 1.442695
    %v2309 = vpow.pop %v2308
    %v2310 = vmul.f32 %v2296, 1.442695
    %v2311 = vpow.pop %v2310
    %v2312 = vmul.f32 %v2297, 1.442695
    %v2313 = vpow.pop %v2312
    %v2314 = vsub.f32 %v2047, %v2138
    %v2315 = vsub.f32 %v2053, %v2139
    %v2316 = vsub.f32 %v2059, %v2140
    %v2317 = vsub.f32 %v2065, %v2141
    %v2318 = vsub.f32 %v2071, %v2142
    %v2319 = vsub.f32 %v2077, %v2143
    %v2320 = vsub.f32 %v2083, %v2144
    %v2321 = vsub.f32 %v2089, %v2145
    %v2322 = vmul.f32 %v2314, 1.442695
    %v2323 = vpow.pop %v2322
    %v2324 = vmul.f32 %v2315, 1.442695
    %v2325 = vpow.pop %v2324
    %v2326 = vmul.f32 %v2316, 1.442695
    %v2327 = vpow.pop %v2326
    %v2328 = vmul.f32 %v2317, 1.442695
    %v2329 = vpow.pop %v2328
    %v2330 = vmul.f32 %v2318, 1.442695
    %v2331 = vpow.pop %v2330
    %v2332 = vmul.f32 %v2319, 1.442695
    %v2333 = vpow.pop %v2332
    %v2334 = vmul.f32 %v2320, 1.442695
    %v2335 = vpow.pop %v2334
    %v2336 = vmul.f32 %v2321, 1.442695
    %v2337 = vpow.pop %v2336
    %v2338 = vadd.f32 %v2155, %v2179
    %v2339 = vadd.f32 %v2157, %v2181
    %v2340 = vadd.f32 %v2159, %v2183
    %v2341 = vadd.f32 %v2161, %v2185
    %v2342 = vadd.f32 %v2163, %v2187
    %v2343 = vadd.f32 %v2165, %v2189
    %v2344 = vadd.f32 %v2167, %v2191
    %v2345 = vadd.f32 %v2169, %v2193
    %v2346 = vadd.f32 %v2338, %v2203
    %v2347 = vadd.f32 %v2339, %v2205
    %v2348 = vadd.f32 %v2340, %v2207
    %v2349 = vadd.f32 %v2341, %v2209
    %v2350 = vadd.f32 %v2342, %v2211
    %v2351 = vadd.f32 %v2343, %v2213
    %v2352 = vadd.f32 %v2344, %v2215
    %v2353 = vadd.f32 %v2345, %v2217
    %v2354 = vadd.f32 %v2346, %v2227
    %v2355 = vadd.f32 %v2347, %v2229
    %v2356 = vadd.f32 %v2348, %v2231
    %v2357 = vadd.f32 %v2349, %v2233
    %v2358 = vadd.f32 %v2350, %v2235
    %v2359 = vadd.f32 %v2351, %v2237
    %v2360 = vadd.f32 %v2352, %v2239
    %v2361 = vadd.f32 %v2353, %v2241
    %v2362 = vadd.f32 %v2354, %v2251
    %v2363 = vadd.f32 %v2355, %v2253
    %v2364 = vadd.f32 %v2356, %v2255
    %v2365 = vadd.f32 %v2357, %v2257
    %v2366 = vadd.f32 %v2358, %v2259
    %v2367 = vadd.f32 %v2359, %v2261
    %v2368 = vadd.f32 %v2360, %v2263
    %v2369 = vadd.f32 %v2361, %v2265
    %v2370 = vadd.f32 %v2362, %v2275
    %v2371 = vadd.f32 %v2363, %v2277
    %v2372 = vadd.f32 %v2364, %v2279
    %v2373 = vadd.f32 %v2365, %v2281
    %v2374 = vadd.f32 %v2366, %v2283
    %v2375 = vadd.f32 %v2367, %v2285
    %v2376 = vadd.f32 %v2368, %v2287
    %v2377 = vadd.f32 %v2369, %v2289
    %v2378 = vadd.f32 %v2370, %v2299
    %v2379 = vadd.f32 %v2371, %v2301
    %v2380 = vadd.f32 %v2372, %v2303
    %v2381 = vadd.f32 %v2373, %v2305
    %v2382 = vadd.f32 %v2374, %v2307
    %v2383 = vadd.f32 %v2375, %v2309
    %v2384 = vadd.f32 %v2376, %v2311
    %v2385 = vadd.f32 %v2377, %v2313
    %v2386 = vadd.f32 %v2378, %v2323
    %v2387 = vadd.f32 %v2379, %v2325
    %v2388 = vadd.f32 %v2380, %v2327
    %v2389 = vadd.f32 %v2381, %v2329
    %v2390 = vadd.f32 %v2382, %v2331
    %v2391 = vadd.f32 %v2383, %v2333
    %v2392 = vadd.f32 %v2384, %v2335
    %v2393 = vadd.f32 %v2385, %v2337
    %v2394 = vrcp.pop %v2386
    %v2395 = vrcp.pop %v2387
    %v2396 = vrcp.pop %v2388
    %v2397 = vrcp.pop %v2389
    %v2398 = vrcp.pop %v2390
    %v2399 = vrcp.pop %v2391
    %v2400 = vrcp.pop %v2392
    %v2401 = vrcp.pop %v2393
    %v2402 = vmul.f32 %v2155, %v337
    %v2403 = vmul.f32 %v2155, %v342
    %v2404 = vmul.f32 %v2155, %v347
    %v2405 = vmul.f32 %v2155, %v352
    %v2406 = vmul.f32 %v2179, %v466
    %v2407 = vmul.f32 %v2179, %v471
    %v2408 = vmul.f32 %v2179, %v476
    %v2409 = vmul.f32 %v2179, %v481
    %v2410 = vadd.f32 %v2402, %v2406
    %v2411 = vadd.f32 %v2403, %v2407
    %v2412 = vadd.f32 %v2404, %v2408
    %v2413 = vadd.f32 %v2405, %v2409
    %v2414 = vmul.f32 %v2203, %v595
    %v2415 = vmul.f32 %v2203, %v600
    %v2416 = vmul.f32 %v2203, %v605
    %v2417 = vmul.f32 %v2203, %v610
    %v2418 = vadd.f32 %v2410, %v2414
    %v2419 = vadd.f32 %v2411, %v2415
    %v2420 = vadd.f32 %v2412, %v2416
    %v2421 = vadd.f32 %v2413, %v2417
    %v2422 = vmul.f32 %v2227, %v724
    %v2423 = vmul.f32 %v2227, %v729
    %v2424 = vmul.f32 %v2227, %v734
    %v2425 = vmul.f32 %v2227, %v739
    %v2426 = vadd.f32 %v2418, %v2422
    %v2427 = vadd.f32 %v2419, %v2423
    %v2428 = vadd.f32 %v2420, %v2424
    %v2429 = vadd.f32 %v2421, %v2425
    %v2430 = vmul.f32 %v2251, %v853
    %v2431 = vmul.f32 %v2251, %v858
    %v2432 = vmul.f32 %v2251, %v863
    %v2433 = vmul.f32 %v2251, %v868
    %v2434 = vadd.f32 %v2426, %v2430
    %v2435 = vadd.f32 %v2427, %v2431
    %v2436 = vadd.f32 %v2428, %v2432
    %v2437 = vadd.f32 %v2429, %v2433
    %v2438 = vmul.f32 %v2275, %v982
    %v2439 = vmul.f32 %v2275, %v987
    %v2440 = vmul.f32 %v2275, %v992
    %v2441 = vmul.f32 %v2275, %v997
    %v2442 = vadd.f32 %v2434, %v2438
    %v2443 = vadd.f32 %v2435, %v2439
    %v2444 = vadd.f32 %v2436, %v2440
    %v2445 = vadd.f32 %v2437, %v2441
    %v2446 = vmul.f32 %v2299, %v1111
    %v2447 = vmul.f32 %v2299, %v1116
    %v2448 = vmul.f32 %v2299, %v1121
    %v2449 = vmul.f32 %v2299, %v1126
    %v2450 = vadd.f32 %v2442, %v2446
    %v2451 = vadd.f32 %v2443, %v2447
    %v2452 = vadd.f32 %v2444, %v2448
    %v2453 = vadd.f32 %v2445, %v2449
    %v2454 = vmul.f32 %v2323, %v1240
    %v2455 = vmul.f32 %v2323, %v1245
    %v2456 = vmul.f32 %v2323, %v1250
    %v2457 = vmul.f32 %v2323, %v1255
    %v2458 = vadd.f32 %v2450, %v2454
    %v2459 = vadd.f32 %v2451, %v2455
    %v2460 = vadd.f32 %v2452, %v2456
    %v2461 = vadd.f32 %v2453, %v2457
    %v2462 = vmul.f32 %v2458, %v2394
    %v2463 = vmul.f32 %v2459, %v2394
    %v2464 = vmul.f32 %v2460, %v2394
    %v2465 = vmul.f32 %v2461, %v2394
    %v2466 = vmax.f32 %v2462, 0.0
    %v2467 = vmax.f32 %v2463, 0.0
    %v2468 = vmax.f32 %v2464, 0.0
    %v2469 = vmax.f32 %v2465, 0.0
    %2471 = vset.pattern.permute.xlu0 0
    %2472 = vperm.xlu0 %2471, %v56
    %v2473 = vpop.permute.xlu0 %2472
    %2476 = vset.pattern.permute.xlu0 0
    %2477 = vperm.xlu0 %2476, %v57
    %v2478 = vpop.permute.xlu0 %2477
    %2481 = vset.pattern.permute.xlu0 0
    %2482 = vperm.xlu0 %2481, %v58
    %v2483 = vpop.permute.xlu0 %2482
    %2486 = vset.pattern.permute.xlu0 0
    %2487 = vperm.xlu0 %2486, %v59
    %v2488 = vpop.permute.xlu0 %2487
    %v2491 = vsel %vm193, %v125, 0
    %v2494 = vsel %vm193, %v126, 0
    %v2497 = vsel %vm193, %v127, 0
    %v2500 = vsel %vm193, %v128, 0
    %2502 = vmatprep.subr.mxu0 0.0
    %2503 = vmatpush1.msra.mxu0 %v2466
    %2504 = vmatprep.subr.mxu0 0.0
    %2505 = vmatpush1.msra.mxu0 %v2467
    %2506 = vmatprep.subr.mxu0 0.0
    %2507 = vmatpush1.msra.mxu0 %v2468
    %2508 = vmatprep.subr.mxu0 0.0
    %2509 = vmatpush1.msra.mxu0 %v2469
    %2510 = vmatprep.subr.mxu0 0.0
    %2511 = vmatpush1.msra.mxu0 0.0
    %2512 = vmatprep.subr.mxu0 0.0
    %2513 = vmatpush1.msra.mxu0 0.0
    %2514 = vmatprep.subr.mxu0 0.0
    %2515 = vmatpush1.msra.mxu0 0.0
    %2516 = vmatprep.subr.mxu0 0.0
    %2517 = vmatpush1.msra.mxu0 0.0
    %2518 = vmatprep.subr.mxu0 0.0
    %2519 = vmatpush1.msra.mxu0 0.0
    %2520 = vmatprep.subr.mxu0 0.0
    %2521 = vmatpush1.msra.mxu0 0.0
    %2522 = vmatprep.subr.mxu0 0.0
    %2523 = vmatpush1.msra.mxu0 0.0
    %2524 = vmatprep.subr.mxu0 0.0
    %2525 = vmatpush1.msra.mxu0 0.0
    %2526 = vmatprep.subr.mxu0 0.0
    %2527 = vmatpush1.msra.mxu0 0.0
    %2528 = vmatprep.subr.mxu0 0.0
    %2529 = vmatpush1.msra.mxu0 0.0
    %2530 = vmatprep.subr.mxu0 0.0
    %2531 = vmatpush1.msra.mxu0 0.0
    %2532 = vmatprep.subr.mxu0 0.0
    %2533 = vmatpush1.msra.mxu0 0.0
    %2534 = vmatprep.subr.mxu0 0.0
    %2535 = vmatpush1.msra.mxu0 0.0
    %2536 = vmatprep.subr.mxu0 0.0
    %2537 = vmatpush1.msra.mxu0 0.0
    %2538 = vmatprep.subr.mxu0 0.0
    %2539 = vmatpush1.msra.mxu0 0.0
    %2540 = vmatprep.subr.mxu0 0.0
    %2541 = vmatpush1.msra.mxu0 0.0
    %2542 = vmatprep.subr.mxu0 0.0
    %2543 = vmatpush1.msra.mxu0 0.0
    %2544 = vmatprep.subr.mxu0 0.0
    %2545 = vmatpush1.msra.mxu0 0.0
    %2546 = vmatprep.subr.mxu0 0.0
    %2547 = vmatpush1.msra.mxu0 0.0
    %2548 = vmatprep.subr.mxu0 0.0
    %2549 = vmatpush1.msra.mxu0 0.0
    %2550 = vmatprep.subr.mxu0 0.0
    %2551 = vmatpush1.msra.mxu0 0.0
    %2552 = vmatprep.subr.mxu0 0.0
    %2553 = vmatpush1.msra.mxu0 0.0
    %2554 = vmatprep.subr.mxu0 0.0
    %2555 = vmatpush1.msra.mxu0 0.0
    %2556 = vmatprep.subr.mxu0 0.0
    %2557 = vmatpush1.msra.mxu0 0.0
    %2558 = vmatprep.subr.mxu0 0.0
    %2559 = vmatpush1.msra.mxu0 0.0
    %2560 = vmatprep.subr.mxu0 0.0
    %2561 = vmatpush1.msra.mxu0 0.0
    %2562 = vmatprep.subr.mxu0 0.0
    %2563 = vmatpush1.msra.mxu0 0.0
    %2564 = vmatprep.subr.mxu0 0.0
    %2565 = vmatpush1.msra.mxu0 0.0
    %2566 = vmatprep.mubr.f32.mxu0 0.0
    %2567 = vmatmul.mubr.f32.gmra.mrb[0].mxu0 %v2491
    %v2568 = vpop.f32.mrb[0].mxu0
    %v2569 = vadd.f32 %v2473, %v2568
    %v2570 = vpop.f32.mrb[0].mxu0
    %2571 = vmatprep.mubr.f32.mxu0 0.0
    %2572 = vmatmul.mubr.f32.gmra.mrb[0].mxu0 %v2494
    %v2573 = vpop.f32.mrb[0].mxu0
    %v2574 = vadd.f32 %v2478, %v2573
    %v2575 = vpop.f32.mrb[0].mxu0
    %2576 = vmatprep.mubr.f32.mxu0 0.0
    %2577 = vmatmul.mubr.f32.gmra.mrb[0].mxu0 %v2497
    %v2578 = vpop.f32.mrb[0].mxu0
    %v2579 = vadd.f32 %v2483, %v2578
    %v2580 = vpop.f32.mrb[0].mxu0
    %2581 = vmatprep.mubr.f32.mxu0 0.0
    %2582 = vmatmul.mubr.f32.gmra.mrb[0].mxu0 %v2500
    %v2583 = vpop.f32.mrb[0].mxu0
    %v2584 = vadd.f32 %v2488, %v2583
    %v2585 = vpop.f32.mrb[0].mxu0
    %2586 = vdwg.mxu0
    %v2587 = vadd.f32 %v81, 0.0
    %v2588 = vadd.f32 %v82, 0.0
    %v2589 = vadd.f32 %v83, 0.0
    %v2590 = vadd.f32 %v84, 0.0
    %v2591 = vadd.f32 %v2587, %v2569
    %v2592 = vadd.f32 %v2588, %v2574
    %v2593 = vadd.f32 %v2589, %v2579
    %v2594 = vadd.f32 %v2590, %v2584
    %v2595 = vmul.f32 %v2157, %v337
    %v2596 = vmul.f32 %v2157, %v342
    %v2597 = vmul.f32 %v2157, %v347
    %v2598 = vmul.f32 %v2157, %v352
    %v2599 = vmul.f32 %v2181, %v466
    %v2600 = vmul.f32 %v2181, %v471
    %v2601 = vmul.f32 %v2181, %v476
    %v2602 = vmul.f32 %v2181, %v481
    %v2603 = vadd.f32 %v2595, %v2599
    %v2604 = vadd.f32 %v2596, %v2600
    %v2605 = vadd.f32 %v2597, %v2601
    %v2606 = vadd.f32 %v2598, %v2602
    %v2607 = vmul.f32 %v2205, %v595
    %v2608 = vmul.f32 %v2205, %v600
    %v2609 = vmul.f32 %v2205, %v605
    %v2610 = vmul.f32 %v2205, %v610
    %v2611 = vadd.f32 %v2603, %v2607
    %v2612 = vadd.f32 %v2604, %v2608
    %v2613 = vadd.f32 %v2605, %v2609
    %v2614 = vadd.f32 %v2606, %v2610
    %v2615 = vmul.f32 %v2229, %v724
    %v2616 = vmul.f32 %v2229, %v729
    %v2617 = vmul.f32 %v2229, %v734
    %v2618 = vmul.f32 %v2229, %v739
    %v2619 = vadd.f32 %v2611, %v2615
    %v2620 = vadd.f32 %v2612, %v2616
    %v2621 = vadd.f32 %v2613, %v2617
    %v2622 = vadd.f32 %v2614, %v2618
    %v2623 = vmul.f32 %v2253, %v853
    %v2624 = vmul.f32 %v2253, %v858
    %v2625 = vmul.f32 %v2253, %v863
    %v2626 = vmul.f32 %v2253, %v868
    %v2627 = vadd.f32 %v2619, %v2623
    %v2628 = vadd.f32 %v2620, %v2624
    %v2629 = vadd.f32 %v2621, %v2625
    %v2630 = vadd.f32 %v2622, %v2626
    %v2631 = vmul.f32 %v2277, %v982
    %v2632 = vmul.f32 %v2277, %v987
    %v2633 = vmul.f32 %v2277, %v992
    %v2634 = vmul.f32 %v2277, %v997
    %v2635 = vadd.f32 %v2627, %v2631
    %v2636 = vadd.f32 %v2628, %v2632
    %v2637 = vadd.f32 %v2629, %v2633
    %v2638 = vadd.f32 %v2630, %v2634
    %v2639 = vmul.f32 %v2301, %v1111
    %v2640 = vmul.f32 %v2301, %v1116
    %v2641 = vmul.f32 %v2301, %v1121
    %v2642 = vmul.f32 %v2301, %v1126
    %v2643 = vadd.f32 %v2635, %v2639
    %v2644 = vadd.f32 %v2636, %v2640
    %v2645 = vadd.f32 %v2637, %v2641
    %v2646 = vadd.f32 %v2638, %v2642
    %v2647 = vmul.f32 %v2325, %v1240
    %v2648 = vmul.f32 %v2325, %v1245
    %v2649 = vmul.f32 %v2325, %v1250
    %v2650 = vmul.f32 %v2325, %v1255
    %v2651 = vadd.f32 %v2643, %v2647
    %v2652 = vadd.f32 %v2644, %v2648
    %v2653 = vadd.f32 %v2645, %v2649
    %v2654 = vadd.f32 %v2646, %v2650
    %v2655 = vmul.f32 %v2651, %v2395
    %v2656 = vmul.f32 %v2652, %v2395
    %v2657 = vmul.f32 %v2653, %v2395
    %v2658 = vmul.f32 %v2654, %v2395
    %v2659 = vmax.f32 %v2655, 0.0
    %v2660 = vmax.f32 %v2656, 0.0
    %v2661 = vmax.f32 %v2657, 0.0
    %v2662 = vmax.f32 %v2658, 0.0
    %2663 = vmatprep.subr.mxu0 0.0
    %2664 = vmatpush1.msra.mxu0 %v2659
    %2665 = vmatprep.subr.mxu0 0.0
    %2666 = vmatpush1.msra.mxu0 %v2660
    %2667 = vmatprep.subr.mxu0 0.0
    %2668 = vmatpush1.msra.mxu0 %v2661
    %2669 = vmatprep.subr.mxu0 0.0
    %2670 = vmatpush1.msra.mxu0 %v2662
    %2671 = vmatprep.subr.mxu0 0.0
    %2672 = vmatpush1.msra.mxu0 0.0
    %2673 = vmatprep.subr.mxu0 0.0
    %2674 = vmatpush1.msra.mxu0 0.0
    %2675 = vmatprep.subr.mxu0 0.0
    %2676 = vmatpush1.msra.mxu0 0.0
    %2677 = vmatprep.subr.mxu0 0.0
    %2678 = vmatpush1.msra.mxu0 0.0
    %2679 = vmatprep.subr.mxu0 0.0
    %2680 = vmatpush1.msra.mxu0 0.0
    %2681 = vmatprep.subr.mxu0 0.0
    %2682 = vmatpush1.msra.mxu0 0.0
    %2683 = vmatprep.subr.mxu0 0.0
    %2684 = vmatpush1.msra.mxu0 0.0
    %2685 = vmatprep.subr.mxu0 0.0
    %2686 = vmatpush1.msra.mxu0 0.0
    %2687 = vmatprep.subr.mxu0 0.0
    %2688 = vmatpush1.msra.mxu0 0.0
    %2689 = vmatprep.subr.mxu0 0.0
    %2690 = vmatpush1.msra.mxu0 0.0
    %2691 = vmatprep.subr.mxu0 0.0
    %2692 = vmatpush1.msra.mxu0 0.0
    %2693 = vmatprep.subr.mxu0 0.0
    %2694 = vmatpush1.msra.mxu0 0.0
    %2695 = vmatprep.subr.mxu0 0.0
    %2696 = vmatpush1.msra.mxu0 0.0
    %2697 = vmatprep.subr.mxu0 0.0
    %2698 = vmatpush1.msra.mxu0 0.0
    %2699 = vmatprep.subr.mxu0 0.0
    %2700 = vmatpush1.msra.mxu0 0.0
    %2701 = vmatprep.subr.mxu0 0.0
    %2702 = vmatpush1.msra.mxu0 0.0
    %2703 = vmatprep.subr.mxu0 0.0
    %2704 = vmatpush1.msra.mxu0 0.0
    %2705 = vmatprep.subr.mxu0 0.0
    %2706 = vmatpush1.msra.mxu0 0.0
    %2707 = vmatprep.subr.mxu0 0.0
    %2708 = vmatpush1.msra.mxu0 0.0
    %2709 = vmatprep.subr.mxu0 0.0
    %2710 = vmatpush1.msra.mxu0 0.0
    %2711 = vmatprep.subr.mxu0 0.0
    %2712 = vmatpush1.msra.mxu0 0.0
    %2713 = vmatprep.subr.mxu0 0.0
    %2714 = vmatpush1.msra.mxu0 0.0
    %2715 = vmatprep.subr.mxu0 0.0
    %2716 = vmatpush1.msra.mxu0 0.0
    %2717 = vmatprep.subr.mxu0 0.0
    %2718 = vmatpush1.msra.mxu0 0.0
    %2719 = vmatprep.subr.mxu0 0.0
    %2720 = vmatpush1.msra.mxu0 0.0
    %2721 = vmatprep.subr.mxu0 0.0
    %2722 = vmatpush1.msra.mxu0 0.0
    %2723 = vmatprep.subr.mxu0 0.0
    %2724 = vmatpush1.msra.mxu0 0.0
    %2725 = vmatprep.subr.mxu0 0.0
    %2726 = vmatpush1.msra.mxu0 0.0
    %2727 = vmatprep.mubr.f32.mxu0 0.0
    %2728 = vmatmul.mubr.f32.gmra.mrb[0].mxu0 %v2491
    %v2729 = vpop.f32.mrb[0].mxu0
    %v2730 = vadd.f32 %v2473, %v2729
    %v2731 = vpop.f32.mrb[0].mxu0
    %2732 = vmatprep.mubr.f32.mxu0 0.0
    %2733 = vmatmul.mubr.f32.gmra.mrb[0].mxu0 %v2494
    %v2734 = vpop.f32.mrb[0].mxu0
    %v2735 = vadd.f32 %v2478, %v2734
    %v2736 = vpop.f32.mrb[0].mxu0
    %2737 = vmatprep.mubr.f32.mxu0 0.0
    %2738 = vmatmul.mubr.f32.gmra.mrb[0].mxu0 %v2497
    %v2739 = vpop.f32.mrb[0].mxu0
    %v2740 = vadd.f32 %v2483, %v2739
    %v2741 = vpop.f32.mrb[0].mxu0
    %2742 = vmatprep.mubr.f32.mxu0 0.0
    %2743 = vmatmul.mubr.f32.gmra.mrb[0].mxu0 %v2500
    %v2744 = vpop.f32.mrb[0].mxu0
    %v2745 = vadd.f32 %v2488, %v2744
    %v2746 = vpop.f32.mrb[0].mxu0
    %2747 = vdwg.mxu0
    %v2748 = vadd.f32 %v2591, %v85
    %v2749 = vadd.f32 %v2592, %v86
    %v2750 = vadd.f32 %v2593, %v87
    %v2751 = vadd.f32 %v2594, %v88
    %v2752 = vadd.f32 %v2748, %v2730
    %v2753 = vadd.f32 %v2749, %v2735
    %v2754 = vadd.f32 %v2750, %v2740
    %v2755 = vadd.f32 %v2751, %v2745
    %v2756 = vmul.f32 %v2159, %v337
    %v2757 = vmul.f32 %v2159, %v342
    %v2758 = vmul.f32 %v2159, %v347
    %v2759 = vmul.f32 %v2159, %v352
    %v2760 = vmul.f32 %v2183, %v466
    %v2761 = vmul.f32 %v2183, %v471
    %v2762 = vmul.f32 %v2183, %v476
    %v2763 = vmul.f32 %v2183, %v481
    %v2764 = vadd.f32 %v2756, %v2760
    %v2765 = vadd.f32 %v2757, %v2761
    %v2766 = vadd.f32 %v2758, %v2762
    %v2767 = vadd.f32 %v2759, %v2763
    %v2768 = vmul.f32 %v2207, %v595
    %v2769 = vmul.f32 %v2207, %v600
    %v2770 = vmul.f32 %v2207, %v605
    %v2771 = vmul.f32 %v2207, %v610
    %v2772 = vadd.f32 %v2764, %v2768
    %v2773 = vadd.f32 %v2765, %v2769
    %v2774 = vadd.f32 %v2766, %v2770
    %v2775 = vadd.f32 %v2767, %v2771
    %v2776 = vmul.f32 %v2231, %v724
    %v2777 = vmul.f32 %v2231, %v729
    %v2778 = vmul.f32 %v2231, %v734
    %v2779 = vmul.f32 %v2231, %v739
    %v2780 = vadd.f32 %v2772, %v2776
    %v2781 = vadd.f32 %v2773, %v2777
    %v2782 = vadd.f32 %v2774, %v2778
    %v2783 = vadd.f32 %v2775, %v2779
    %v2784 = vmul.f32 %v2255, %v853
    %v2785 = vmul.f32 %v2255, %v858
    %v2786 = vmul.f32 %v2255, %v863
    %v2787 = vmul.f32 %v2255, %v868
    %v2788 = vadd.f32 %v2780, %v2784
    %v2789 = vadd.f32 %v2781, %v2785
    %v2790 = vadd.f32 %v2782, %v2786
    %v2791 = vadd.f32 %v2783, %v2787
    %v2792 = vmul.f32 %v2279, %v982
    %v2793 = vmul.f32 %v2279, %v987
    %v2794 = vmul.f32 %v2279, %v992
    %v2795 = vmul.f32 %v2279, %v997
    %v2796 = vadd.f32 %v2788, %v2792
    %v2797 = vadd.f32 %v2789, %v2793
    %v2798 = vadd.f32 %v2790, %v2794
    %v2799 = vadd.f32 %v2791, %v2795
    %v2800 = vmul.f32 %v2303, %v1111
    %v2801 = vmul.f32 %v2303, %v1116
    %v2802 = vmul.f32 %v2303, %v1121
    %v2803 = vmul.f32 %v2303, %v1126
    %v2804 = vadd.f32 %v2796, %v2800
    %v2805 = vadd.f32 %v2797, %v2801
    %v2806 = vadd.f32 %v2798, %v2802
    %v2807 = vadd.f32 %v2799, %v2803
    %v2808 = vmul.f32 %v2327, %v1240
    %v2809 = vmul.f32 %v2327, %v1245
    %v2810 = vmul.f32 %v2327, %v1250
    %v2811 = vmul.f32 %v2327, %v1255
    %v2812 = vadd.f32 %v2804, %v2808
    %v2813 = vadd.f32 %v2805, %v2809
    %v2814 = vadd.f32 %v2806, %v2810
    %v2815 = vadd.f32 %v2807, %v2811
    %v2816 = vmul.f32 %v2812, %v2396
    %v2817 = vmul.f32 %v2813, %v2396
    %v2818 = vmul.f32 %v2814, %v2396
    %v2819 = vmul.f32 %v2815, %v2396
    %v2820 = vmax.f32 %v2816, 0.0
    %v2821 = vmax.f32 %v2817, 0.0
    %v2822 = vmax.f32 %v2818, 0.0
    %v2823 = vmax.f32 %v2819, 0.0
    %2824 = vmatprep.subr.mxu0 0.0
    %2825 = vmatpush1.msra.mxu0 %v2820
    %2826 = vmatprep.subr.mxu0 0.0
    %2827 = vmatpush1.msra.mxu0 %v2821
    %2828 = vmatprep.subr.mxu0 0.0
    %2829 = vmatpush1.msra.mxu0 %v2822
    %2830 = vmatprep.subr.mxu0 0.0
    %2831 = vmatpush1.msra.mxu0 %v2823
    %2832 = vmatprep.subr.mxu0 0.0
    %2833 = vmatpush1.msra.mxu0 0.0
    %2834 = vmatprep.subr.mxu0 0.0
    %2835 = vmatpush1.msra.mxu0 0.0
    %2836 = vmatprep.subr.mxu0 0.0
    %2837 = vmatpush1.msra.mxu0 0.0
    %2838 = vmatprep.subr.mxu0 0.0
    %2839 = vmatpush1.msra.mxu0 0.0
    %2840 = vmatprep.subr.mxu0 0.0
    %2841 = vmatpush1.msra.mxu0 0.0
    %2842 = vmatprep.subr.mxu0 0.0
    %2843 = vmatpush1.msra.mxu0 0.0
    %2844 = vmatprep.subr.mxu0 0.0
    %2845 = vmatpush1.msra.mxu0 0.0
    %2846 = vmatprep.subr.mxu0 0.0
    %2847 = vmatpush1.msra.mxu0 0.0
    %2848 = vmatprep.subr.mxu0 0.0
    %2849 = vmatpush1.msra.mxu0 0.0
    %2850 = vmatprep.subr.mxu0 0.0
    %2851 = vmatpush1.msra.mxu0 0.0
    %2852 = vmatprep.subr.mxu0 0.0
    %2853 = vmatpush1.msra.mxu0 0.0
    %2854 = vmatprep.subr.mxu0 0.0
    %2855 = vmatpush1.msra.mxu0 0.0
    %2856 = vmatprep.subr.mxu0 0.0
    %2857 = vmatpush1.msra.mxu0 0.0
    %2858 = vmatprep.subr.mxu0 0.0
    %2859 = vmatpush1.msra.mxu0 0.0
    %2860 = vmatprep.subr.mxu0 0.0
    %2861 = vmatpush1.msra.mxu0 0.0
    %2862 = vmatprep.subr.mxu0 0.0
    %2863 = vmatpush1.msra.mxu0 0.0
    %2864 = vmatprep.subr.mxu0 0.0
    %2865 = vmatpush1.msra.mxu0 0.0
    %2866 = vmatprep.subr.mxu0 0.0
    %2867 = vmatpush1.msra.mxu0 0.0
    %2868 = vmatprep.subr.mxu0 0.0
    %2869 = vmatpush1.msra.mxu0 0.0
    %2870 = vmatprep.subr.mxu0 0.0
    %2871 = vmatpush1.msra.mxu0 0.0
    %2872 = vmatprep.subr.mxu0 0.0
    %2873 = vmatpush1.msra.mxu0 0.0
    %2874 = vmatprep.subr.mxu0 0.0
    %2875 = vmatpush1.msra.mxu0 0.0
    %2876 = vmatprep.subr.mxu0 0.0
    %2877 = vmatpush1.msra.mxu0 0.0
    %2878 = vmatprep.subr.mxu0 0.0
    %2879 = vmatpush1.msra.mxu0 0.0
    %2880 = vmatprep.subr.mxu0 0.0
    %2881 = vmatpush1.msra.mxu0 0.0
    %2882 = vmatprep.subr.mxu0 0.0
    %2883 = vmatpush1.msra.mxu0 0.0
    %2884 = vmatprep.subr.mxu0 0.0
    %2885 = vmatpush1.msra.mxu0 0.0
    %2886 = vmatprep.subr.mxu0 0.0
    %2887 = vmatpush1.msra.mxu0 0.0
    %2888 = vmatprep.mubr.f32.mxu0 0.0
    %2889 = vmatmul.mubr.f32.gmra.mrb[0].mxu0 %v2491
    %v2890 = vpop.f32.mrb[0].mxu0
    %v2891 = vadd.f32 %v2473, %v2890
    %v2892 = vpop.f32.mrb[0].mxu0
    %2893 = vmatprep.mubr.f32.mxu0 0.0
    %2894 = vmatmul.mubr.f32.gmra.mrb[0].mxu0 %v2494
    %v2895 = vpop.f32.mrb[0].mxu0
    %v2896 = vadd.f32 %v2478, %v2895
    %v2897 = vpop.f32.mrb[0].mxu0
    %2898 = vmatprep.mubr.f32.mxu0 0.0
    %2899 = vmatmul.mubr.f32.gmra.mrb[0].mxu0 %v2497
    %v2900 = vpop.f32.mrb[0].mxu0
    %v2901 = vadd.f32 %v2483, %v2900
    %v2902 = vpop.f32.mrb[0].mxu0
    %2903 = vmatprep.mubr.f32.mxu0 0.0
    %2904 = vmatmul.mubr.f32.gmra.mrb[0].mxu0 %v2500
    %v2905 = vpop.f32.mrb[0].mxu0
    %v2906 = vadd.f32 %v2488, %v2905
    %v2907 = vpop.f32.mrb[0].mxu0
    %2908 = vdwg.mxu0
    %v2909 = vadd.f32 %v2752, %v89
    %v2910 = vadd.f32 %v2753, %v90
    %v2911 = vadd.f32 %v2754, %v91
    %v2912 = vadd.f32 %v2755, %v92
    %v2913 = vadd.f32 %v2909, %v2891
    %v2914 = vadd.f32 %v2910, %v2896
    %v2915 = vadd.f32 %v2911, %v2901
    %v2916 = vadd.f32 %v2912, %v2906
    %v2917 = vmul.f32 %v2161, %v337
    %v2918 = vmul.f32 %v2161, %v342
    %v2919 = vmul.f32 %v2161, %v347
    %v2920 = vmul.f32 %v2161, %v352
    %v2921 = vmul.f32 %v2185, %v466
    %v2922 = vmul.f32 %v2185, %v471
    %v2923 = vmul.f32 %v2185, %v476
    %v2924 = vmul.f32 %v2185, %v481
    %v2925 = vadd.f32 %v2917, %v2921
    %v2926 = vadd.f32 %v2918, %v2922
    %v2927 = vadd.f32 %v2919, %v2923
    %v2928 = vadd.f32 %v2920, %v2924
    %v2929 = vmul.f32 %v2209, %v595
    %v2930 = vmul.f32 %v2209, %v600
    %v2931 = vmul.f32 %v2209, %v605
    %v2932 = vmul.f32 %v2209, %v610
    %v2933 = vadd.f32 %v2925, %v2929
    %v2934 = vadd.f32 %v2926, %v2930
    %v2935 = vadd.f32 %v2927, %v2931
    %v2936 = vadd.f32 %v2928, %v2932
    %v2937 = vmul.f32 %v2233, %v724
    %v2938 = vmul.f32 %v2233, %v729
    %v2939 = vmul.f32 %v2233, %v734
    %v2940 = vmul.f32 %v2233, %v739
    %v2941 = vadd.f32 %v2933, %v2937
    %v2942 = vadd.f32 %v2934, %v2938
    %v2943 = vadd.f32 %v2935, %v2939
    %v2944 = vadd.f32 %v2936, %v2940
    %v2945 = vmul.f32 %v2257, %v853
    %v2946 = vmul.f32 %v2257, %v858
    %v2947 = vmul.f32 %v2257, %v863
    %v2948 = vmul.f32 %v2257, %v868
    %v2949 = vadd.f32 %v2941, %v2945
    %v2950 = vadd.f32 %v2942, %v2946
    %v2951 = vadd.f32 %v2943, %v2947
    %v2952 = vadd.f32 %v2944, %v2948
    %v2953 = vmul.f32 %v2281, %v982
    %v2954 = vmul.f32 %v2281, %v987
    %v2955 = vmul.f32 %v2281, %v992
    %v2956 = vmul.f32 %v2281, %v997
    %v2957 = vadd.f32 %v2949, %v2953
    %v2958 = vadd.f32 %v2950, %v2954
    %v2959 = vadd.f32 %v2951, %v2955
    %v2960 = vadd.f32 %v2952, %v2956
    %v2961 = vmul.f32 %v2305, %v1111
    %v2962 = vmul.f32 %v2305, %v1116
    %v2963 = vmul.f32 %v2305, %v1121
    %v2964 = vmul.f32 %v2305, %v1126
    %v2965 = vadd.f32 %v2957, %v2961
    %v2966 = vadd.f32 %v2958, %v2962
    %v2967 = vadd.f32 %v2959, %v2963
    %v2968 = vadd.f32 %v2960, %v2964
    %v2969 = vmul.f32 %v2329, %v1240
    %v2970 = vmul.f32 %v2329, %v1245
    %v2971 = vmul.f32 %v2329, %v1250
    %v2972 = vmul.f32 %v2329, %v1255
    %v2973 = vadd.f32 %v2965, %v2969
    %v2974 = vadd.f32 %v2966, %v2970
    %v2975 = vadd.f32 %v2967, %v2971
    %v2976 = vadd.f32 %v2968, %v2972
    %v2977 = vmul.f32 %v2973, %v2397
    %v2978 = vmul.f32 %v2974, %v2397
    %v2979 = vmul.f32 %v2975, %v2397
    %v2980 = vmul.f32 %v2976, %v2397
    %v2981 = vmax.f32 %v2977, 0.0
    %v2982 = vmax.f32 %v2978, 0.0
    %v2983 = vmax.f32 %v2979, 0.0
    %v2984 = vmax.f32 %v2980, 0.0
    %2985 = vmatprep.subr.mxu0 0.0
    %2986 = vmatpush1.msra.mxu0 %v2981
    %2987 = vmatprep.subr.mxu0 0.0
    %2988 = vmatpush1.msra.mxu0 %v2982
    %2989 = vmatprep.subr.mxu0 0.0
    %2990 = vmatpush1.msra.mxu0 %v2983
    %2991 = vmatprep.subr.mxu0 0.0
    %2992 = vmatpush1.msra.mxu0 %v2984
    %2993 = vmatprep.subr.mxu0 0.0
    %2994 = vmatpush1.msra.mxu0 0.0
    %2995 = vmatprep.subr.mxu0 0.0
    %2996 = vmatpush1.msra.mxu0 0.0
    %2997 = vmatprep.subr.mxu0 0.0
    %2998 = vmatpush1.msra.mxu0 0.0
    %2999 = vmatprep.subr.mxu0 0.0
    %3000 = vmatpush1.msra.mxu0 0.0
    %3001 = vmatprep.subr.mxu0 0.0
    %3002 = vmatpush1.msra.mxu0 0.0
    %3003 = vmatprep.subr.mxu0 0.0
    %3004 = vmatpush1.msra.mxu0 0.0
    %3005 = vmatprep.subr.mxu0 0.0
    %3006 = vmatpush1.msra.mxu0 0.0
    %3007 = vmatprep.subr.mxu0 0.0
    %3008 = vmatpush1.msra.mxu0 0.0
    %3009 = vmatprep.subr.mxu0 0.0
    %3010 = vmatpush1.msra.mxu0 0.0
    %3011 = vmatprep.subr.mxu0 0.0
    %3012 = vmatpush1.msra.mxu0 0.0
    %3013 = vmatprep.subr.mxu0 0.0
    %3014 = vmatpush1.msra.mxu0 0.0
    %3015 = vmatprep.subr.mxu0 0.0
    %3016 = vmatpush1.msra.mxu0 0.0
    %3017 = vmatprep.subr.mxu0 0.0
    %3018 = vmatpush1.msra.mxu0 0.0
    %3019 = vmatprep.subr.mxu0 0.0
    %3020 = vmatpush1.msra.mxu0 0.0
    %3021 = vmatprep.subr.mxu0 0.0
    %3022 = vmatpush1.msra.mxu0 0.0
    %3023 = vmatprep.subr.mxu0 0.0
    %3024 = vmatpush1.msra.mxu0 0.0
    %3025 = vmatprep.subr.mxu0 0.0
    %3026 = vmatpush1.msra.mxu0 0.0
    %3027 = vmatprep.subr.mxu0 0.0
    %3028 = vmatpush1.msra.mxu0 0.0
    %3029 = vmatprep.subr.mxu0 0.0
    %3030 = vmatpush1.msra.mxu0 0.0
    %3031 = vmatprep.subr.mxu0 0.0
    %3032 = vmatpush1.msra.mxu0 0.0
    %3033 = vmatprep.subr.mxu0 0.0
    %3034 = vmatpush1.msra.mxu0 0.0
    %3035 = vmatprep.subr.mxu0 0.0
    %3036 = vmatpush1.msra.mxu0 0.0
    %3037 = vmatprep.subr.mxu0 0.0
    %3038 = vmatpush1.msra.mxu0 0.0
    %3039 = vmatprep.subr.mxu0 0.0
    %3040 = vmatpush1.msra.mxu0 0.0
    %3041 = vmatprep.subr.mxu0 0.0
    %3042 = vmatpush1.msra.mxu0 0.0
    %3043 = vmatprep.subr.mxu0 0.0
    %3044 = vmatpush1.msra.mxu0 0.0
    %3045 = vmatprep.subr.mxu0 0.0
    %3046 = vmatpush1.msra.mxu0 0.0
    %3047 = vmatprep.subr.mxu0 0.0
    %3048 = vmatpush1.msra.mxu0 0.0
    %3049 = vmatprep.mubr.f32.mxu0 0.0
    %3050 = vmatmul.mubr.f32.gmra.mrb[0].mxu0 %v2491
    %v3051 = vpop.f32.mrb[0].mxu0
    %v3052 = vadd.f32 %v2473, %v3051
    %v3053 = vpop.f32.mrb[0].mxu0
    %3054 = vmatprep.mubr.f32.mxu0 0.0
    %3055 = vmatmul.mubr.f32.gmra.mrb[0].mxu0 %v2494
    %v3056 = vpop.f32.mrb[0].mxu0
    %v3057 = vadd.f32 %v2478, %v3056
    %v3058 = vpop.f32.mrb[0].mxu0
    %3059 = vmatprep.mubr.f32.mxu0 0.0
    %3060 = vmatmul.mubr.f32.gmra.mrb[0].mxu0 %v2497
    %v3061 = vpop.f32.mrb[0].mxu0
    %v3062 = vadd.f32 %v2483, %v3061
    %v3063 = vpop.f32.mrb[0].mxu0
    %3064 = vmatprep.mubr.f32.mxu0 0.0
    %3065 = vmatmul.mubr.f32.gmra.mrb[0].mxu0 %v2500
    %v3066 = vpop.f32.mrb[0].mxu0
    %v3067 = vadd.f32 %v2488, %v3066
    %v3068 = vpop.f32.mrb[0].mxu0
    %3069 = vdwg.mxu0
    %v3070 = vadd.f32 %v2913, %v93
    %v3071 = vadd.f32 %v2914, %v94
    %v3072 = vadd.f32 %v2915, %v95
    %v3073 = vadd.f32 %v2916, %v96
    %v3074 = vadd.f32 %v3070, %v3052
    %v3075 = vadd.f32 %v3071, %v3057
    %v3076 = vadd.f32 %v3072, %v3062
    %v3077 = vadd.f32 %v3073, %v3067
    %v3078 = vmul.f32 %v2163, %v337
    %v3079 = vmul.f32 %v2163, %v342
    %v3080 = vmul.f32 %v2163, %v347
    %v3081 = vmul.f32 %v2163, %v352
    %v3082 = vmul.f32 %v2187, %v466
    %v3083 = vmul.f32 %v2187, %v471
    %v3084 = vmul.f32 %v2187, %v476
    %v3085 = vmul.f32 %v2187, %v481
    %v3086 = vadd.f32 %v3078, %v3082
    %v3087 = vadd.f32 %v3079, %v3083
    %v3088 = vadd.f32 %v3080, %v3084
    %v3089 = vadd.f32 %v3081, %v3085
    %v3090 = vmul.f32 %v2211, %v595
    %v3091 = vmul.f32 %v2211, %v600
    %v3092 = vmul.f32 %v2211, %v605
    %v3093 = vmul.f32 %v2211, %v610
    %v3094 = vadd.f32 %v3086, %v3090
    %v3095 = vadd.f32 %v3087, %v3091
    %v3096 = vadd.f32 %v3088, %v3092
    %v3097 = vadd.f32 %v3089, %v3093
    %v3098 = vmul.f32 %v2235, %v724
    %v3099 = vmul.f32 %v2235, %v729
    %v3100 = vmul.f32 %v2235, %v734
    %v3101 = vmul.f32 %v2235, %v739
    %v3102 = vadd.f32 %v3094, %v3098
    %v3103 = vadd.f32 %v3095, %v3099
    %v3104 = vadd.f32 %v3096, %v3100
    %v3105 = vadd.f32 %v3097, %v3101
    %v3106 = vmul.f32 %v2259, %v853
    %v3107 = vmul.f32 %v2259, %v858
    %v3108 = vmul.f32 %v2259, %v863
    %v3109 = vmul.f32 %v2259, %v868
    %v3110 = vadd.f32 %v3102, %v3106
    %v3111 = vadd.f32 %v3103, %v3107
    %v3112 = vadd.f32 %v3104, %v3108
    %v3113 = vadd.f32 %v3105, %v3109
    %v3114 = vmul.f32 %v2283, %v982
    %v3115 = vmul.f32 %v2283, %v987
    %v3116 = vmul.f32 %v2283, %v992
    %v3117 = vmul.f32 %v2283, %v997
    %v3118 = vadd.f32 %v3110, %v3114
    %v3119 = vadd.f32 %v3111, %v3115
    %v3120 = vadd.f32 %v3112, %v3116
    %v3121 = vadd.f32 %v3113, %v3117
    %v3122 = vmul.f32 %v2307, %v1111
    %v3123 = vmul.f32 %v2307, %v1116
    %v3124 = vmul.f32 %v2307, %v1121
    %v3125 = vmul.f32 %v2307, %v1126
    %v3126 = vadd.f32 %v3118, %v3122
    %v3127 = vadd.f32 %v3119, %v3123
    %v3128 = vadd.f32 %v3120, %v3124
    %v3129 = vadd.f32 %v3121, %v3125
    %v3130 = vmul.f32 %v2331, %v1240
    %v3131 = vmul.f32 %v2331, %v1245
    %v3132 = vmul.f32 %v2331, %v1250
    %v3133 = vmul.f32 %v2331, %v1255
    %v3134 = vadd.f32 %v3126, %v3130
    %v3135 = vadd.f32 %v3127, %v3131
    %v3136 = vadd.f32 %v3128, %v3132
    %v3137 = vadd.f32 %v3129, %v3133
    %v3138 = vmul.f32 %v3134, %v2398
    %v3139 = vmul.f32 %v3135, %v2398
    %v3140 = vmul.f32 %v3136, %v2398
    %v3141 = vmul.f32 %v3137, %v2398
    %v3142 = vmax.f32 %v3138, 0.0
    %v3143 = vmax.f32 %v3139, 0.0
    %v3144 = vmax.f32 %v3140, 0.0
    %v3145 = vmax.f32 %v3141, 0.0
    %3146 = vmatprep.subr.mxu0 0.0
    %3147 = vmatpush1.msra.mxu0 %v3142
    %3148 = vmatprep.subr.mxu0 0.0
    %3149 = vmatpush1.msra.mxu0 %v3143
    %3150 = vmatprep.subr.mxu0 0.0
    %3151 = vmatpush1.msra.mxu0 %v3144
    %3152 = vmatprep.subr.mxu0 0.0
    %3153 = vmatpush1.msra.mxu0 %v3145
    %3154 = vmatprep.subr.mxu0 0.0
    %3155 = vmatpush1.msra.mxu0 0.0
    %3156 = vmatprep.subr.mxu0 0.0
    %3157 = vmatpush1.msra.mxu0 0.0
    %3158 = vmatprep.subr.mxu0 0.0
    %3159 = vmatpush1.msra.mxu0 0.0
    %3160 = vmatprep.subr.mxu0 0.0
    %3161 = vmatpush1.msra.mxu0 0.0
    %3162 = vmatprep.subr.mxu0 0.0
    %3163 = vmatpush1.msra.mxu0 0.0
    %3164 = vmatprep.subr.mxu0 0.0
    %3165 = vmatpush1.msra.mxu0 0.0
    %3166 = vmatprep.subr.mxu0 0.0
    %3167 = vmatpush1.msra.mxu0 0.0
    %3168 = vmatprep.subr.mxu0 0.0
    %3169 = vmatpush1.msra.mxu0 0.0
    %3170 = vmatprep.subr.mxu0 0.0
    %3171 = vmatpush1.msra.mxu0 0.0
    %3172 = vmatprep.subr.mxu0 0.0
    %3173 = vmatpush1.msra.mxu0 0.0
    %3174 = vmatprep.subr.mxu0 0.0
    %3175 = vmatpush1.msra.mxu0 0.0
    %3176 = vmatprep.subr.mxu0 0.0
    %3177 = vmatpush1.msra.mxu0 0.0
    %3178 = vmatprep.subr.mxu0 0.0
    %3179 = vmatpush1.msra.mxu0 0.0
    %3180 = vmatprep.subr.mxu0 0.0
    %3181 = vmatpush1.msra.mxu0 0.0
    %3182 = vmatprep.subr.mxu0 0.0
    %3183 = vmatpush1.msra.mxu0 0.0
    %3184 = vmatprep.subr.mxu0 0.0
    %3185 = vmatpush1.msra.mxu0 0.0
    %3186 = vmatprep.subr.mxu0 0.0
    %3187 = vmatpush1.msra.mxu0 0.0
    %3188 = vmatprep.subr.mxu0 0.0
    %3189 = vmatpush1.msra.mxu0 0.0
    %3190 = vmatprep.subr.mxu0 0.0
    %3191 = vmatpush1.msra.mxu0 0.0
    %3192 = vmatprep.subr.mxu0 0.0
    %3193 = vmatpush1.msra.mxu0 0.0
    %3194 = vmatprep.subr.mxu0 0.0
    %3195 = vmatpush1.msra.mxu0 0.0
    %3196 = vmatprep.subr.mxu0 0.0
    %3197 = vmatpush1.msra.mxu0 0.0
    %3198 = vmatprep.subr.mxu0 0.0
    %3199 = vmatpush1.msra.mxu0 0.0
    %3200 = vmatprep.subr.mxu0 0.0
    %3201 = vmatpush1.msra.mxu0 0.0
    %3202 = vmatprep.subr.mxu0 0.0
    %3203 = vmatpush1.msra.mxu0 0.0
    %3204 = vmatprep.subr.mxu0 0.0
    %3205 = vmatpush1.msra.mxu0 0.0
    %3206 = vmatprep.subr.mxu0 0.0
    %3207 = vmatpush1.msra.mxu0 0.0
    %3208 = vmatprep.subr.mxu0 0.0
    %3209 = vmatpush1.msra.mxu0 0.0
    %3210 = vmatprep.mubr.f32.mxu0 0.0
    %3211 = vmatmul.mubr.f32.gmra.mrb[0].mxu0 %v2491
    %v3212 = vpop.f32.mrb[0].mxu0
    %v3213 = vadd.f32 %v2473, %v3212
    %v3214 = vpop.f32.mrb[0].mxu0
    %3215 = vmatprep.mubr.f32.mxu0 0.0
    %3216 = vmatmul.mubr.f32.gmra.mrb[0].mxu0 %v2494
    %v3217 = vpop.f32.mrb[0].mxu0
    %v3218 = vadd.f32 %v2478, %v3217
    %v3219 = vpop.f32.mrb[0].mxu0
    %3220 = vmatprep.mubr.f32.mxu0 0.0
    %3221 = vmatmul.mubr.f32.gmra.mrb[0].mxu0 %v2497
    %v3222 = vpop.f32.mrb[0].mxu0
    %v3223 = vadd.f32 %v2483, %v3222
    %v3224 = vpop.f32.mrb[0].mxu0
    %3225 = vmatprep.mubr.f32.mxu0 0.0
    %3226 = vmatmul.mubr.f32.gmra.mrb[0].mxu0 %v2500
    %v3227 = vpop.f32.mrb[0].mxu0
    %v3228 = vadd.f32 %v2488, %v3227
    %v3229 = vpop.f32.mrb[0].mxu0
    %3230 = vdwg.mxu0
    %v3231 = vadd.f32 %v3074, %v97
    %v3232 = vadd.f32 %v3075, %v98
    %v3233 = vadd.f32 %v3076, %v99
    %v3234 = vadd.f32 %v3077, %v100
    %v3235 = vadd.f32 %v3231, %v3213
    %v3236 = vadd.f32 %v3232, %v3218
    %v3237 = vadd.f32 %v3233, %v3223
    %v3238 = vadd.f32 %v3234, %v3228
    %v3239 = vmul.f32 %v2165, %v337
    %v3240 = vmul.f32 %v2165, %v342
    %v3241 = vmul.f32 %v2165, %v347
    %v3242 = vmul.f32 %v2165, %v352
    %v3243 = vmul.f32 %v2189, %v466
    %v3244 = vmul.f32 %v2189, %v471
    %v3245 = vmul.f32 %v2189, %v476
    %v3246 = vmul.f32 %v2189, %v481
    %v3247 = vadd.f32 %v3239, %v3243
    %v3248 = vadd.f32 %v3240, %v3244
    %v3249 = vadd.f32 %v3241, %v3245
    %v3250 = vadd.f32 %v3242, %v3246
    %v3251 = vmul.f32 %v2213, %v595
    %v3252 = vmul.f32 %v2213, %v600
    %v3253 = vmul.f32 %v2213, %v605
    %v3254 = vmul.f32 %v2213, %v610
    %v3255 = vadd.f32 %v3247, %v3251
    %v3256 = vadd.f32 %v3248, %v3252
    %v3257 = vadd.f32 %v3249, %v3253
    %v3258 = vadd.f32 %v3250, %v3254
    %v3259 = vmul.f32 %v2237, %v724
    %v3260 = vmul.f32 %v2237, %v729
    %v3261 = vmul.f32 %v2237, %v734
    %v3262 = vmul.f32 %v2237, %v739
    %v3263 = vadd.f32 %v3255, %v3259
    %v3264 = vadd.f32 %v3256, %v3260
    %v3265 = vadd.f32 %v3257, %v3261
    %v3266 = vadd.f32 %v3258, %v3262
    %v3267 = vmul.f32 %v2261, %v853
    %v3268 = vmul.f32 %v2261, %v858
    %v3269 = vmul.f32 %v2261, %v863
    %v3270 = vmul.f32 %v2261, %v868
    %v3271 = vadd.f32 %v3263, %v3267
    %v3272 = vadd.f32 %v3264, %v3268
    %v3273 = vadd.f32 %v3265, %v3269
    %v3274 = vadd.f32 %v3266, %v3270
    %v3275 = vmul.f32 %v2285, %v982
    %v3276 = vmul.f32 %v2285, %v987
    %v3277 = vmul.f32 %v2285, %v992
    %v3278 = vmul.f32 %v2285, %v997
    %v3279 = vadd.f32 %v3271, %v3275
    %v3280 = vadd.f32 %v3272, %v3276
    %v3281 = vadd.f32 %v3273, %v3277
    %v3282 = vadd.f32 %v3274, %v3278
    %v3283 = vmul.f32 %v2309, %v1111
    %v3284 = vmul.f32 %v2309, %v1116
    %v3285 = vmul.f32 %v2309, %v1121
    %v3286 = vmul.f32 %v2309, %v1126
    %v3287 = vadd.f32 %v3279, %v3283
    %v3288 = vadd.f32 %v3280, %v3284
    %v3289 = vadd.f32 %v3281, %v3285
    %v3290 = vadd.f32 %v3282, %v3286
    %v3291 = vmul.f32 %v2333, %v1240
    %v3292 = vmul.f32 %v2333, %v1245
    %v3293 = vmul.f32 %v2333, %v1250
    %v3294 = vmul.f32 %v2333, %v1255
    %v3295 = vadd.f32 %v3287, %v3291
    %v3296 = vadd.f32 %v3288, %v3292
    %v3297 = vadd.f32 %v3289, %v3293
    %v3298 = vadd.f32 %v3290, %v3294
    %v3299 = vmul.f32 %v3295, %v2399
    %v3300 = vmul.f32 %v3296, %v2399
    %v3301 = vmul.f32 %v3297, %v2399
    %v3302 = vmul.f32 %v3298, %v2399
    %v3303 = vmax.f32 %v3299, 0.0
    %v3304 = vmax.f32 %v3300, 0.0
    %v3305 = vmax.f32 %v3301, 0.0
    %v3306 = vmax.f32 %v3302, 0.0
    %3307 = vmatprep.subr.mxu0 0.0
    %3308 = vmatpush1.msra.mxu0 %v3303
    %3309 = vmatprep.subr.mxu0 0.0
    %3310 = vmatpush1.msra.mxu0 %v3304
    %3311 = vmatprep.subr.mxu0 0.0
    %3312 = vmatpush1.msra.mxu0 %v3305
    %3313 = vmatprep.subr.mxu0 0.0
    %3314 = vmatpush1.msra.mxu0 %v3306
    %3315 = vmatprep.subr.mxu0 0.0
    %3316 = vmatpush1.msra.mxu0 0.0
    %3317 = vmatprep.subr.mxu0 0.0
    %3318 = vmatpush1.msra.mxu0 0.0
    %3319 = vmatprep.subr.mxu0 0.0
    %3320 = vmatpush1.msra.mxu0 0.0
    %3321 = vmatprep.subr.mxu0 0.0
    %3322 = vmatpush1.msra.mxu0 0.0
    %3323 = vmatprep.subr.mxu0 0.0
    %3324 = vmatpush1.msra.mxu0 0.0
    %3325 = vmatprep.subr.mxu0 0.0
    %3326 = vmatpush1.msra.mxu0 0.0
    %3327 = vmatprep.subr.mxu0 0.0
    %3328 = vmatpush1.msra.mxu0 0.0
    %3329 = vmatprep.subr.mxu0 0.0
    %3330 = vmatpush1.msra.mxu0 0.0
    %3331 = vmatprep.subr.mxu0 0.0
    %3332 = vmatpush1.msra.mxu0 0.0
    %3333 = vmatprep.subr.mxu0 0.0
    %3334 = vmatpush1.msra.mxu0 0.0
    %3335 = vmatprep.subr.mxu0 0.0
    %3336 = vmatpush1.msra.mxu0 0.0
    %3337 = vmatprep.subr.mxu0 0.0
    %3338 = vmatpush1.msra.mxu0 0.0
    %3339 = vmatprep.subr.mxu0 0.0
    %3340 = vmatpush1.msra.mxu0 0.0
    %3341 = vmatprep.subr.mxu0 0.0
    %3342 = vmatpush1.msra.mxu0 0.0
    %3343 = vmatprep.subr.mxu0 0.0
    %3344 = vmatpush1.msra.mxu0 0.0
    %3345 = vmatprep.subr.mxu0 0.0
    %3346 = vmatpush1.msra.mxu0 0.0
    %3347 = vmatprep.subr.mxu0 0.0
    %3348 = vmatpush1.msra.mxu0 0.0
    %3349 = vmatprep.subr.mxu0 0.0
    %3350 = vmatpush1.msra.mxu0 0.0
    %3351 = vmatprep.subr.mxu0 0.0
    %3352 = vmatpush1.msra.mxu0 0.0
    %3353 = vmatprep.subr.mxu0 0.0
    %3354 = vmatpush1.msra.mxu0 0.0
    %3355 = vmatprep.subr.mxu0 0.0
    %3356 = vmatpush1.msra.mxu0 0.0
    %3357 = vmatprep.subr.mxu0 0.0
    %3358 = vmatpush1.msra.mxu0 0.0
    %3359 = vmatprep.subr.mxu0 0.0
    %3360 = vmatpush1.msra.mxu0 0.0
    %3361 = vmatprep.subr.mxu0 0.0
    %3362 = vmatpush1.msra.mxu0 0.0
    %3363 = vmatprep.subr.mxu0 0.0
    %3364 = vmatpush1.msra.mxu0 0.0
    %3365 = vmatprep.subr.mxu0 0.0
    %3366 = vmatpush1.msra.mxu0 0.0
    %3367 = vmatprep.subr.mxu0 0.0
    %3368 = vmatpush1.msra.mxu0 0.0
    %3369 = vmatprep.subr.mxu0 0.0
    %3370 = vmatpush1.msra.mxu0 0.0
    %3371 = vmatprep.mubr.f32.mxu0 0.0
    %3372 = vmatmul.mubr.f32.gmra.mrb[0].mxu0 %v2491
    %v3373 = vpop.f32.mrb[0].mxu0
    %v3374 = vadd.f32 %v2473, %v3373
    %v3375 = vpop.f32.mrb[0].mxu0
    %3376 = vmatprep.mubr.f32.mxu0 0.0
    %3377 = vmatmul.mubr.f32.gmra.mrb[0].mxu0 %v2494
    %v3378 = vpop.f32.mrb[0].mxu0
    %v3379 = vadd.f32 %v2478, %v3378
    %v3380 = vpop.f32.mrb[0].mxu0
    %3381 = vmatprep.mubr.f32.mxu0 0.0
    %3382 = vmatmul.mubr.f32.gmra.mrb[0].mxu0 %v2497
    %v3383 = vpop.f32.mrb[0].mxu0
    %v3384 = vadd.f32 %v2483, %v3383
    %v3385 = vpop.f32.mrb[0].mxu0
    %3386 = vmatprep.mubr.f32.mxu0 0.0
    %3387 = vmatmul.mubr.f32.gmra.mrb[0].mxu0 %v2500
    %v3388 = vpop.f32.mrb[0].mxu0
    %v3389 = vadd.f32 %v2488, %v3388
    %v3390 = vpop.f32.mrb[0].mxu0
    %3391 = vdwg.mxu0
    %v3392 = vadd.f32 %v3235, %v101
    %v3393 = vadd.f32 %v3236, %v102
    %v3394 = vadd.f32 %v3237, %v103
    %v3395 = vadd.f32 %v3238, %v104
    %v3396 = vadd.f32 %v3392, %v3374
    %v3397 = vadd.f32 %v3393, %v3379
    %v3398 = vadd.f32 %v3394, %v3384
    %v3399 = vadd.f32 %v3395, %v3389
    %v3400 = vmul.f32 %v2167, %v337
    %v3401 = vmul.f32 %v2167, %v342
    %v3402 = vmul.f32 %v2167, %v347
    %v3403 = vmul.f32 %v2167, %v352
    %v3404 = vmul.f32 %v2191, %v466
    %v3405 = vmul.f32 %v2191, %v471
    %v3406 = vmul.f32 %v2191, %v476
    %v3407 = vmul.f32 %v2191, %v481
    %v3408 = vadd.f32 %v3400, %v3404
    %v3409 = vadd.f32 %v3401, %v3405
    %v3410 = vadd.f32 %v3402, %v3406
    %v3411 = vadd.f32 %v3403, %v3407
    %v3412 = vmul.f32 %v2215, %v595
    %v3413 = vmul.f32 %v2215, %v600
    %v3414 = vmul.f32 %v2215, %v605
    %v3415 = vmul.f32 %v2215, %v610
    %v3416 = vadd.f32 %v3408, %v3412
    %v3417 = vadd.f32 %v3409, %v3413
    %v3418 = vadd.f32 %v3410, %v3414
    %v3419 = vadd.f32 %v3411, %v3415
    %v3420 = vmul.f32 %v2239, %v724
    %v3421 = vmul.f32 %v2239, %v729
    %v3422 = vmul.f32 %v2239, %v734
    %v3423 = vmul.f32 %v2239, %v739
    %v3424 = vadd.f32 %v3416, %v3420
    %v3425 = vadd.f32 %v3417, %v3421
    %v3426 = vadd.f32 %v3418, %v3422
    %v3427 = vadd.f32 %v3419, %v3423
    %v3428 = vmul.f32 %v2263, %v853
    %v3429 = vmul.f32 %v2263, %v858
    %v3430 = vmul.f32 %v2263, %v863
    %v3431 = vmul.f32 %v2263, %v868
    %v3432 = vadd.f32 %v3424, %v3428
    %v3433 = vadd.f32 %v3425, %v3429
    %v3434 = vadd.f32 %v3426, %v3430
    %v3435 = vadd.f32 %v3427, %v3431
    %v3436 = vmul.f32 %v2287, %v982
    %v3437 = vmul.f32 %v2287, %v987
    %v3438 = vmul.f32 %v2287, %v992
    %v3439 = vmul.f32 %v2287, %v997
    %v3440 = vadd.f32 %v3432, %v3436
    %v3441 = vadd.f32 %v3433, %v3437
    %v3442 = vadd.f32 %v3434, %v3438
    %v3443 = vadd.f32 %v3435, %v3439
    %v3444 = vmul.f32 %v2311, %v1111
    %v3445 = vmul.f32 %v2311, %v1116
    %v3446 = vmul.f32 %v2311, %v1121
    %v3447 = vmul.f32 %v2311, %v1126
    %v3448 = vadd.f32 %v3440, %v3444
    %v3449 = vadd.f32 %v3441, %v3445
    %v3450 = vadd.f32 %v3442, %v3446
    %v3451 = vadd.f32 %v3443, %v3447
    %v3452 = vmul.f32 %v2335, %v1240
    %v3453 = vmul.f32 %v2335, %v1245
    %v3454 = vmul.f32 %v2335, %v1250
    %v3455 = vmul.f32 %v2335, %v1255
    %v3456 = vadd.f32 %v3448, %v3452
    %v3457 = vadd.f32 %v3449, %v3453
    %v3458 = vadd.f32 %v3450, %v3454
    %v3459 = vadd.f32 %v3451, %v3455
    %v3460 = vmul.f32 %v3456, %v2400
    %v3461 = vmul.f32 %v3457, %v2400
    %v3462 = vmul.f32 %v3458, %v2400
    %v3463 = vmul.f32 %v3459, %v2400
    %v3464 = vmax.f32 %v3460, 0.0
    %v3465 = vmax.f32 %v3461, 0.0
    %v3466 = vmax.f32 %v3462, 0.0
    %v3467 = vmax.f32 %v3463, 0.0
    %3468 = vmatprep.subr.mxu0 0.0
    %3469 = vmatpush1.msra.mxu0 %v3464
    %3470 = vmatprep.subr.mxu0 0.0
    %3471 = vmatpush1.msra.mxu0 %v3465
    %3472 = vmatprep.subr.mxu0 0.0
    %3473 = vmatpush1.msra.mxu0 %v3466
    %3474 = vmatprep.subr.mxu0 0.0
    %3475 = vmatpush1.msra.mxu0 %v3467
    %3476 = vmatprep.subr.mxu0 0.0
    %3477 = vmatpush1.msra.mxu0 0.0
    %3478 = vmatprep.subr.mxu0 0.0
    %3479 = vmatpush1.msra.mxu0 0.0
    %3480 = vmatprep.subr.mxu0 0.0
    %3481 = vmatpush1.msra.mxu0 0.0
    %3482 = vmatprep.subr.mxu0 0.0
    %3483 = vmatpush1.msra.mxu0 0.0
    %3484 = vmatprep.subr.mxu0 0.0
    %3485 = vmatpush1.msra.mxu0 0.0
    %3486 = vmatprep.subr.mxu0 0.0
    %3487 = vmatpush1.msra.mxu0 0.0
    %3488 = vmatprep.subr.mxu0 0.0
    %3489 = vmatpush1.msra.mxu0 0.0
    %3490 = vmatprep.subr.mxu0 0.0
    %3491 = vmatpush1.msra.mxu0 0.0
    %3492 = vmatprep.subr.mxu0 0.0
    %3493 = vmatpush1.msra.mxu0 0.0
    %3494 = vmatprep.subr.mxu0 0.0
    %3495 = vmatpush1.msra.mxu0 0.0
    %3496 = vmatprep.subr.mxu0 0.0
    %3497 = vmatpush1.msra.mxu0 0.0
    %3498 = vmatprep.subr.mxu0 0.0
    %3499 = vmatpush1.msra.mxu0 0.0
    %3500 = vmatprep.subr.mxu0 0.0
    %3501 = vmatpush1.msra.mxu0 0.0
    %3502 = vmatprep.subr.mxu0 0.0
    %3503 = vmatpush1.msra.mxu0 0.0
    %3504 = vmatprep.subr.mxu0 0.0
    %3505 = vmatpush1.msra.mxu0 0.0
    %3506 = vmatprep.subr.mxu0 0.0
    %3507 = vmatpush1.msra.mxu0 0.0
    %3508 = vmatprep.subr.mxu0 0.0
    %3509 = vmatpush1.msra.mxu0 0.0
    %3510 = vmatprep.subr.mxu0 0.0
    %3511 = vmatpush1.msra.mxu0 0.0
    %3512 = vmatprep.subr.mxu0 0.0
    %3513 = vmatpush1.msra.mxu0 0.0
    %3514 = vmatprep.subr.mxu0 0.0
    %3515 = vmatpush1.msra.mxu0 0.0
    %3516 = vmatprep.subr.mxu0 0.0
    %3517 = vmatpush1.msra.mxu0 0.0
    %3518 = vmatprep.subr.mxu0 0.0
    %3519 = vmatpush1.msra.mxu0 0.0
    %3520 = vmatprep.subr.mxu0 0.0
    %3521 = vmatpush1.msra.mxu0 0.0
    %3522 = vmatprep.subr.mxu0 0.0
    %3523 = vmatpush1.msra.mxu0 0.0
    %3524 = vmatprep.subr.mxu0 0.0
    %3525 = vmatpush1.msra.mxu0 0.0
    %3526 = vmatprep.subr.mxu0 0.0
    %3527 = vmatpush1.msra.mxu0 0.0
    %3528 = vmatprep.subr.mxu0 0.0
    %3529 = vmatpush1.msra.mxu0 0.0
    %3530 = vmatprep.subr.mxu0 0.0
    %3531 = vmatpush1.msra.mxu0 0.0
    %3532 = vmatprep.mubr.f32.mxu0 0.0
    %3533 = vmatmul.mubr.f32.gmra.mrb[0].mxu0 %v2491
    %v3534 = vpop.f32.mrb[0].mxu0
    %v3535 = vadd.f32 %v2473, %v3534
    %v3536 = vpop.f32.mrb[0].mxu0
    %3537 = vmatprep.mubr.f32.mxu0 0.0
    %3538 = vmatmul.mubr.f32.gmra.mrb[0].mxu0 %v2494
    %v3539 = vpop.f32.mrb[0].mxu0
    %v3540 = vadd.f32 %v2478, %v3539
    %v3541 = vpop.f32.mrb[0].mxu0
    %3542 = vmatprep.mubr.f32.mxu0 0.0
    %3543 = vmatmul.mubr.f32.gmra.mrb[0].mxu0 %v2497
    %v3544 = vpop.f32.mrb[0].mxu0
    %v3545 = vadd.f32 %v2483, %v3544
    %v3546 = vpop.f32.mrb[0].mxu0
    %3547 = vmatprep.mubr.f32.mxu0 0.0
    %3548 = vmatmul.mubr.f32.gmra.mrb[0].mxu0 %v2500
    %v3549 = vpop.f32.mrb[0].mxu0
    %v3550 = vadd.f32 %v2488, %v3549
    %v3551 = vpop.f32.mrb[0].mxu0
    %3552 = vdwg.mxu0
    %v3553 = vadd.f32 %v3396, %v105
    %v3554 = vadd.f32 %v3397, %v106
    %v3555 = vadd.f32 %v3398, %v107
    %v3556 = vadd.f32 %v3399, %v108
    %v3557 = vadd.f32 %v3553, %v3535
    %v3558 = vadd.f32 %v3554, %v3540
    %v3559 = vadd.f32 %v3555, %v3545
    %v3560 = vadd.f32 %v3556, %v3550
    %v3561 = vmul.f32 %v2169, %v337
    %v3562 = vmul.f32 %v2169, %v342
    %v3563 = vmul.f32 %v2169, %v347
    %v3564 = vmul.f32 %v2169, %v352
    %v3565 = vmul.f32 %v2193, %v466
    %v3566 = vmul.f32 %v2193, %v471
    %v3567 = vmul.f32 %v2193, %v476
    %v3568 = vmul.f32 %v2193, %v481
    %v3569 = vadd.f32 %v3561, %v3565
    %v3570 = vadd.f32 %v3562, %v3566
    %v3571 = vadd.f32 %v3563, %v3567
    %v3572 = vadd.f32 %v3564, %v3568
    %v3573 = vmul.f32 %v2217, %v595
    %v3574 = vmul.f32 %v2217, %v600
    %v3575 = vmul.f32 %v2217, %v605
    %v3576 = vmul.f32 %v2217, %v610
    %v3577 = vadd.f32 %v3569, %v3573
    %v3578 = vadd.f32 %v3570, %v3574
    %v3579 = vadd.f32 %v3571, %v3575
    %v3580 = vadd.f32 %v3572, %v3576
    %v3581 = vmul.f32 %v2241, %v724
    %v3582 = vmul.f32 %v2241, %v729
    %v3583 = vmul.f32 %v2241, %v734
    %v3584 = vmul.f32 %v2241, %v739
    %v3585 = vadd.f32 %v3577, %v3581
    %v3586 = vadd.f32 %v3578, %v3582
    %v3587 = vadd.f32 %v3579, %v3583
    %v3588 = vadd.f32 %v3580, %v3584
    %v3589 = vmul.f32 %v2265, %v853
    %v3590 = vmul.f32 %v2265, %v858
    %v3591 = vmul.f32 %v2265, %v863
    %v3592 = vmul.f32 %v2265, %v868
    %v3593 = vadd.f32 %v3585, %v3589
    %v3594 = vadd.f32 %v3586, %v3590
    %v3595 = vadd.f32 %v3587, %v3591
    %v3596 = vadd.f32 %v3588, %v3592
    %v3597 = vmul.f32 %v2289, %v982
    %v3598 = vmul.f32 %v2289, %v987
    %v3599 = vmul.f32 %v2289, %v992
    %v3600 = vmul.f32 %v2289, %v997
    %v3601 = vadd.f32 %v3593, %v3597
    %v3602 = vadd.f32 %v3594, %v3598
    %v3603 = vadd.f32 %v3595, %v3599
    %v3604 = vadd.f32 %v3596, %v3600
    %v3605 = vmul.f32 %v2313, %v1111
    %v3606 = vmul.f32 %v2313, %v1116
    %v3607 = vmul.f32 %v2313, %v1121
    %v3608 = vmul.f32 %v2313, %v1126
    %v3609 = vadd.f32 %v3601, %v3605
    %v3610 = vadd.f32 %v3602, %v3606
    %v3611 = vadd.f32 %v3603, %v3607
    %v3612 = vadd.f32 %v3604, %v3608
    %v3613 = vmul.f32 %v2337, %v1240
    %v3614 = vmul.f32 %v2337, %v1245
    %v3615 = vmul.f32 %v2337, %v1250
    %v3616 = vmul.f32 %v2337, %v1255
    %v3617 = vadd.f32 %v3609, %v3613
    %v3618 = vadd.f32 %v3610, %v3614
    %v3619 = vadd.f32 %v3611, %v3615
    %v3620 = vadd.f32 %v3612, %v3616
    %v3621 = vmul.f32 %v3617, %v2401
    %v3622 = vmul.f32 %v3618, %v2401
    %v3623 = vmul.f32 %v3619, %v2401
    %v3624 = vmul.f32 %v3620, %v2401
    %v3625 = vmax.f32 %v3621, 0.0
    %v3626 = vmax.f32 %v3622, 0.0
    %v3627 = vmax.f32 %v3623, 0.0
    %v3628 = vmax.f32 %v3624, 0.0
    %3629 = vmatprep.subr.mxu0 0.0
    %3630 = vmatpush1.msra.mxu0 %v3625
    %3631 = vmatprep.subr.mxu0 0.0
    %3632 = vmatpush1.msra.mxu0 %v3626
    %3633 = vmatprep.subr.mxu0 0.0
    %3634 = vmatpush1.msra.mxu0 %v3627
    %3635 = vmatprep.subr.mxu0 0.0
    %3636 = vmatpush1.msra.mxu0 %v3628
    %3637 = vmatprep.subr.mxu0 0.0
    %3638 = vmatpush1.msra.mxu0 0.0
    %3639 = vmatprep.subr.mxu0 0.0
    %3640 = vmatpush1.msra.mxu0 0.0
    %3641 = vmatprep.subr.mxu0 0.0
    %3642 = vmatpush1.msra.mxu0 0.0
    %3643 = vmatprep.subr.mxu0 0.0
    %3644 = vmatpush1.msra.mxu0 0.0
    %3645 = vmatprep.subr.mxu0 0.0
    %3646 = vmatpush1.msra.mxu0 0.0
    %3647 = vmatprep.subr.mxu0 0.0
    %3648 = vmatpush1.msra.mxu0 0.0
    %3649 = vmatprep.subr.mxu0 0.0
    %3650 = vmatpush1.msra.mxu0 0.0
    %3651 = vmatprep.subr.mxu0 0.0
    %3652 = vmatpush1.msra.mxu0 0.0
    %3653 = vmatprep.subr.mxu0 0.0
    %3654 = vmatpush1.msra.mxu0 0.0
    %3655 = vmatprep.subr.mxu0 0.0
    %3656 = vmatpush1.msra.mxu0 0.0
    %3657 = vmatprep.subr.mxu0 0.0
    %3658 = vmatpush1.msra.mxu0 0.0
    %3659 = vmatprep.subr.mxu0 0.0
    %3660 = vmatpush1.msra.mxu0 0.0
    %3661 = vmatprep.subr.mxu0 0.0
    %3662 = vmatpush1.msra.mxu0 0.0
    %3663 = vmatprep.subr.mxu0 0.0
    %3664 = vmatpush1.msra.mxu0 0.0
    %3665 = vmatprep.subr.mxu0 0.0
    %3666 = vmatpush1.msra.mxu0 0.0
    %3667 = vmatprep.subr.mxu0 0.0
    %3668 = vmatpush1.msra.mxu0 0.0
    %3669 = vmatprep.subr.mxu0 0.0
    %3670 = vmatpush1.msra.mxu0 0.0
    %3671 = vmatprep.subr.mxu0 0.0
    %3672 = vmatpush1.msra.mxu0 0.0
    %3673 = vmatprep.subr.mxu0 0.0
    %3674 = vmatpush1.msra.mxu0 0.0
    %3675 = vmatprep.subr.mxu0 0.0
    %3676 = vmatpush1.msra.mxu0 0.0
    %3677 = vmatprep.subr.mxu0 0.0
    %3678 = vmatpush1.msra.mxu0 0.0
    %3679 = vmatprep.subr.mxu0 0.0
    %3680 = vmatpush1.msra.mxu0 0.0
    %3681 = vmatprep.subr.mxu0 0.0
    %3682 = vmatpush1.msra.mxu0 0.0
    %3683 = vmatprep.subr.mxu0 0.0
    %3684 = vmatpush1.msra.mxu0 0.0
    %3685 = vmatprep.subr.mxu0 0.0
    %3686 = vmatpush1.msra.mxu0 0.0
    %3687 = vmatprep.subr.mxu0 0.0
    %3688 = vmatpush1.msra.mxu0 0.0
    %3689 = vmatprep.subr.mxu0 0.0
    %3690 = vmatpush1.msra.mxu0 0.0
    %3691 = vmatprep.subr.mxu0 0.0
    %3692 = vmatpush1.msra.mxu0 0.0
    %3693 = vmatprep.mubr.f32.mxu0 0.0
    %3694 = vmatmul.mubr.f32.gmra.mrb[0].mxu0 %v2491
    %v3695 = vpop.f32.mrb[0].mxu0
    %v3696 = vadd.f32 %v2473, %v3695
    %v3697 = vpop.f32.mrb[0].mxu0
    %3698 = vmatprep.mubr.f32.mxu0 0.0
    %3699 = vmatmul.mubr.f32.gmra.mrb[0].mxu0 %v2494
    %v3700 = vpop.f32.mrb[0].mxu0
    %v3701 = vadd.f32 %v2478, %v3700
    %v3702 = vpop.f32.mrb[0].mxu0
    %3703 = vmatprep.mubr.f32.mxu0 0.0
    %3704 = vmatmul.mubr.f32.gmra.mrb[0].mxu0 %v2497
    %v3705 = vpop.f32.mrb[0].mxu0
    %v3706 = vadd.f32 %v2483, %v3705
    %v3707 = vpop.f32.mrb[0].mxu0
    %3708 = vmatprep.mubr.f32.mxu0 0.0
    %3709 = vmatmul.mubr.f32.gmra.mrb[0].mxu0 %v2500
    %v3710 = vpop.f32.mrb[0].mxu0
    %v3711 = vadd.f32 %v2488, %v3710
    %v3712 = vpop.f32.mrb[0].mxu0
    %3713 = vdwg.mxu0
    %v3714 = vadd.f32 %v3557, %v109
    %v3715 = vadd.f32 %v3558, %v110
    %v3716 = vadd.f32 %v3559, %v111
    %v3717 = vadd.f32 %v3560, %v112
    %v3718 = vadd.f32 %v3714, %v3696
    %v3719 = vadd.f32 %v3715, %v3701
    %v3720 = vadd.f32 %v3716, %v3706
    %v3721 = vadd.f32 %v3717, %v3711
    %v3722 = vmul.f32 %v3718, 0.125
    %v3723 = vmul.f32 %v3719, 0.125
    %v3724 = vmul.f32 %v3720, 0.125
    %v3725 = vmul.f32 %v3721, 0.125
    %v3726 = vld [vmem:[%s0] sm:$0xff]
    %v3727 = vld [vmem:[#allocation2] sm:$0xff]
    %v3728 = vld [vmem:[#allocation2 + $0x8] sm:$0xff]
    %v3729 = vld [vmem:[#allocation2 + $0x10] sm:$0xff]
    %v3730 = vld [vmem:[#allocation2 + $0x18] sm:$0xff]
    %3732 = vset.pattern.permute.xlu0 0
    %3733 = vperm.xlu0 %3732, %v60
    %v3734 = vpop.permute.xlu0 %3733
    %3737 = vset.pattern.permute.xlu0 0
    %3738 = vperm.xlu0 %3737, %v61
    %v3739 = vpop.permute.xlu0 %3738
    %3742 = vset.pattern.permute.xlu0 0
    %3743 = vperm.xlu0 %3742, %v62
    %v3744 = vpop.permute.xlu0 %3743
    %3747 = vset.pattern.permute.xlu0 0
    %3748 = vperm.xlu0 %3747, %v63
    %v3749 = vpop.permute.xlu0 %3748
    %vm3751 = vcmask 326656
    %v3753 = vsel %vm3751, %v3727, 0
    %v3756 = vsel %vm3751, %v3728, 0
    %v3759 = vsel %vm3751, %v3729, 0
    %v3762 = vsel %vm3751, %v3730, 0
    %3764 = vmatprep.subr.mxu0 0.0
    %3765 = vmatpush1.msra.mxu0 %v3726
    %3766 = vmatprep.subr.mxu0 0.0
    %3767 = vmatpush1.msra.mxu0 %v3722
    %3768 = vmatprep.subr.mxu0 0.0
    %3769 = vmatpush1.msra.mxu0 %v3723
    %3770 = vmatprep.subr.mxu0 0.0
    %3771 = vmatpush1.msra.mxu0 %v3724
    %3772 = vmatprep.subr.mxu0 0.0
    %3773 = vmatpush1.msra.mxu0 %v3725
    %3774 = vmatprep.subr.mxu0 0.0
    %3775 = vmatpush1.msra.mxu0 0.0
    %3776 = vmatprep.subr.mxu0 0.0
    %3777 = vmatpush1.msra.mxu0 0.0
    %3778 = vmatprep.subr.mxu0 0.0
    %3779 = vmatpush1.msra.mxu0 0.0
    %3780 = vmatprep.subr.mxu0 0.0
    %3781 = vmatpush1.msra.mxu0 0.0
    %3782 = vmatprep.subr.mxu0 0.0
    %3783 = vmatpush1.msra.mxu0 0.0
    %3784 = vmatprep.subr.mxu0 0.0
    %3785 = vmatpush1.msra.mxu0 0.0
    %3786 = vmatprep.subr.mxu0 0.0
    %3787 = vmatpush1.msra.mxu0 0.0
    %3788 = vmatprep.subr.mxu0 0.0
    %3789 = vmatpush1.msra.mxu0 0.0
    %3790 = vmatprep.subr.mxu0 0.0
    %3791 = vmatpush1.msra.mxu0 0.0
    %3792 = vmatprep.subr.mxu0 0.0
    %3793 = vmatpush1.msra.mxu0 0.0
    %3794 = vmatprep.subr.mxu0 0.0
    %3795 = vmatpush1.msra.mxu0 0.0
    %3796 = vmatprep.subr.mxu0 0.0
    %3797 = vmatpush1.msra.mxu0 0.0
    %3798 = vmatprep.subr.mxu0 0.0
    %3799 = vmatpush1.msra.mxu0 0.0
    %3800 = vmatprep.subr.mxu0 0.0
    %3801 = vmatpush1.msra.mxu0 0.0
    %3802 = vmatprep.subr.mxu0 0.0
    %3803 = vmatpush1.msra.mxu0 0.0
    %3804 = vmatprep.subr.mxu0 0.0
    %3805 = vmatpush1.msra.mxu0 0.0
    %3806 = vmatprep.subr.mxu0 0.0
    %3807 = vmatpush1.msra.mxu0 0.0
    %3808 = vmatprep.subr.mxu0 0.0
    %3809 = vmatpush1.msra.mxu0 0.0
    %3810 = vmatprep.subr.mxu0 0.0
    %3811 = vmatpush1.msra.mxu0 0.0
    %3812 = vmatprep.subr.mxu0 0.0
    %3813 = vmatpush1.msra.mxu0 0.0
    %3814 = vmatprep.subr.mxu0 0.0
    %3815 = vmatpush1.msra.mxu0 0.0
    %3816 = vmatprep.subr.mxu0 0.0
    %3817 = vmatpush1.msra.mxu0 0.0
    %3818 = vmatprep.subr.mxu0 0.0
    %3819 = vmatpush1.msra.mxu0 0.0
    %3820 = vmatprep.subr.mxu0 0.0
    %3821 = vmatpush1.msra.mxu0 0.0
    %3822 = vmatprep.subr.mxu0 0.0
    %3823 = vmatpush1.msra.mxu0 0.0
    %3824 = vmatprep.subr.mxu0 0.0
    %3825 = vmatpush1.msra.mxu0 0.0
    %3826 = vmatprep.subr.mxu0 0.0
    %3827 = vmatpush1.msra.mxu0 0.0
    %3828 = vmatprep.mubr.f32.mxu0 0.0
    %3829 = vmatmul.mubr.f32.gmra.mrb[0].mxu0 %v3753
    %v3830 = vpop.f32.mrb[0].mxu0
    %v3831 = vadd.f32 %v3734, %v3830
    %v3832 = vpop.f32.mrb[0].mxu0
    %3833 = vmatprep.mubr.f32.mxu0 0.0
    %3834 = vmatmul.mubr.f32.gmra.mrb[0].mxu0 %v3756
    %v3835 = vpop.f32.mrb[0].mxu0
    %v3836 = vadd.f32 %v3739, %v3835
    %v3837 = vpop.f32.mrb[0].mxu0
    %3838 = vmatprep.mubr.f32.mxu0 0.0
    %3839 = vmatmul.mubr.f32.gmra.mrb[0].mxu0 %v3759
    %v3840 = vpop.f32.mrb[0].mxu0
    %v3841 = vadd.f32 %v3744, %v3840
    %v3842 = vpop.f32.mrb[0].mxu0
    %3843 = vmatprep.mubr.f32.mxu0 0.0
    %3844 = vmatmul.mubr.f32.gmra.mrb[0].mxu0 %v3762
    %v3845 = vpop.f32.mrb[0].mxu0
    %v3846 = vadd.f32 %v3749, %v3845
    %v3847 = vpop.f32.mrb[0].mxu0
    %3848 = vdwg.mxu0
    %v3849 = vld [vmem:[%s5] sm:$0xff]
    %v3850 = vld [vmem:[%s5 + $0x8] sm:$0xff]
    %v3851 = vld [vmem:[%s5 + $0x10] sm:$0xff]
    %v3852 = vld [vmem:[%s5 + $0x18] sm:$0xff]
    %s3853 = scalar_lea.vmem %s5, 32
    %v3854 = vld [vmem:[%s3853] sm:$0xff]
    %v3855 = vld [vmem:[%s3853 + $0x8] sm:$0xff]
    %v3856 = vld [vmem:[%s3853 + $0x10] sm:$0xff]
    %v3857 = vld [vmem:[%s3853 + $0x18] sm:$0xff]
    %v3858 = vmax.f32 %v3831, 0.0
    %v3859 = vmax.f32 %v3836, 0.0
    %v3860 = vmax.f32 %v3841, 0.0
    %v3861 = vmax.f32 %v3846, 0.0
    %3863 = vset.pattern.permute.xlu0 0
    %3864 = vperm.xlu0 %3863, %v64
    %v3865 = vpop.permute.xlu0 %3864
    %3868 = vset.pattern.permute.xlu0 0
    %3869 = vperm.xlu0 %3868, %v65
    %v3870 = vpop.permute.xlu0 %3869
    %3873 = vset.pattern.permute.xlu0 0
    %3874 = vperm.xlu0 %3873, %v66
    %v3875 = vpop.permute.xlu0 %3874
    %3878 = vset.pattern.permute.xlu0 0
    %3879 = vperm.xlu0 %3878, %v67
    %v3880 = vpop.permute.xlu0 %3879
    %v3883 = vsel %vm193, %v3849, 0
    %v3886 = vsel %vm193, %v3850, 0
    %v3889 = vsel %vm193, %v3851, 0
    %v3892 = vsel %vm193, %v3852, 0
    %3894 = vmatprep.subr.mxu0 0.0
    %3895 = vmatpush1.msra.mxu0 %v3858
    %3896 = vmatprep.subr.mxu0 0.0
    %3897 = vmatpush1.msra.mxu0 %v3859
    %3898 = vmatprep.subr.mxu0 0.0
    %3899 = vmatpush1.msra.mxu0 %v3860
    %3900 = vmatprep.subr.mxu0 0.0
    %3901 = vmatpush1.msra.mxu0 %v3861
    %3902 = vmatprep.subr.mxu0 0.0
    %3903 = vmatpush1.msra.mxu0 0.0
    %3904 = vmatprep.subr.mxu0 0.0
    %3905 = vmatpush1.msra.mxu0 0.0
    %3906 = vmatprep.subr.mxu0 0.0
    %3907 = vmatpush1.msra.mxu0 0.0
    %3908 = vmatprep.subr.mxu0 0.0
    %3909 = vmatpush1.msra.mxu0 0.0
    %3910 = vmatprep.subr.mxu0 0.0
    %3911 = vmatpush1.msra.mxu0 0.0
    %3912 = vmatprep.subr.mxu0 0.0
    %3913 = vmatpush1.msra.mxu0 0.0
    %3914 = vmatprep.subr.mxu0 0.0
    %3915 = vmatpush1.msra.mxu0 0.0
    %3916 = vmatprep.subr.mxu0 0.0
    %3917 = vmatpush1.msra.mxu0 0.0
    %3918 = vmatprep.subr.mxu0 0.0
    %3919 = vmatpush1.msra.mxu0 0.0
    %3920 = vmatprep.subr.mxu0 0.0
    %3921 = vmatpush1.msra.mxu0 0.0
    %3922 = vmatprep.subr.mxu0 0.0
    %3923 = vmatpush1.msra.mxu0 0.0
    %3924 = vmatprep.subr.mxu0 0.0
    %3925 = vmatpush1.msra.mxu0 0.0
    %3926 = vmatprep.subr.mxu0 0.0
    %3927 = vmatpush1.msra.mxu0 0.0
    %3928 = vmatprep.subr.mxu0 0.0
    %3929 = vmatpush1.msra.mxu0 0.0
    %3930 = vmatprep.subr.mxu0 0.0
    %3931 = vmatpush1.msra.mxu0 0.0
    %3932 = vmatprep.subr.mxu0 0.0
    %3933 = vmatpush1.msra.mxu0 0.0
    %3934 = vmatprep.subr.mxu0 0.0
    %3935 = vmatpush1.msra.mxu0 0.0
    %3936 = vmatprep.subr.mxu0 0.0
    %3937 = vmatpush1.msra.mxu0 0.0
    %3938 = vmatprep.subr.mxu0 0.0
    %3939 = vmatpush1.msra.mxu0 0.0
    %3940 = vmatprep.subr.mxu0 0.0
    %3941 = vmatpush1.msra.mxu0 0.0
    %3942 = vmatprep.subr.mxu0 0.0
    %3943 = vmatpush1.msra.mxu0 0.0
    %3944 = vmatprep.subr.mxu0 0.0
    %3945 = vmatpush1.msra.mxu0 0.0
    %3946 = vmatprep.subr.mxu0 0.0
    %3947 = vmatpush1.msra.mxu0 0.0
    %3948 = vmatprep.subr.mxu0 0.0
    %3949 = vmatpush1.msra.mxu0 0.0
    %3950 = vmatprep.subr.mxu0 0.0
    %3951 = vmatpush1.msra.mxu0 0.0
    %3952 = vmatprep.subr.mxu0 0.0
    %3953 = vmatpush1.msra.mxu0 0.0
    %3954 = vmatprep.subr.mxu0 0.0
    %3955 = vmatpush1.msra.mxu0 0.0
    %3956 = vmatprep.subr.mxu0 0.0
    %3957 = vmatpush1.msra.mxu0 0.0
    %3958 = vmatprep.mubr.f32.mxu0 0.0
    %3959 = vmatmul.mubr.f32.gmra.mrb[0].mxu0 %v3883
    %v3960 = vpop.f32.mrb[0].mxu0
    %v3961 = vadd.f32 %v3865, %v3960
    %v3962 = vpop.f32.mrb[0].mxu0
    %3963 = vmatprep.mubr.f32.mxu0 0.0
    %3964 = vmatmul.mubr.f32.gmra.mrb[0].mxu0 %v3886
    %v3965 = vpop.f32.mrb[0].mxu0
    %v3966 = vadd.f32 %v3870, %v3965
    %v3967 = vpop.f32.mrb[0].mxu0
    %3968 = vmatprep.mubr.f32.mxu0 0.0
    %3969 = vmatmul.mubr.f32.gmra.mrb[0].mxu0 %v3889
    %v3970 = vpop.f32.mrb[0].mxu0
    %v3971 = vadd.f32 %v3875, %v3970
    %v3972 = vpop.f32.mrb[0].mxu0
    %3973 = vmatprep.mubr.f32.mxu0 0.0
    %3974 = vmatmul.mubr.f32.gmra.mrb[0].mxu0 %v3892
    %v3975 = vpop.f32.mrb[0].mxu0
    %v3976 = vadd.f32 %v3880, %v3975
    %v3977 = vpop.f32.mrb[0].mxu0
    %3978 = vdwg.mxu0
    %v3979 = vmax.f32 %v3961, 0.0
    %v3980 = vmax.f32 %v3966, 0.0
    %v3981 = vmax.f32 %v3971, 0.0
    %v3982 = vmax.f32 %v3976, 0.0
    %3984 = vset.pattern.permute.xlu0 0
    %3985 = vperm.xlu0 %3984, %v68
    %v3986 = vpop.permute.xlu0 %3985
    %3989 = vset.pattern.permute.xlu0 0
    %3990 = vperm.xlu0 %3989, %v69
    %v3991 = vpop.permute.xlu0 %3990
    %3994 = vset.pattern.permute.xlu0 0
    %3995 = vperm.xlu0 %3994, %v70
    %v3996 = vpop.permute.xlu0 %3995
    %3999 = vset.pattern.permute.xlu0 0
    %4000 = vperm.xlu0 %3999, %v71
    %v4001 = vpop.permute.xlu0 %4000
    %v4004 = vsel %vm193, %v3854, 0
    %v4007 = vsel %vm193, %v3855, 0
    %v4010 = vsel %vm193, %v3856, 0
    %v4013 = vsel %vm193, %v3857, 0
    %4015 = vmatprep.subr.mxu0 0.0
    %4016 = vmatpush1.msra.mxu0 %v3979
    %4017 = vmatprep.subr.mxu0 0.0
    %4018 = vmatpush1.msra.mxu0 %v3980
    %4019 = vmatprep.subr.mxu0 0.0
    %4020 = vmatpush1.msra.mxu0 %v3981
    %4021 = vmatprep.subr.mxu0 0.0
    %4022 = vmatpush1.msra.mxu0 %v3982
    %4023 = vmatprep.subr.mxu0 0.0
    %4024 = vmatpush1.msra.mxu0 0.0
    %4025 = vmatprep.subr.mxu0 0.0
    %4026 = vmatpush1.msra.mxu0 0.0
    %4027 = vmatprep.subr.mxu0 0.0
    %4028 = vmatpush1.msra.mxu0 0.0
    %4029 = vmatprep.subr.mxu0 0.0
    %4030 = vmatpush1.msra.mxu0 0.0
    %4031 = vmatprep.subr.mxu0 0.0
    %4032 = vmatpush1.msra.mxu0 0.0
    %4033 = vmatprep.subr.mxu0 0.0
    %4034 = vmatpush1.msra.mxu0 0.0
    %4035 = vmatprep.subr.mxu0 0.0
    %4036 = vmatpush1.msra.mxu0 0.0
    %4037 = vmatprep.subr.mxu0 0.0
    %4038 = vmatpush1.msra.mxu0 0.0
    %4039 = vmatprep.subr.mxu0 0.0
    %4040 = vmatpush1.msra.mxu0 0.0
    %4041 = vmatprep.subr.mxu0 0.0
    %4042 = vmatpush1.msra.mxu0 0.0
    %4043 = vmatprep.subr.mxu0 0.0
    %4044 = vmatpush1.msra.mxu0 0.0
    %4045 = vmatprep.subr.mxu0 0.0
    %4046 = vmatpush1.msra.mxu0 0.0
    %4047 = vmatprep.subr.mxu0 0.0
    %4048 = vmatpush1.msra.mxu0 0.0
    %4049 = vmatprep.subr.mxu0 0.0
    %4050 = vmatpush1.msra.mxu0 0.0
    %4051 = vmatprep.subr.mxu0 0.0
    %4052 = vmatpush1.msra.mxu0 0.0
    %4053 = vmatprep.subr.mxu0 0.0
    %4054 = vmatpush1.msra.mxu0 0.0
    %4055 = vmatprep.subr.mxu0 0.0
    %4056 = vmatpush1.msra.mxu0 0.0
    %4057 = vmatprep.subr.mxu0 0.0
    %4058 = vmatpush1.msra.mxu0 0.0
    %4059 = vmatprep.subr.mxu0 0.0
    %4060 = vmatpush1.msra.mxu0 0.0
    %4061 = vmatprep.subr.mxu0 0.0
    %4062 = vmatpush1.msra.mxu0 0.0
    %4063 = vmatprep.subr.mxu0 0.0
    %4064 = vmatpush1.msra.mxu0 0.0
    %4065 = vmatprep.subr.mxu0 0.0
    %4066 = vmatpush1.msra.mxu0 0.0
    %4067 = vmatprep.subr.mxu0 0.0
    %4068 = vmatpush1.msra.mxu0 0.0
    %4069 = vmatprep.subr.mxu0 0.0
    %4070 = vmatpush1.msra.mxu0 0.0
    %4071 = vmatprep.subr.mxu0 0.0
    %4072 = vmatpush1.msra.mxu0 0.0
    %4073 = vmatprep.subr.mxu0 0.0
    %4074 = vmatpush1.msra.mxu0 0.0
    %4075 = vmatprep.subr.mxu0 0.0
    %4076 = vmatpush1.msra.mxu0 0.0
    %4077 = vmatprep.subr.mxu0 0.0
    %4078 = vmatpush1.msra.mxu0 0.0
    %4079 = vmatprep.mubr.f32.mxu0 0.0
    %4080 = vmatmul.mubr.f32.gmra.mrb[0].mxu0 %v4004
    %v4081 = vpop.f32.mrb[0].mxu0
    %v4082 = vadd.f32 %v3986, %v4081
    %v4083 = vpop.f32.mrb[0].mxu0
    %4084 = vmatprep.mubr.f32.mxu0 0.0
    %4085 = vmatmul.mubr.f32.gmra.mrb[0].mxu0 %v4007
    %v4086 = vpop.f32.mrb[0].mxu0
    %v4087 = vadd.f32 %v3991, %v4086
    %v4088 = vpop.f32.mrb[0].mxu0
    %4089 = vmatprep.mubr.f32.mxu0 0.0
    %4090 = vmatmul.mubr.f32.gmra.mrb[0].mxu0 %v4010
    %v4091 = vpop.f32.mrb[0].mxu0
    %v4092 = vadd.f32 %v3996, %v4091
    %v4093 = vpop.f32.mrb[0].mxu0
    %4094 = vmatprep.mubr.f32.mxu0 0.0
    %4095 = vmatmul.mubr.f32.gmra.mrb[0].mxu0 %v4013
    %v4096 = vpop.f32.mrb[0].mxu0
    %v4097 = vadd.f32 %v4001, %v4096
    %v4098 = vpop.f32.mrb[0].mxu0
    %4099 = vdwg.mxu0
    %v4100 = vadd.f32 %v3831, %v4082
    %v4101 = vadd.f32 %v3836, %v4087
    %v4102 = vadd.f32 %v3841, %v4092
    %v4103 = vadd.f32 %v3846, %v4097
    %s4104 = scalar_lea.vmem %s5, 64
    %v4105 = vld [vmem:[%s4104] sm:$0xff]
    %v4106 = vld [vmem:[%s4104 + $0x8] sm:$0xff]
    %v4107 = vld [vmem:[%s4104 + $0x10] sm:$0xff]
    %v4108 = vld [vmem:[%s4104 + $0x18] sm:$0xff]
    %s4109 = scalar_lea.vmem %s5, 96
    %v4110 = vld [vmem:[%s4109] sm:$0xff]
    %v4111 = vld [vmem:[%s4109 + $0x8] sm:$0xff]
    %v4112 = vld [vmem:[%s4109 + $0x10] sm:$0xff]
    %v4113 = vld [vmem:[%s4109 + $0x18] sm:$0xff]
    %v4114 = vmax.f32 %v4100, 0.0
    %v4115 = vmax.f32 %v4101, 0.0
    %v4116 = vmax.f32 %v4102, 0.0
    %v4117 = vmax.f32 %v4103, 0.0
    %4119 = vset.pattern.permute.xlu0 0
    %4120 = vperm.xlu0 %4119, %v72
    %v4121 = vpop.permute.xlu0 %4120
    %4124 = vset.pattern.permute.xlu0 0
    %4125 = vperm.xlu0 %4124, %v73
    %v4126 = vpop.permute.xlu0 %4125
    %4129 = vset.pattern.permute.xlu0 0
    %4130 = vperm.xlu0 %4129, %v74
    %v4131 = vpop.permute.xlu0 %4130
    %4134 = vset.pattern.permute.xlu0 0
    %4135 = vperm.xlu0 %4134, %v75
    %v4136 = vpop.permute.xlu0 %4135
    %v4139 = vsel %vm193, %v4105, 0
    %v4142 = vsel %vm193, %v4106, 0
    %v4145 = vsel %vm193, %v4107, 0
    %v4148 = vsel %vm193, %v4108, 0
    %4150 = vmatprep.subr.mxu0 0.0
    %4151 = vmatpush1.msra.mxu0 %v4114
    %4152 = vmatprep.subr.mxu0 0.0
    %4153 = vmatpush1.msra.mxu0 %v4115
    %4154 = vmatprep.subr.mxu0 0.0
    %4155 = vmatpush1.msra.mxu0 %v4116
    %4156 = vmatprep.subr.mxu0 0.0
    %4157 = vmatpush1.msra.mxu0 %v4117
    %4158 = vmatprep.subr.mxu0 0.0
    %4159 = vmatpush1.msra.mxu0 0.0
    %4160 = vmatprep.subr.mxu0 0.0
    %4161 = vmatpush1.msra.mxu0 0.0
    %4162 = vmatprep.subr.mxu0 0.0
    %4163 = vmatpush1.msra.mxu0 0.0
    %4164 = vmatprep.subr.mxu0 0.0
    %4165 = vmatpush1.msra.mxu0 0.0
    %4166 = vmatprep.subr.mxu0 0.0
    %4167 = vmatpush1.msra.mxu0 0.0
    %4168 = vmatprep.subr.mxu0 0.0
    %4169 = vmatpush1.msra.mxu0 0.0
    %4170 = vmatprep.subr.mxu0 0.0
    %4171 = vmatpush1.msra.mxu0 0.0
    %4172 = vmatprep.subr.mxu0 0.0
    %4173 = vmatpush1.msra.mxu0 0.0
    %4174 = vmatprep.subr.mxu0 0.0
    %4175 = vmatpush1.msra.mxu0 0.0
    %4176 = vmatprep.subr.mxu0 0.0
    %4177 = vmatpush1.msra.mxu0 0.0
    %4178 = vmatprep.subr.mxu0 0.0
    %4179 = vmatpush1.msra.mxu0 0.0
    %4180 = vmatprep.subr.mxu0 0.0
    %4181 = vmatpush1.msra.mxu0 0.0
    %4182 = vmatprep.subr.mxu0 0.0
    %4183 = vmatpush1.msra.mxu0 0.0
    %4184 = vmatprep.subr.mxu0 0.0
    %4185 = vmatpush1.msra.mxu0 0.0
    %4186 = vmatprep.subr.mxu0 0.0
    %4187 = vmatpush1.msra.mxu0 0.0
    %4188 = vmatprep.subr.mxu0 0.0
    %4189 = vmatpush1.msra.mxu0 0.0
    %4190 = vmatprep.subr.mxu0 0.0
    %4191 = vmatpush1.msra.mxu0 0.0
    %4192 = vmatprep.subr.mxu0 0.0
    %4193 = vmatpush1.msra.mxu0 0.0
    %4194 = vmatprep.subr.mxu0 0.0
    %4195 = vmatpush1.msra.mxu0 0.0
    %4196 = vmatprep.subr.mxu0 0.0
    %4197 = vmatpush1.msra.mxu0 0.0
    %4198 = vmatprep.subr.mxu0 0.0
    %4199 = vmatpush1.msra.mxu0 0.0
    %4200 = vmatprep.subr.mxu0 0.0
    %4201 = vmatpush1.msra.mxu0 0.0
    %4202 = vmatprep.subr.mxu0 0.0
    %4203 = vmatpush1.msra.mxu0 0.0
    %4204 = vmatprep.subr.mxu0 0.0
    %4205 = vmatpush1.msra.mxu0 0.0
    %4206 = vmatprep.subr.mxu0 0.0
    %4207 = vmatpush1.msra.mxu0 0.0
    %4208 = vmatprep.subr.mxu0 0.0
    %4209 = vmatpush1.msra.mxu0 0.0
    %4210 = vmatprep.subr.mxu0 0.0
    %4211 = vmatpush1.msra.mxu0 0.0
    %4212 = vmatprep.subr.mxu0 0.0
    %4213 = vmatpush1.msra.mxu0 0.0
    %4214 = vmatprep.mubr.f32.mxu0 0.0
    %4215 = vmatmul.mubr.f32.gmra.mrb[0].mxu0 %v4139
    %v4216 = vpop.f32.mrb[0].mxu0
    %v4217 = vadd.f32 %v4121, %v4216
    %v4218 = vpop.f32.mrb[0].mxu0
    %4219 = vmatprep.mubr.f32.mxu0 0.0
    %4220 = vmatmul.mubr.f32.gmra.mrb[0].mxu0 %v4142
    %v4221 = vpop.f32.mrb[0].mxu0
    %v4222 = vadd.f32 %v4126, %v4221
    %v4223 = vpop.f32.mrb[0].mxu0
    %4224 = vmatprep.mubr.f32.mxu0 0.0
    %4225 = vmatmul.mubr.f32.gmra.mrb[0].mxu0 %v4145
    %v4226 = vpop.f32.mrb[0].mxu0
    %v4227 = vadd.f32 %v4131, %v4226
    %v4228 = vpop.f32.mrb[0].mxu0
    %4229 = vmatprep.mubr.f32.mxu0 0.0
    %4230 = vmatmul.mubr.f32.gmra.mrb[0].mxu0 %v4148
    %v4231 = vpop.f32.mrb[0].mxu0
    %v4232 = vadd.f32 %v4136, %v4231
    %v4233 = vpop.f32.mrb[0].mxu0
    %4234 = vdwg.mxu0
    %v4235 = vmax.f32 %v4217, 0.0
    %v4236 = vmax.f32 %v4222, 0.0
    %v4237 = vmax.f32 %v4227, 0.0
    %v4238 = vmax.f32 %v4232, 0.0
    %4240 = vset.pattern.permute.xlu0 0
    %4241 = vperm.xlu0 %4240, %v76
    %v4242 = vpop.permute.xlu0 %4241
    %4245 = vset.pattern.permute.xlu0 0
    %4246 = vperm.xlu0 %4245, %v77
    %v4247 = vpop.permute.xlu0 %4246
    %4250 = vset.pattern.permute.xlu0 0
    %4251 = vperm.xlu0 %4250, %v78
    %v4252 = vpop.permute.xlu0 %4251
    %4255 = vset.pattern.permute.xlu0 0
    %4256 = vperm.xlu0 %4255, %v79
    %v4257 = vpop.permute.xlu0 %4256
    %v4260 = vsel %vm193, %v4110, 0
    %v4263 = vsel %vm193, %v4111, 0
    %v4266 = vsel %vm193, %v4112, 0
    %v4269 = vsel %vm193, %v4113, 0
    %4271 = vmatprep.subr.mxu0 0.0
    %4272 = vmatpush1.msra.mxu0 %v4235
    %4273 = vmatprep.subr.mxu0 0.0
    %4274 = vmatpush1.msra.mxu0 %v4236
    %4275 = vmatprep.subr.mxu0 0.0
    %4276 = vmatpush1.msra.mxu0 %v4237
    %4277 = vmatprep.subr.mxu0 0.0
    %4278 = vmatpush1.msra.mxu0 %v4238
    %4279 = vmatprep.subr.mxu0 0.0
    %4280 = vmatpush1.msra.mxu0 0.0
    %4281 = vmatprep.subr.mxu0 0.0
    %4282 = vmatpush1.msra.mxu0 0.0
    %4283 = vmatprep.subr.mxu0 0.0
    %4284 = vmatpush1.msra.mxu0 0.0
    %4285 = vmatprep.subr.mxu0 0.0
    %4286 = vmatpush1.msra.mxu0 0.0
    %4287 = vmatprep.subr.mxu0 0.0
    %4288 = vmatpush1.msra.mxu0 0.0
    %4289 = vmatprep.subr.mxu0 0.0
    %4290 = vmatpush1.msra.mxu0 0.0
    %4291 = vmatprep.subr.mxu0 0.0
    %4292 = vmatpush1.msra.mxu0 0.0
    %4293 = vmatprep.subr.mxu0 0.0
    %4294 = vmatpush1.msra.mxu0 0.0
    %4295 = vmatprep.subr.mxu0 0.0
    %4296 = vmatpush1.msra.mxu0 0.0
    %4297 = vmatprep.subr.mxu0 0.0
    %4298 = vmatpush1.msra.mxu0 0.0
    %4299 = vmatprep.subr.mxu0 0.0
    %4300 = vmatpush1.msra.mxu0 0.0
    %4301 = vmatprep.subr.mxu0 0.0
    %4302 = vmatpush1.msra.mxu0 0.0
    %4303 = vmatprep.subr.mxu0 0.0
    %4304 = vmatpush1.msra.mxu0 0.0
    %4305 = vmatprep.subr.mxu0 0.0
    %4306 = vmatpush1.msra.mxu0 0.0
    %4307 = vmatprep.subr.mxu0 0.0
    %4308 = vmatpush1.msra.mxu0 0.0
    %4309 = vmatprep.subr.mxu0 0.0
    %4310 = vmatpush1.msra.mxu0 0.0
    %4311 = vmatprep.subr.mxu0 0.0
    %4312 = vmatpush1.msra.mxu0 0.0
    %4313 = vmatprep.subr.mxu0 0.0
    %4314 = vmatpush1.msra.mxu0 0.0
    %4315 = vmatprep.subr.mxu0 0.0
    %4316 = vmatpush1.msra.mxu0 0.0
    %4317 = vmatprep.subr.mxu0 0.0
    %4318 = vmatpush1.msra.mxu0 0.0
    %4319 = vmatprep.subr.mxu0 0.0
    %4320 = vmatpush1.msra.mxu0 0.0
    %4321 = vmatprep.subr.mxu0 0.0
    %4322 = vmatpush1.msra.mxu0 0.0
    %4323 = vmatprep.subr.mxu0 0.0
    %4324 = vmatpush1.msra.mxu0 0.0
    %4325 = vmatprep.subr.mxu0 0.0
    %4326 = vmatpush1.msra.mxu0 0.0
    %4327 = vmatprep.subr.mxu0 0.0
    %4328 = vmatpush1.msra.mxu0 0.0
    %4329 = vmatprep.subr.mxu0 0.0
    %4330 = vmatpush1.msra.mxu0 0.0
    %4331 = vmatprep.subr.mxu0 0.0
    %4332 = vmatpush1.msra.mxu0 0.0
    %4333 = vmatprep.subr.mxu0 0.0
    %4334 = vmatpush1.msra.mxu0 0.0
    %4335 = vmatprep.mubr.f32.mxu0 0.0
    %4336 = vmatmul.mubr.f32.gmra.mrb[0].mxu0 %v4260
    %v4337 = vpop.f32.mrb[0].mxu0
    %v4338 = vadd.f32 %v4242, %v4337
    %v4339 = vpop.f32.mrb[0].mxu0
    %4340 = vmatprep.mubr.f32.mxu0 0.0
    %4341 = vmatmul.mubr.f32.gmra.mrb[0].mxu0 %v4263
    %v4342 = vpop.f32.mrb[0].mxu0
    %v4343 = vadd.f32 %v4247, %v4342
    %v4344 = vpop.f32.mrb[0].mxu0
    %4345 = vmatprep.mubr.f32.mxu0 0.0
    %4346 = vmatmul.mubr.f32.gmra.mrb[0].mxu0 %v4266
    %v4347 = vpop.f32.mrb[0].mxu0
    %v4348 = vadd.f32 %v4252, %v4347
    %v4349 = vpop.f32.mrb[0].mxu0
    %4350 = vmatprep.mubr.f32.mxu0 0.0
    %4351 = vmatmul.mubr.f32.gmra.mrb[0].mxu0 %v4269
    %v4352 = vpop.f32.mrb[0].mxu0
    %v4353 = vadd.f32 %v4257, %v4352
    %v4354 = vpop.f32.mrb[0].mxu0
    %4355 = vdwg.mxu0
    %v4356 = vadd.f32 %v4100, %v4338
    %v4357 = vadd.f32 %v4101, %v4343
    %v4358 = vadd.f32 %v4102, %v4348
    %v4359 = vadd.f32 %v4103, %v4353
    %v4360 = vld [vmem:[%s6] sm:$0x1]
    %v4361 = vmax.f32 %v4356, 0.0
    %v4362 = vmax.f32 %v4357, 0.0
    %v4363 = vmax.f32 %v4358, 0.0
    %v4364 = vmax.f32 %v4359, 0.0
    %4366 = vset.pattern.permute.xlu0 0
    %4367 = vperm.xlu0 %4366, %v80
    %v4368 = vpop.permute.xlu0 %4367
    %v4371 = vsel %vm193, %v4360, 0
    %4373 = vmatprep.subr.mxu0 0.0
    %4374 = vmatpush1.msra.mxu0 %v4361
    %4375 = vmatprep.subr.mxu0 0.0
    %4376 = vmatpush1.msra.mxu0 %v4362
    %4377 = vmatprep.subr.mxu0 0.0
    %4378 = vmatpush1.msra.mxu0 %v4363
    %4379 = vmatprep.subr.mxu0 0.0
    %4380 = vmatpush1.msra.mxu0 %v4364
    %4381 = vmatprep.subr.mxu0 0.0
    %4382 = vmatpush1.msra.mxu0 0.0
    %4383 = vmatprep.subr.mxu0 0.0
    %4384 = vmatpush1.msra.mxu0 0.0
    %4385 = vmatprep.subr.mxu0 0.0
    %4386 = vmatpush1.msra.mxu0 0.0
    %4387 = vmatprep.subr.mxu0 0.0
    %4388 = vmatpush1.msra.mxu0 0.0
    %4389 = vmatprep.subr.mxu0 0.0
    %4390 = vmatpush1.msra.mxu0 0.0
    %4391 = vmatprep.subr.mxu0 0.0
    %4392 = vmatpush1.msra.mxu0 0.0
    %4393 = vmatprep.subr.mxu0 0.0
    %4394 = vmatpush1.msra.mxu0 0.0
    %4395 = vmatprep.subr.mxu0 0.0
    %4396 = vmatpush1.msra.mxu0 0.0
    %4397 = vmatprep.subr.mxu0 0.0
    %4398 = vmatpush1.msra.mxu0 0.0
    %4399 = vmatprep.subr.mxu0 0.0
    %4400 = vmatpush1.msra.mxu0 0.0
    %4401 = vmatprep.subr.mxu0 0.0
    %4402 = vmatpush1.msra.mxu0 0.0
    %4403 = vmatprep.subr.mxu0 0.0
    %4404 = vmatpush1.msra.mxu0 0.0
    %4405 = vmatprep.subr.mxu0 0.0
    %4406 = vmatpush1.msra.mxu0 0.0
    %4407 = vmatprep.subr.mxu0 0.0
    %4408 = vmatpush1.msra.mxu0 0.0
    %4409 = vmatprep.subr.mxu0 0.0
    %4410 = vmatpush1.msra.mxu0 0.0
    %4411 = vmatprep.subr.mxu0 0.0
    %4412 = vmatpush1.msra.mxu0 0.0
    %4413 = vmatprep.subr.mxu0 0.0
    %4414 = vmatpush1.msra.mxu0 0.0
    %4415 = vmatprep.subr.mxu0 0.0
    %4416 = vmatpush1.msra.mxu0 0.0
    %4417 = vmatprep.subr.mxu0 0.0
    %4418 = vmatpush1.msra.mxu0 0.0
    %4419 = vmatprep.subr.mxu0 0.0
    %4420 = vmatpush1.msra.mxu0 0.0
    %4421 = vmatprep.subr.mxu0 0.0
    %4422 = vmatpush1.msra.mxu0 0.0
    %4423 = vmatprep.subr.mxu0 0.0
    %4424 = vmatpush1.msra.mxu0 0.0
    %4425 = vmatprep.subr.mxu0 0.0
    %4426 = vmatpush1.msra.mxu0 0.0
    %4427 = vmatprep.subr.mxu0 0.0
    %4428 = vmatpush1.msra.mxu0 0.0
    %4429 = vmatprep.subr.mxu0 0.0
    %4430 = vmatpush1.msra.mxu0 0.0
    %4431 = vmatprep.subr.mxu0 0.0
    %4432 = vmatpush1.msra.mxu0 0.0
    %4433 = vmatprep.subr.mxu0 0.0
    %4434 = vmatpush1.msra.mxu0 0.0
    %4435 = vmatprep.subr.mxu0 0.0
    %4436 = vmatpush1.msra.mxu0 0.0
    %4437 = vmatprep.mubr.f32.mxu0 0.0
    %4438 = vmatmul.mubr.f32.gmra.mrb[0].mxu0 %v4371
    %v4439 = vpop.f32.mrb[0].mxu0
    %v4440 = vadd.f32 %v4368, %v4439
    %v4441 = vpop.f32.mrb[0].mxu0
    %4442 = vdwg.mxu0
    %4443 = vst [vmem:[#allocation5] sm:$0x1] %v4440
    // Predicated region
    $region38: #{tpu_custom_call.1} parent=1 // pred_check
      _
    $region39: #{tpu_custom_call.1} parent=1 // pred_check_branch
      %4445 = sbr.rel (0) target = $region41
    $region40: #{tpu_custom_call.1} parent=1 // pred_region
      %s4447 = ssub.s32 16, 16
      %4448 = vsyncadd [#allocation4], %s4447
      %s4450 = sshll.u32 [#allocation5], 4
      %s4451 = int_to_ptr.vmem [resolvable:$true] %s4450
      %4453 = dma.vmem_to_hbm [thread:$0]  %s4451, 16, %s8, [#allocation4]
    $region41: #{tpu_custom_call.1} parent=1 // pred_fallthru
      _
    // Predicated region
    $region42: #{tpu_custom_call.1} parent=1 // pred_check
      _
    $region43: #{tpu_custom_call.1} parent=1 // pred_check_branch
      %4455 = sbr.rel (0) target = $region45
    $region44: #{tpu_custom_call.1} parent=1 // pred_region
      %4456 = dma.done [#allocation4], 16
    $region45: #{tpu_custom_call.1} parent=1 // pred_fallthru
      _
    %4457 = vsyncpa [#allocation3], 1
    %4458 = vsyncpa [#allocation4], 1

</llo_original>
